<compile_context>
chip_gen: v5e
topology: v5e:2x2
jax: 0.10.0
libtpu: 0.0.40
codegen_flags: <defaults>
</compile_context>

<pallas_src>
import functools

import numpy as np
import jax
import jax.numpy as jnp
from jax import lax
from jax.experimental import pallas as pl
from jax.experimental.pallas import tpu as pltpu


# ---------------------------------------------------------------------------
# Fused Pallas kernel (one image per grid step)
# ---------------------------------------------------------------------------

def _stage0_kernel(p1_ref, w1_ref, b1_ref, w2_ref, b2_ref, w3_ref, b3_ref,
                   out10_ref, out5_ref, pool_ref, pad_ref, *, hp, cout):
  """Fused stage0 for one image.

  p1_ref:   (4*hp*hp, 147)   im2col patches of the 7x7/s2 conv, rows grouped by
                             output-pixel parity g = 2*(oh%2) + (ow%2).
  w1_ref:   (147, cout)      conv1 weights with BN scale folded in.
  w2_ref/w3_ref: (3, 3, cout, cout)   conv2/conv3 weights with BN scale folded in.
  b*_ref:   (1, cout)        folded BN biases.
  out10_ref/out5_ref: (hp, hp, cout)  outputs.
  pool_ref: (2, 2, hp+1, hp+1, cout)  zero-padded polyphase planes of conv1 output.
  pad_ref:  (hp+2, hp+2, cout)        zero-padded input buffer for the 3x3 convs.
  """
  f32 = jnp.float32
  m = hp * hp

  # ---- conv 7x7 / stride 2 : single im2col matmul (M=4*m, K=147) + BN + ReLU
  y1 = jnp.dot(p1_ref[...], w1_ref[...], preferred_element_type=f32)
  y1 = jnp.maximum(y1 + b1_ref[...], 0.0)                       # (4*m, cout)

  # ---- scatter the four output-parity planes into the polyphase buffer -----
  # pool_ref[p, q, a, b] == y1_padded[2a + p, 2b + q]   (zero pad; safe post-ReLU)
  pool_ref[...] = jnp.zeros(pool_ref.shape, f32)
  pool_ref[1, 1, 0:hp, 0:hp, :] = y1[0 * m:1 * m].reshape(hp, hp, cout)          # (even,even)
  pool_ref[1, 0, 0:hp, 1:hp + 1, :] = y1[1 * m:2 * m].reshape(hp, hp, cout)      # (even,odd)
  pool_ref[0, 1, 1:hp + 1, 0:hp, :] = y1[2 * m:3 * m].reshape(hp, hp, cout)      # (odd,even)
  pool_ref[0, 0, 1:hp + 1, 1:hp + 1, :] = y1[3 * m:4 * m].reshape(hp, hp, cout)  # (odd,odd)

  # ---- maxpool 3x3 / stride 2 / pad 1 : nine unit-stride polyphase windows --
  taps = ((0, 0), (1, 0), (0, 1))          # kernel offset i = 2*da + p
  out5 = None
  for p, da in taps:
    for q, db in taps:
      t = pool_ref[p, q, da:da + hp, db:db + hp, :]
      out5 = t if out5 is None else jnp.maximum(out5, t)
  out5_ref[...] = out5                                           # (hp, hp, cout)

  # ---- two 3x3 convs (+BN, first with ReLU), zero-padded via VMEM scratch ---
  def conv3x3(w_ref, b_ref, relu):
    acc = jnp.zeros((m, cout), f32)
    for i in range(3):
      for j in range(3):
        patch = pad_ref[i:i + hp, j:j + hp, :].reshape(m, cout)
        acc = acc + jnp.dot(patch, w_ref[i, j], preferred_element_type=f32)
    acc = acc + b_ref[...]
    return jnp.maximum(acc, 0.0) if relu else acc

  pad_ref[...] = jnp.zeros(pad_ref.shape, f32)
  pad_ref[1:hp + 1, 1:hp + 1, :] = out5
  y2 = conv3x3(w2_ref, b2_ref, relu=True)                        # (m, cout)

  pad_ref[1:hp + 1, 1:hp + 1, :] = y2.reshape(hp, hp, cout)
  out10_ref[...] = conv3x3(w3_ref, b3_ref, relu=False).reshape(hp, hp, cout)


# ---------------------------------------------------------------------------
# Wrapper
# ---------------------------------------------------------------------------

def _fold_bn(gamma, beta, mean, var, eps=1e-5):
  scale = gamma / jnp.sqrt(var + eps)
  bias = beta - mean * scale
  return scale, bias


@jax.jit
def stage0_forward(x_nchw, w1, bn1, w2, bn2, w3, bn3):
  """Returns (out10, out5) in NCHW, matching the torch module."""
  n, cin, h, w = x_nchw.shape
  assert cin == 3 and h == w and h % 4 == 0, (n, cin, h, w)
  h1 = h // 2        # conv1 (7x7 / s2 / pad 3) output size
  hp = h1 // 2       # maxpool (3x3 / s2 / pad 1) output size
  cout = w1.shape[-1]

  x = jnp.transpose(x_nchw, (0, 2, 3, 1))                        # NCHW -> NHWC
  s1, b1 = _fold_bn(*bn1)
  s2, b2 = _fold_bn(*bn2)
  s3, b3 = _fold_bn(*bn3)

  # im2col for the 7x7 / stride-2 conv, rows grouped by output-pixel parity.
  xp = jnp.pad(x, ((0, 0), (3, 3), (3, 3), (0, 0)))
  cols = jnp.concatenate(
      [xp[:, i:i + h:2, j:j + h:2, :] for i in range(7) for j in range(7)],
      axis=-1)                                                   # (n, h1, h1, 147)
  cols = cols.reshape(n, hp, 2, hp, 2, 7 * 7 * cin)
  cols = cols.transpose(0, 2, 4, 1, 3, 5)                        # (n, ph, pw, a, b, 147)
  p1 = cols.reshape(n, 4 * hp * hp, 7 * 7 * cin)

  # Fold the BN scale into the conv weights (bias stays separate).
  w1f = w1.reshape(7 * 7 * cin, cout) * s1[None, :]
  w2f = w2 * s2[None, None, None, :]
  w3f = w3 * s3[None, None, None, :]

  kern = functools.partial(_stage0_kernel, hp=hp, cout=cout)
  out10, out5 = pl.pallas_call(
      kern,
      out_shape=(jax.ShapeDtypeStruct((n, hp, hp, cout), jnp.float32),
                 jax.ShapeDtypeStruct((n, hp, hp, cout), jnp.float32)),
      grid=(n,),
      in_specs=[
          pl.BlockSpec((None, 4 * hp * hp, 7 * 7 * cin), lambda b: (b, 0, 0)),
          pl.BlockSpec((7 * 7 * cin, cout), lambda b: (0, 0)),
          pl.BlockSpec((1, cout), lambda b: (0, 0)),
          pl.BlockSpec((3, 3, cout, cout), lambda b: (0, 0, 0, 0)),
          pl.BlockSpec((1, cout), lambda b: (0, 0)),
          pl.BlockSpec((3, 3, cout, cout), lambda b: (0, 0, 0, 0)),
          pl.BlockSpec((1, cout), lambda b: (0, 0)),
      ],
      out_specs=(pl.BlockSpec((None, hp, hp, cout), lambda b: (b, 0, 0, 0)),
                 pl.BlockSpec((None, hp, hp, cout), lambda b: (b, 0, 0, 0))),
      scratch_shapes=[
          pltpu.VMEM((2, 2, hp + 1, hp + 1, cout), jnp.float32),
          pltpu.VMEM((hp + 2, hp + 2, cout), jnp.float32),
      ],
      compiler_params=pltpu.CompilerParams(dimension_semantics=("parallel",)),
  )(p1, w1f, b1.reshape(1, cout), w2f, b2.reshape(1, cout), w3f, b3.reshape(1, cout))

  return (jnp.transpose(out10, (0, 3, 1, 2)),
          jnp.transpose(out5, (0, 3, 1, 2)))


# ---------------------------------------------------------------------------
# Pure-JAX reference (sanity check only)
# ---------------------------------------------------------------------------

def stage0_reference(x_nchw, w1, bn1, w2, bn2, w3, bn3):
  x = jnp.transpose(x_nchw, (0, 2, 3, 1))

  def conv(v, w, s, p):
    return lax.conv_general_dilated(
        v, w, (s, s), [(p, p), (p, p)],
        dimension_numbers=('NHWC', 'HWIO', 'NHWC'),
        precision=lax.Precision.HIGHEST)

  def bn(v, params):
    g, b, m, var = params
    return (v - m) / jnp.sqrt(var + 1e-5) * g + b

  y = jnp.maximum(bn(conv(x, w1, 2, 3), bn1), 0.0)
  y = lax.reduce_window(y, -jnp.inf, lax.max, (1, 3, 3, 1), (1, 2, 2, 1),
                        [(0, 0), (1, 1), (1, 1), (0, 0)])
  out5 = y
  y = jnp.maximum(bn(conv(y, w2, 1, 1), bn2), 0.0)
  y = bn(conv(y, w3, 1, 1), bn3)
  return (jnp.transpose(y, (0, 3, 1, 2)), jnp.transpose(out5, (0, 3, 1, 2)))


# ---------------------------------------------------------------------------
# Main
# ---------------------------------------------------------------------------

if __name__ == "__main__":
  key = jax.random.PRNGKey(0)
  ks = jax.random.split(key, 16)

  N, C, H, W = 2, 3, 32, 32
  x_nchw = jax.random.normal(ks[0], (N, C, H, W), jnp.float32)

  def bn_params(kg, kb, km, kv, c):
    gamma = 1.0 + 0.1 * jax.random.normal(kg, (c,), jnp.float32)
    beta = 0.1 * jax.random.normal(kb, (c,), jnp.float32)
    mean = 0.1 * jax.random.normal(km, (c,), jnp.float32)
    var = jax.random.uniform(kv, (c,), jnp.float32, minval=0.5, maxval=1.5)
    return gamma, beta, mean, var

  # Weights in HWIO layout (KH, KW, Cin, Cout).
  w1 = 0.05 * jax.random.normal(ks[1], (7, 7, 3, 64), jnp.float32)
  bn1 = bn_params(ks[2], ks[3], ks[4], ks[5], 64)
  w2 = 0.05 * jax.random.normal(ks[6], (3, 3, 64, 64), jnp.float32)
  bn2 = bn_params(ks[7], ks[8], ks[9], ks[10], 64)
  w3 = 0.05 * jax.random.normal(ks[11], (3, 3, 64, 64), jnp.float32)
  bn3 = bn_params(ks[12], ks[13], ks[14], ks[15], 64)

  out10, out5 = stage0_forward(x_nchw, w1, bn1, w2, bn2, w3, bn3)
  (out10, out5) = jax.block_until_ready((out10, out5))

  assert out10.shape == (N, 64, 8, 8), out10.shape
  assert out5.shape == (N, 64, 8, 8), out5.shape

  ref10, ref5 = stage0_reference(x_nchw, w1, bn1, w2, bn2, w3, bn3)
  np.testing.assert_allclose(np.asarray(out5), np.asarray(ref5),
                             rtol=1e-2, atol=1e-2)
  np.testing.assert_allclose(np.asarray(out10), np.asarray(ref10),
                             rtol=1e-2, atol=1e-2)

  print("KERNEL_OK")
</pallas_src>

<mosaic_0001>
module attributes {stable_mosaic.version = 11 : i64} {
  func.func @_stage0_kernel(%arg0: i32, %arg1: memref<1x256x147xf32, #tpu.memory_space<vmem>>, %arg2: memref<147x64xf32, #tpu.memory_space<vmem>>, %arg3: memref<1x64xf32, #tpu.memory_space<vmem>>, %arg4: memref<3x3x64x64xf32, #tpu.memory_space<vmem>>, %arg5: memref<1x64xf32, #tpu.memory_space<vmem>>, %arg6: memref<3x3x64x64xf32, #tpu.memory_space<vmem>>, %arg7: memref<1x64xf32, #tpu.memory_space<vmem>>, %arg8: memref<1x8x8x64xf32, #tpu.memory_space<vmem>>, %arg9: memref<1x8x8x64xf32, #tpu.memory_space<vmem>>, %arg10: memref<2x2x9x9x64xf32, #tpu.memory_space<vmem>>, %arg11: memref<10x10x64xf32, #tpu.memory_space<vmem>>) attributes {dimension_semantics = [#tpu.dimension_semantics<parallel>], iteration_bounds = array<i64: 2>, scalar_prefetch = 0 : i64, scratch_operands = 2 : i64, tpu.core_type = #tpu.core_type<tc>, window_params = [{transform_indices = @transform_0, window_bounds = array<i64: 1, 256, 147>}, {pipeline_mode = #tpu.pipeline_mode<synchronous>, transform_indices = @transform_1, window_bounds = array<i64: 147, 64>}, {pipeline_mode = #tpu.pipeline_mode<synchronous>, transform_indices = @transform_2, window_bounds = array<i64: 1, 64>}, {pipeline_mode = #tpu.pipeline_mode<synchronous>, transform_indices = @transform_3, window_bounds = array<i64: 3, 3, 64, 64>}, {pipeline_mode = #tpu.pipeline_mode<synchronous>, transform_indices = @transform_4, window_bounds = array<i64: 1, 64>}, {pipeline_mode = #tpu.pipeline_mode<synchronous>, transform_indices = @transform_5, window_bounds = array<i64: 3, 3, 64, 64>}, {pipeline_mode = #tpu.pipeline_mode<synchronous>, transform_indices = @transform_6, window_bounds = array<i64: 1, 64>}, {transform_indices = @transform_7, window_bounds = array<i64: 1, 8, 8, 64>}, {transform_indices = @transform_8, window_bounds = array<i64: 1, 8, 8, 64>}]} {
    %c0 = arith.constant 0 : index
    %c0_0 = arith.constant 0 : index
    %c0_1 = arith.constant 0 : index
    %0 = vector.load %arg1[%c0, %c0_0, %c0_1] : memref<1x256x147xf32, #tpu.memory_space<vmem>>, vector<1x256x147xf32>
    %1 = vector.shape_cast %0 : vector<1x256x147xf32> to vector<256x147xf32>
    %c0_2 = arith.constant 0 : index
    %c0_3 = arith.constant 0 : index
    %2 = vector.load %arg2[%c0_2, %c0_3] : memref<147x64xf32, #tpu.memory_space<vmem>>, vector<147x64xf32>
    %cst = arith.constant dense<0.000000e+00> : vector<256x64xf32>
    %3 = tpu.matmul %1, %2, %cst {dimension_numbers = #tpu.dot_dimension_numbers<[1], [0], [0], [1], [0, 0, 1, 1], [], []>} : vector<256x147xf32>, vector<147x64xf32>, vector<256x64xf32> -> vector<256x64xf32>
    %c0_4 = arith.constant 0 : index
    %c0_5 = arith.constant 0 : index
    %4 = vector.load %arg3[%c0_4, %c0_5] : memref<1x64xf32, #tpu.memory_space<vmem>>, vector<1x64xf32>
    %5 = vector.broadcast %4 : vector<1x64xf32> to vector<256x64xf32>
    %6 = arith.addf %3, %5 : vector<256x64xf32>
    %cst_6 = arith.constant 0.000000e+00 : f32
    %7 = vector.broadcast %cst_6 : f32 to vector<256x64xf32>
    %8 = arith.maximumf %6, %7 : vector<256x64xf32>
    %cst_7 = arith.constant 0.000000e+00 : f32
    %9 = vector.broadcast %cst_7 : f32 to vector<2x2x9x9x64xf32>
    %c0_8 = arith.constant 0 : index
    %c0_9 = arith.constant 0 : index
    %c0_10 = arith.constant 0 : index
    %c0_11 = arith.constant 0 : index
    %c0_12 = arith.constant 0 : index
    %10 = vector.load %arg10[%c0_8, %c0_9, %c0_10, %c0_11, %c0_12] : memref<2x2x9x9x64xf32, #tpu.memory_space<vmem>>, vector<2x2x9x9x64xf32>
    tpu.vector_store %arg10[%c0_8, %c0_9, %c0_10, %c0_11, %c0_12], %9 {strides = array<i32>} : memref<2x2x9x9x64xf32, #tpu.memory_space<vmem>>, vector<2x2x9x9x64xf32>,
    %11 = vector.extract_strided_slice %8 {offsets = [0, 0], sizes = [64, 64], strides = [1, 1]} : vector<256x64xf32> to vector<64x64xf32>
    %12 = vector.shape_cast %11 : vector<64x64xf32> to vector<8x8x64xf32>
    %c1 = arith.constant 1 : index
    %c1_13 = arith.constant 1 : index
    %c0_14 = arith.constant 0 : index
    %c0_15 = arith.constant 0 : index
    %c0_16 = arith.constant 0 : index
    %13 = vector.load %arg10[%c1, %c1_13, %c0_14, %c0_15, %c0_16] : memref<2x2x9x9x64xf32, #tpu.memory_space<vmem>>, vector<1x1x8x8x64xf32>
    %14 = vector.shape_cast %13 : vector<1x1x8x8x64xf32> to vector<8x8x64xf32>
    %15 = vector.shape_cast %12 : vector<8x8x64xf32> to vector<1x1x8x8x64xf32>
    tpu.vector_store %arg10[%c1, %c1_13, %c0_14, %c0_15, %c0_16], %15 {strides = array<i32>} : memref<2x2x9x9x64xf32, #tpu.memory_space<vmem>>, vector<1x1x8x8x64xf32>,
    %16 = vector.extract_strided_slice %8 {offsets = [64, 0], sizes = [64, 64], strides = [1, 1]} : vector<256x64xf32> to vector<64x64xf32>
    %17 = vector.shape_cast %16 : vector<64x64xf32> to vector<8x8x64xf32>
    %c1_17 = arith.constant 1 : index
    %c0_18 = arith.constant 0 : index
    %c0_19 = arith.constant 0 : index
    %c1_20 = arith.constant 1 : index
    %c0_21 = arith.constant 0 : index
    %18 = vector.load %arg10[%c1_17, %c0_18, %c0_19, %c1_20, %c0_21] : memref<2x2x9x9x64xf32, #tpu.memory_space<vmem>>, vector<1x1x8x8x64xf32>
    %19 = vector.shape_cast %18 : vector<1x1x8x8x64xf32> to vector<8x8x64xf32>
    %20 = vector.shape_cast %17 : vector<8x8x64xf32> to vector<1x1x8x8x64xf32>
    tpu.vector_store %arg10[%c1_17, %c0_18, %c0_19, %c1_20, %c0_21], %20 {strides = array<i32>} : memref<2x2x9x9x64xf32, #tpu.memory_space<vmem>>, vector<1x1x8x8x64xf32>,
    %21 = vector.extract_strided_slice %8 {offsets = [128, 0], sizes = [64, 64], strides = [1, 1]} : vector<256x64xf32> to vector<64x64xf32>
    %22 = vector.shape_cast %21 : vector<64x64xf32> to vector<8x8x64xf32>
    %c0_22 = arith.constant 0 : index
    %c1_23 = arith.constant 1 : index
    %c1_24 = arith.constant 1 : index
    %c0_25 = arith.constant 0 : index
    %c0_26 = arith.constant 0 : index
    %23 = vector.load %arg10[%c0_22, %c1_23, %c1_24, %c0_25, %c0_26] : memref<2x2x9x9x64xf32, #tpu.memory_space<vmem>>, vector<1x1x8x8x64xf32>
    %24 = vector.shape_cast %23 : vector<1x1x8x8x64xf32> to vector<8x8x64xf32>
    %25 = vector.shape_cast %22 : vector<8x8x64xf32> to vector<1x1x8x8x64xf32>
    tpu.vector_store %arg10[%c0_22, %c1_23, %c1_24, %c0_25, %c0_26], %25 {strides = array<i32>} : memref<2x2x9x9x64xf32, #tpu.memory_space<vmem>>, vector<1x1x8x8x64xf32>,
    %26 = vector.extract_strided_slice %8 {offsets = [192, 0], sizes = [64, 64], strides = [1, 1]} : vector<256x64xf32> to vector<64x64xf32>
    %27 = vector.shape_cast %26 : vector<64x64xf32> to vector<8x8x64xf32>
    %c0_27 = arith.constant 0 : index
    %c0_28 = arith.constant 0 : index
    %c1_29 = arith.constant 1 : index
    %c1_30 = arith.constant 1 : index
    %c0_31 = arith.constant 0 : index
    %28 = vector.load %arg10[%c0_27, %c0_28, %c1_29, %c1_30, %c0_31] : memref<2x2x9x9x64xf32, #tpu.memory_space<vmem>>, vector<1x1x8x8x64xf32>
    %29 = vector.shape_cast %28 : vector<1x1x8x8x64xf32> to vector<8x8x64xf32>
    %30 = vector.shape_cast %27 : vector<8x8x64xf32> to vector<1x1x8x8x64xf32>
    tpu.vector_store %arg10[%c0_27, %c0_28, %c1_29, %c1_30, %c0_31], %30 {strides = array<i32>} : memref<2x2x9x9x64xf32, #tpu.memory_space<vmem>>, vector<1x1x8x8x64xf32>,
    %c0_32 = arith.constant 0 : index
    %c0_33 = arith.constant 0 : index
    %c0_34 = arith.constant 0 : index
    %c0_35 = arith.constant 0 : index
    %c0_36 = arith.constant 0 : index
    %31 = vector.load %arg10[%c0_32, %c0_33, %c0_34, %c0_35, %c0_36] : memref<2x2x9x9x64xf32, #tpu.memory_space<vmem>>, vector<1x1x8x8x64xf32>
    %32 = vector.shape_cast %31 : vector<1x1x8x8x64xf32> to vector<8x8x64xf32>
    %c0_37 = arith.constant 0 : index
    %c1_38 = arith.constant 1 : index
    %c0_39 = arith.constant 0 : index
    %c0_40 = arith.constant 0 : index
    %c0_41 = arith.constant 0 : index
    %33 = vector.load %arg10[%c0_37, %c1_38, %c0_39, %c0_40, %c0_41] : memref<2x2x9x9x64xf32, #tpu.memory_space<vmem>>, vector<1x1x8x8x64xf32>
    %34 = vector.shape_cast %33 : vector<1x1x8x8x64xf32> to vector<8x8x64xf32>
    %35 = arith.maximumf %32, %34 : vector<8x8x64xf32>
    %c0_42 = arith.constant 0 : index
    %c0_43 = arith.constant 0 : index
    %c0_44 = arith.constant 0 : index
    %c1_45 = arith.constant 1 : index
    %c0_46 = arith.constant 0 : index
    %36 = vector.load %arg10[%c0_42, %c0_43, %c0_44, %c1_45, %c0_46] : memref<2x2x9x9x64xf32, #tpu.memory_space<vmem>>, vector<1x1x8x8x64xf32>
    %37 = vector.shape_cast %36 : vector<1x1x8x8x64xf32> to vector<8x8x64xf32>
    %38 = arith.maximumf %35, %37 : vector<8x8x64xf32>
    %c1_47 = arith.constant 1 : index
    %c0_48 = arith.constant 0 : index
    %c0_49 = arith.constant 0 : index
    %c0_50 = arith.constant 0 : index
    %c0_51 = arith.constant 0 : index
    %39 = vector.load %arg10[%c1_47, %c0_48, %c0_49, %c0_50, %c0_51] : memref<2x2x9x9x64xf32, #tpu.memory_space<vmem>>, vector<1x1x8x8x64xf32>
    %40 = vector.shape_cast %39 : vector<1x1x8x8x64xf32> to vector<8x8x64xf32>
    %41 = arith.maximumf %38, %40 : vector<8x8x64xf32>
    %c1_52 = arith.constant 1 : index
    %c1_53 = arith.constant 1 : index
    %c0_54 = arith.constant 0 : index
    %c0_55 = arith.constant 0 : index
    %c0_56 = arith.constant 0 : index
    %42 = vector.load %arg10[%c1_52, %c1_53, %c0_54, %c0_55, %c0_56] : memref<2x2x9x9x64xf32, #tpu.memory_space<vmem>>, vector<1x1x8x8x64xf32>
    %43 = vector.shape_cast %42 : vector<1x1x8x8x64xf32> to vector<8x8x64xf32>
    %44 = arith.maximumf %41, %43 : vector<8x8x64xf32>
    %c1_57 = arith.constant 1 : index
    %c0_58 = arith.constant 0 : index
    %c0_59 = arith.constant 0 : index
    %c1_60 = arith.constant 1 : index
    %c0_61 = arith.constant 0 : index
    %45 = vector.load %arg10[%c1_57, %c0_58, %c0_59, %c1_60, %c0_61] : memref<2x2x9x9x64xf32, #tpu.memory_space<vmem>>, vector<1x1x8x8x64xf32>
    %46 = vector.shape_cast %45 : vector<1x1x8x8x64xf32> to vector<8x8x64xf32>
    %47 = arith.maximumf %44, %46 : vector<8x8x64xf32>
    %c0_62 = arith.constant 0 : index
    %c0_63 = arith.constant 0 : index
    %c1_64 = arith.constant 1 : index
    %c0_65 = arith.constant 0 : index
    %c0_66 = arith.constant 0 : index
    %48 = vector.load %arg10[%c0_62, %c0_63, %c1_64, %c0_65, %c0_66] : memref<2x2x9x9x64xf32, #tpu.memory_space<vmem>>, vector<1x1x8x8x64xf32>
    %49 = vector.shape_cast %48 : vector<1x1x8x8x64xf32> to vector<8x8x64xf32>
    %50 = arith.maximumf %47, %49 : vector<8x8x64xf32>
    %c0_67 = arith.constant 0 : index
    %c1_68 = arith.constant 1 : index
    %c1_69 = arith.constant 1 : index
    %c0_70 = arith.constant 0 : index
    %c0_71 = arith.constant 0 : index
    %51 = vector.load %arg10[%c0_67, %c1_68, %c1_69, %c0_70, %c0_71] : memref<2x2x9x9x64xf32, #tpu.memory_space<vmem>>, vector<1x1x8x8x64xf32>
    %52 = vector.shape_cast %51 : vector<1x1x8x8x64xf32> to vector<8x8x64xf32>
    %53 = arith.maximumf %50, %52 : vector<8x8x64xf32>
    %c0_72 = arith.constant 0 : index
    %c0_73 = arith.constant 0 : index
    %c1_74 = arith.constant 1 : index
    %c1_75 = arith.constant 1 : index
    %c0_76 = arith.constant 0 : index
    %54 = vector.load %arg10[%c0_72, %c0_73, %c1_74, %c1_75, %c0_76] : memref<2x2x9x9x64xf32, #tpu.memory_space<vmem>>, vector<1x1x8x8x64xf32>
    %55 = vector.shape_cast %54 : vector<1x1x8x8x64xf32> to vector<8x8x64xf32>
    %56 = arith.maximumf %53, %55 : vector<8x8x64xf32>
    %c0_77 = arith.constant 0 : index
    %c0_78 = arith.constant 0 : index
    %c0_79 = arith.constant 0 : index
    %c0_80 = arith.constant 0 : index
    %57 = vector.load %arg9[%c0_77, %c0_78, %c0_79, %c0_80] : memref<1x8x8x64xf32, #tpu.memory_space<vmem>>, vector<1x8x8x64xf32>
    %58 = vector.shape_cast %57 : vector<1x8x8x64xf32> to vector<8x8x64xf32>
    %59 = vector.shape_cast %56 : vector<8x8x64xf32> to vector<1x8x8x64xf32>
    tpu.vector_store %arg9[%c0_77, %c0_78, %c0_79, %c0_80], %59 {strides = array<i32>} : memref<1x8x8x64xf32, #tpu.memory_space<vmem>>, vector<1x8x8x64xf32>,
    %cst_81 = arith.constant 0.000000e+00 : f32
    %60 = vector.broadcast %cst_81 : f32 to vector<10x10x64xf32>
    %c0_82 = arith.constant 0 : index
    %c0_83 = arith.constant 0 : index
    %c0_84 = arith.constant 0 : index
    %61 = vector.load %arg11[%c0_82, %c0_83, %c0_84] : memref<10x10x64xf32, #tpu.memory_space<vmem>>, vector<10x10x64xf32>
    tpu.vector_store %arg11[%c0_82, %c0_83, %c0_84], %60 {strides = array<i32>} : memref<10x10x64xf32, #tpu.memory_space<vmem>>, vector<10x10x64xf32>,
    %c1_85 = arith.constant 1 : index
    %c1_86 = arith.constant 1 : index
    %c0_87 = arith.constant 0 : index
    %62 = vector.load %arg11[%c1_85, %c1_86, %c0_87] : memref<10x10x64xf32, #tpu.memory_space<vmem>>, vector<8x8x64xf32>
    tpu.vector_store %arg11[%c1_85, %c1_86, %c0_87], %56 {strides = array<i32>} : memref<10x10x64xf32, #tpu.memory_space<vmem>>, vector<8x8x64xf32>,
    %cst_88 = arith.constant 0.000000e+00 : f32
    %63 = vector.broadcast %cst_88 : f32 to vector<64x64xf32>
    %c0_89 = arith.constant 0 : index
    %c0_90 = arith.constant 0 : index
    %c0_91 = arith.constant 0 : index
    %64 = vector.load %arg11[%c0_89, %c0_90, %c0_91] : memref<10x10x64xf32, #tpu.memory_space<vmem>>, vector<8x8x64xf32>
    %65 = vector.shape_cast %64 : vector<8x8x64xf32> to vector<64x64xf32>
    %c0_92 = arith.constant 0 : index
    %c0_93 = arith.constant 0 : index
    %c0_94 = arith.constant 0 : index
    %c0_95 = arith.constant 0 : index
    %66 = vector.load %arg4[%c0_92, %c0_93, %c0_94, %c0_95] : memref<3x3x64x64xf32, #tpu.memory_space<vmem>>, vector<1x1x64x64xf32>
    %67 = vector.shape_cast %66 : vector<1x1x64x64xf32> to vector<64x64xf32>
    %cst_96 = arith.constant dense<0.000000e+00> : vector<64x64xf32>
    %68 = tpu.matmul %65, %67, %cst_96 {dimension_numbers = #tpu.dot_dimension_numbers<[1], [0], [0], [1], [0, 0, 1, 1], [], []>} : vector<64x64xf32>, vector<64x64xf32>, vector<64x64xf32> -> vector<64x64xf32>
    %69 = arith.addf %63, %68 : vector<64x64xf32>
    %c0_97 = arith.constant 0 : index
    %c1_98 = arith.constant 1 : index
    %c0_99 = arith.constant 0 : index
    %70 = vector.load %arg11[%c0_97, %c1_98, %c0_99] : memref<10x10x64xf32, #tpu.memory_space<vmem>>, vector<8x8x64xf32>
    %71 = vector.shape_cast %70 : vector<8x8x64xf32> to vector<64x64xf32>
    %c0_100 = arith.constant 0 : index
    %c1_101 = arith.constant 1 : index
    %c0_102 = arith.constant 0 : index
    %c0_103 = arith.constant 0 : index
    %72 = vector.load %arg4[%c0_100, %c1_101, %c0_102, %c0_103] : memref<3x3x64x64xf32, #tpu.memory_space<vmem>>, vector<1x1x64x64xf32>
    %73 = vector.shape_cast %72 : vector<1x1x64x64xf32> to vector<64x64xf32>
    %cst_104 = arith.constant dense<0.000000e+00> : vector<64x64xf32>
    %74 = tpu.matmul %71, %73, %cst_104 {dimension_numbers = #tpu.dot_dimension_numbers<[1], [0], [0], [1], [0, 0, 1, 1], [], []>} : vector<64x64xf32>, vector<64x64xf32>, vector<64x64xf32> -> vector<64x64xf32>
    %75 = arith.addf %69, %74 : vector<64x64xf32>
    %c0_105 = arith.constant 0 : index
    %c2 = arith.constant 2 : index
    %c0_106 = arith.constant 0 : index
    %76 = vector.load %arg11[%c0_105, %c2, %c0_106] : memref<10x10x64xf32, #tpu.memory_space<vmem>>, vector<8x8x64xf32>
    %77 = vector.shape_cast %76 : vector<8x8x64xf32> to vector<64x64xf32>
    %c0_107 = arith.constant 0 : index
    %c2_108 = arith.constant 2 : index
    %c0_109 = arith.constant 0 : index
    %c0_110 = arith.constant 0 : index
    %78 = vector.load %arg4[%c0_107, %c2_108, %c0_109, %c0_110] : memref<3x3x64x64xf32, #tpu.memory_space<vmem>>, vector<1x1x64x64xf32>
    %79 = vector.shape_cast %78 : vector<1x1x64x64xf32> to vector<64x64xf32>
    %cst_111 = arith.constant dense<0.000000e+00> : vector<64x64xf32>
    %80 = tpu.matmul %77, %79, %cst_111 {dimension_numbers = #tpu.dot_dimension_numbers<[1], [0], [0], [1], [0, 0, 1, 1], [], []>} : vector<64x64xf32>, vector<64x64xf32>, vector<64x64xf32> -> vector<64x64xf32>
    %81 = arith.addf %75, %80 : vector<64x64xf32>
    %c1_112 = arith.constant 1 : index
    %c0_113 = arith.constant 0 : index
    %c0_114 = arith.constant 0 : index
    %82 = vector.load %arg11[%c1_112, %c0_113, %c0_114] : memref<10x10x64xf32, #tpu.memory_space<vmem>>, vector<8x8x64xf32>
    %83 = vector.shape_cast %82 : vector<8x8x64xf32> to vector<64x64xf32>
    %c1_115 = arith.constant 1 : index
    %c0_116 = arith.constant 0 : index
    %c0_117 = arith.constant 0 : index
    %c0_118 = arith.constant 0 : index
    %84 = vector.load %arg4[%c1_115, %c0_116, %c0_117, %c0_118] : memref<3x3x64x64xf32, #tpu.memory_space<vmem>>, vector<1x1x64x64xf32>
    %85 = vector.shape_cast %84 : vector<1x1x64x64xf32> to vector<64x64xf32>
    %cst_119 = arith.constant dense<0.000000e+00> : vector<64x64xf32>
    %86 = tpu.matmul %83, %85, %cst_119 {dimension_numbers = #tpu.dot_dimension_numbers<[1], [0], [0], [1], [0, 0, 1, 1], [], []>} : vector<64x64xf32>, vector<64x64xf32>, vector<64x64xf32> -> vector<64x64xf32>
    %87 = arith.addf %81, %86 : vector<64x64xf32>
    %c1_120 = arith.constant 1 : index
    %c1_121 = arith.constant 1 : index
    %c0_122 = arith.constant 0 : index
    %88 = vector.load %arg11[%c1_120, %c1_121, %c0_122] : memref<10x10x64xf32, #tpu.memory_space<vmem>>, vector<8x8x64xf32>
    %89 = vector.shape_cast %88 : vector<8x8x64xf32> to vector<64x64xf32>
    %c1_123 = arith.constant 1 : index
    %c1_124 = arith.constant 1 : index
    %c0_125 = arith.constant 0 : index
    %c0_126 = arith.constant 0 : index
    %90 = vector.load %arg4[%c1_123, %c1_124, %c0_125, %c0_126] : memref<3x3x64x64xf32, #tpu.memory_space<vmem>>, vector<1x1x64x64xf32>
    %91 = vector.shape_cast %90 : vector<1x1x64x64xf32> to vector<64x64xf32>
    %cst_127 = arith.constant dense<0.000000e+00> : vector<64x64xf32>
    %92 = tpu.matmul %89, %91, %cst_127 {dimension_numbers = #tpu.dot_dimension_numbers<[1], [0], [0], [1], [0, 0, 1, 1], [], []>} : vector<64x64xf32>, vector<64x64xf32>, vector<64x64xf32> -> vector<64x64xf32>
    %93 = arith.addf %87, %92 : vector<64x64xf32>
    %c1_128 = arith.constant 1 : index
    %c2_129 = arith.constant 2 : index
    %c0_130 = arith.constant 0 : index
    %94 = vector.load %arg11[%c1_128, %c2_129, %c0_130] : memref<10x10x64xf32, #tpu.memory_space<vmem>>, vector<8x8x64xf32>
    %95 = vector.shape_cast %94 : vector<8x8x64xf32> to vector<64x64xf32>
    %c1_131 = arith.constant 1 : index
    %c2_132 = arith.constant 2 : index
    %c0_133 = arith.constant 0 : index
    %c0_134 = arith.constant 0 : index
    %96 = vector.load %arg4[%c1_131, %c2_132, %c0_133, %c0_134] : memref<3x3x64x64xf32, #tpu.memory_space<vmem>>, vector<1x1x64x64xf32>
    %97 = vector.shape_cast %96 : vector<1x1x64x64xf32> to vector<64x64xf32>
    %cst_135 = arith.constant dense<0.000000e+00> : vector<64x64xf32>
    %98 = tpu.matmul %95, %97, %cst_135 {dimension_numbers = #tpu.dot_dimension_numbers<[1], [0], [0], [1], [0, 0, 1, 1], [], []>} : vector<64x64xf32>, vector<64x64xf32>, vector<64x64xf32> -> vector<64x64xf32>
    %99 = arith.addf %93, %98 : vector<64x64xf32>
    %c2_136 = arith.constant 2 : index
    %c0_137 = arith.constant 0 : index
    %c0_138 = arith.constant 0 : index
    %100 = vector.load %arg11[%c2_136, %c0_137, %c0_138] : memref<10x10x64xf32, #tpu.memory_space<vmem>>, vector<8x8x64xf32>
    %101 = vector.shape_cast %100 : vector<8x8x64xf32> to vector<64x64xf32>
    %c2_139 = arith.constant 2 : index
    %c0_140 = arith.constant 0 : index
    %c0_141 = arith.constant 0 : index
    %c0_142 = arith.constant 0 : index
    %102 = vector.load %arg4[%c2_139, %c0_140, %c0_141, %c0_142] : memref<3x3x64x64xf32, #tpu.memory_space<vmem>>, vector<1x1x64x64xf32>
    %103 = vector.shape_cast %102 : vector<1x1x64x64xf32> to vector<64x64xf32>
    %cst_143 = arith.constant dense<0.000000e+00> : vector<64x64xf32>
    %104 = tpu.matmul %101, %103, %cst_143 {dimension_numbers = #tpu.dot_dimension_numbers<[1], [0], [0], [1], [0, 0, 1, 1], [], []>} : vector<64x64xf32>, vector<64x64xf32>, vector<64x64xf32> -> vector<64x64xf32>
    %105 = arith.addf %99, %104 : vector<64x64xf32>
    %c2_144 = arith.constant 2 : index
    %c1_145 = arith.constant 1 : index
    %c0_146 = arith.constant 0 : index
    %106 = vector.load %arg11[%c2_144, %c1_145, %c0_146] : memref<10x10x64xf32, #tpu.memory_space<vmem>>, vector<8x8x64xf32>
    %107 = vector.shape_cast %106 : vector<8x8x64xf32> to vector<64x64xf32>
    %c2_147 = arith.constant 2 : index
    %c1_148 = arith.constant 1 : index
    %c0_149 = arith.constant 0 : index
    %c0_150 = arith.constant 0 : index
    %108 = vector.load %arg4[%c2_147, %c1_148, %c0_149, %c0_150] : memref<3x3x64x64xf32, #tpu.memory_space<vmem>>, vector<1x1x64x64xf32>
    %109 = vector.shape_cast %108 : vector<1x1x64x64xf32> to vector<64x64xf32>
    %cst_151 = arith.constant dense<0.000000e+00> : vector<64x64xf32>
    %110 = tpu.matmul %107, %109, %cst_151 {dimension_numbers = #tpu.dot_dimension_numbers<[1], [0], [0], [1], [0, 0, 1, 1], [], []>} : vector<64x64xf32>, vector<64x64xf32>, vector<64x64xf32> -> vector<64x64xf32>
    %111 = arith.addf %105, %110 : vector<64x64xf32>
    %c2_152 = arith.constant 2 : index
    %c2_153 = arith.constant 2 : index
    %c0_154 = arith.constant 0 : index
    %112 = vector.load %arg11[%c2_152, %c2_153, %c0_154] : memref<10x10x64xf32, #tpu.memory_space<vmem>>, vector<8x8x64xf32>
    %113 = vector.shape_cast %112 : vector<8x8x64xf32> to vector<64x64xf32>
    %c2_155 = arith.constant 2 : index
    %c2_156 = arith.constant 2 : index
    %c0_157 = arith.constant 0 : index
    %c0_158 = arith.constant 0 : index
    %114 = vector.load %arg4[%c2_155, %c2_156, %c0_157, %c0_158] : memref<3x3x64x64xf32, #tpu.memory_space<vmem>>, vector<1x1x64x64xf32>
    %115 = vector.shape_cast %114 : vector<1x1x64x64xf32> to vector<64x64xf32>
    %cst_159 = arith.constant dense<0.000000e+00> : vector<64x64xf32>
    %116 = tpu.matmul %113, %115, %cst_159 {dimension_numbers = #tpu.dot_dimension_numbers<[1], [0], [0], [1], [0, 0, 1, 1], [], []>} : vector<64x64xf32>, vector<64x64xf32>, vector<64x64xf32> -> vector<64x64xf32>
    %117 = arith.addf %111, %116 : vector<64x64xf32>
    %c0_160 = arith.constant 0 : index
    %c0_161 = arith.constant 0 : index
    %118 = vector.load %arg5[%c0_160, %c0_161] : memref<1x64xf32, #tpu.memory_space<vmem>>, vector<1x64xf32>
    %119 = vector.broadcast %118 : vector<1x64xf32> to vector<64x64xf32>
    %120 = arith.addf %117, %119 : vector<64x64xf32>
    %cst_162 = arith.constant 0.000000e+00 : f32
    %121 = vector.broadcast %cst_162 : f32 to vector<64x64xf32>
    %122 = arith.maximumf %120, %121 : vector<64x64xf32>
    %123 = vector.shape_cast %122 : vector<64x64xf32> to vector<8x8x64xf32>
    %c1_163 = arith.constant 1 : index
    %c1_164 = arith.constant 1 : index
    %c0_165 = arith.constant 0 : index
    %124 = vector.load %arg11[%c1_163, %c1_164, %c0_165] : memref<10x10x64xf32, #tpu.memory_space<vmem>>, vector<8x8x64xf32>
    tpu.vector_store %arg11[%c1_163, %c1_164, %c0_165], %123 {strides = array<i32>} : memref<10x10x64xf32, #tpu.memory_space<vmem>>, vector<8x8x64xf32>,
    %cst_166 = arith.constant 0.000000e+00 : f32
    %125 = vector.broadcast %cst_166 : f32 to vector<64x64xf32>
    %c0_167 = arith.constant 0 : index
    %c0_168 = arith.constant 0 : index
    %c0_169 = arith.constant 0 : index
    %126 = vector.load %arg11[%c0_167, %c0_168, %c0_169] : memref<10x10x64xf32, #tpu.memory_space<vmem>>, vector<8x8x64xf32>
    %127 = vector.shape_cast %126 : vector<8x8x64xf32> to vector<64x64xf32>
    %c0_170 = arith.constant 0 : index
    %c0_171 = arith.constant 0 : index
    %c0_172 = arith.constant 0 : index
    %c0_173 = arith.constant 0 : index
    %128 = vector.load %arg6[%c0_170, %c0_171, %c0_172, %c0_173] : memref<3x3x64x64xf32, #tpu.memory_space<vmem>>, vector<1x1x64x64xf32>
    %129 = vector.shape_cast %128 : vector<1x1x64x64xf32> to vector<64x64xf32>
    %cst_174 = arith.constant dense<0.000000e+00> : vector<64x64xf32>
    %130 = tpu.matmul %127, %129, %cst_174 {dimension_numbers = #tpu.dot_dimension_numbers<[1], [0], [0], [1], [0, 0, 1, 1], [], []>} : vector<64x64xf32>, vector<64x64xf32>, vector<64x64xf32> -> vector<64x64xf32>
    %131 = arith.addf %125, %130 : vector<64x64xf32>
    %c0_175 = arith.constant 0 : index
    %c1_176 = arith.constant 1 : index
    %c0_177 = arith.constant 0 : index
    %132 = vector.load %arg11[%c0_175, %c1_176, %c0_177] : memref<10x10x64xf32, #tpu.memory_space<vmem>>, vector<8x8x64xf32>
    %133 = vector.shape_cast %132 : vector<8x8x64xf32> to vector<64x64xf32>
    %c0_178 = arith.constant 0 : index
    %c1_179 = arith.constant 1 : index
    %c0_180 = arith.constant 0 : index
    %c0_181 = arith.constant 0 : index
    %134 = vector.load %arg6[%c0_178, %c1_179, %c0_180, %c0_181] : memref<3x3x64x64xf32, #tpu.memory_space<vmem>>, vector<1x1x64x64xf32>
    %135 = vector.shape_cast %134 : vector<1x1x64x64xf32> to vector<64x64xf32>
    %cst_182 = arith.constant dense<0.000000e+00> : vector<64x64xf32>
    %136 = tpu.matmul %133, %135, %cst_182 {dimension_numbers = #tpu.dot_dimension_numbers<[1], [0], [0], [1], [0, 0, 1, 1], [], []>} : vector<64x64xf32>, vector<64x64xf32>, vector<64x64xf32> -> vector<64x64xf32>
    %137 = arith.addf %131, %136 : vector<64x64xf32>
    %c0_183 = arith.constant 0 : index
    %c2_184 = arith.constant 2 : index
    %c0_185 = arith.constant 0 : index
    %138 = vector.load %arg11[%c0_183, %c2_184, %c0_185] : memref<10x10x64xf32, #tpu.memory_space<vmem>>, vector<8x8x64xf32>
    %139 = vector.shape_cast %138 : vector<8x8x64xf32> to vector<64x64xf32>
    %c0_186 = arith.constant 0 : index
    %c2_187 = arith.constant 2 : index
    %c0_188 = arith.constant 0 : index
    %c0_189 = arith.constant 0 : index
    %140 = vector.load %arg6[%c0_186, %c2_187, %c0_188, %c0_189] : memref<3x3x64x64xf32, #tpu.memory_space<vmem>>, vector<1x1x64x64xf32>
    %141 = vector.shape_cast %140 : vector<1x1x64x64xf32> to vector<64x64xf32>
    %cst_190 = arith.constant dense<0.000000e+00> : vector<64x64xf32>
    %142 = tpu.matmul %139, %141, %cst_190 {dimension_numbers = #tpu.dot_dimension_numbers<[1], [0], [0], [1], [0, 0, 1, 1], [], []>} : vector<64x64xf32>, vector<64x64xf32>, vector<64x64xf32> -> vector<64x64xf32>
    %143 = arith.addf %137, %142 : vector<64x64xf32>
    %c1_191 = arith.constant 1 : index
    %c0_192 = arith.constant 0 : index
    %c0_193 = arith.constant 0 : index
    %144 = vector.load %arg11[%c1_191, %c0_192, %c0_193] : memref<10x10x64xf32, #tpu.memory_space<vmem>>, vector<8x8x64xf32>
    %145 = vector.shape_cast %144 : vector<8x8x64xf32> to vector<64x64xf32>
    %c1_194 = arith.constant 1 : index
    %c0_195 = arith.constant 0 : index
    %c0_196 = arith.constant 0 : index
    %c0_197 = arith.constant 0 : index
    %146 = vector.load %arg6[%c1_194, %c0_195, %c0_196, %c0_197] : memref<3x3x64x64xf32, #tpu.memory_space<vmem>>, vector<1x1x64x64xf32>
    %147 = vector.shape_cast %146 : vector<1x1x64x64xf32> to vector<64x64xf32>
    %cst_198 = arith.constant dense<0.000000e+00> : vector<64x64xf32>
    %148 = tpu.matmul %145, %147, %cst_198 {dimension_numbers = #tpu.dot_dimension_numbers<[1], [0], [0], [1], [0, 0, 1, 1], [], []>} : vector<64x64xf32>, vector<64x64xf32>, vector<64x64xf32> -> vector<64x64xf32>
    %149 = arith.addf %143, %148 : vector<64x64xf32>
    %c1_199 = arith.constant 1 : index
    %c1_200 = arith.constant 1 : index
    %c0_201 = arith.constant 0 : index
    %150 = vector.load %arg11[%c1_199, %c1_200, %c0_201] : memref<10x10x64xf32, #tpu.memory_space<vmem>>, vector<8x8x64xf32>
    %151 = vector.shape_cast %150 : vector<8x8x64xf32> to vector<64x64xf32>
    %c1_202 = arith.constant 1 : index
    %c1_203 = arith.constant 1 : index
    %c0_204 = arith.constant 0 : index
    %c0_205 = arith.constant 0 : index
    %152 = vector.load %arg6[%c1_202, %c1_203, %c0_204, %c0_205] : memref<3x3x64x64xf32, #tpu.memory_space<vmem>>, vector<1x1x64x64xf32>
    %153 = vector.shape_cast %152 : vector<1x1x64x64xf32> to vector<64x64xf32>
    %cst_206 = arith.constant dense<0.000000e+00> : vector<64x64xf32>
    %154 = tpu.matmul %151, %153, %cst_206 {dimension_numbers = #tpu.dot_dimension_numbers<[1], [0], [0], [1], [0, 0, 1, 1], [], []>} : vector<64x64xf32>, vector<64x64xf32>, vector<64x64xf32> -> vector<64x64xf32>
    %155 = arith.addf %149, %154 : vector<64x64xf32>
    %c1_207 = arith.constant 1 : index
    %c2_208 = arith.constant 2 : index
    %c0_209 = arith.constant 0 : index
    %156 = vector.load %arg11[%c1_207, %c2_208, %c0_209] : memref<10x10x64xf32, #tpu.memory_space<vmem>>, vector<8x8x64xf32>
    %157 = vector.shape_cast %156 : vector<8x8x64xf32> to vector<64x64xf32>
    %c1_210 = arith.constant 1 : index
    %c2_211 = arith.constant 2 : index
    %c0_212 = arith.constant 0 : index
    %c0_213 = arith.constant 0 : index
    %158 = vector.load %arg6[%c1_210, %c2_211, %c0_212, %c0_213] : memref<3x3x64x64xf32, #tpu.memory_space<vmem>>, vector<1x1x64x64xf32>
    %159 = vector.shape_cast %158 : vector<1x1x64x64xf32> to vector<64x64xf32>
    %cst_214 = arith.constant dense<0.000000e+00> : vector<64x64xf32>
    %160 = tpu.matmul %157, %159, %cst_214 {dimension_numbers = #tpu.dot_dimension_numbers<[1], [0], [0], [1], [0, 0, 1, 1], [], []>} : vector<64x64xf32>, vector<64x64xf32>, vector<64x64xf32> -> vector<64x64xf32>
    %161 = arith.addf %155, %160 : vector<64x64xf32>
    %c2_215 = arith.constant 2 : index
    %c0_216 = arith.constant 0 : index
    %c0_217 = arith.constant 0 : index
    %162 = vector.load %arg11[%c2_215, %c0_216, %c0_217] : memref<10x10x64xf32, #tpu.memory_space<vmem>>, vector<8x8x64xf32>
    %163 = vector.shape_cast %162 : vector<8x8x64xf32> to vector<64x64xf32>
    %c2_218 = arith.constant 2 : index
    %c0_219 = arith.constant 0 : index
    %c0_220 = arith.constant 0 : index
    %c0_221 = arith.constant 0 : index
    %164 = vector.load %arg6[%c2_218, %c0_219, %c0_220, %c0_221] : memref<3x3x64x64xf32, #tpu.memory_space<vmem>>, vector<1x1x64x64xf32>
    %165 = vector.shape_cast %164 : vector<1x1x64x64xf32> to vector<64x64xf32>
    %cst_222 = arith.constant dense<0.000000e+00> : vector<64x64xf32>
    %166 = tpu.matmul %163, %165, %cst_222 {dimension_numbers = #tpu.dot_dimension_numbers<[1], [0], [0], [1], [0, 0, 1, 1], [], []>} : vector<64x64xf32>, vector<64x64xf32>, vector<64x64xf32> -> vector<64x64xf32>
    %167 = arith.addf %161, %166 : vector<64x64xf32>
    %c2_223 = arith.constant 2 : index
    %c1_224 = arith.constant 1 : index
    %c0_225 = arith.constant 0 : index
    %168 = vector.load %arg11[%c2_223, %c1_224, %c0_225] : memref<10x10x64xf32, #tpu.memory_space<vmem>>, vector<8x8x64xf32>
    %169 = vector.shape_cast %168 : vector<8x8x64xf32> to vector<64x64xf32>
    %c2_226 = arith.constant 2 : index
    %c1_227 = arith.constant 1 : index
    %c0_228 = arith.constant 0 : index
    %c0_229 = arith.constant 0 : index
    %170 = vector.load %arg6[%c2_226, %c1_227, %c0_228, %c0_229] : memref<3x3x64x64xf32, #tpu.memory_space<vmem>>, vector<1x1x64x64xf32>
    %171 = vector.shape_cast %170 : vector<1x1x64x64xf32> to vector<64x64xf32>
    %cst_230 = arith.constant dense<0.000000e+00> : vector<64x64xf32>
    %172 = tpu.matmul %169, %171, %cst_230 {dimension_numbers = #tpu.dot_dimension_numbers<[1], [0], [0], [1], [0, 0, 1, 1], [], []>} : vector<64x64xf32>, vector<64x64xf32>, vector<64x64xf32> -> vector<64x64xf32>
    %173 = arith.addf %167, %172 : vector<64x64xf32>
    %c2_231 = arith.constant 2 : index
    %c2_232 = arith.constant 2 : index
    %c0_233 = arith.constant 0 : index
    %174 = vector.load %arg11[%c2_231, %c2_232, %c0_233] : memref<10x10x64xf32, #tpu.memory_space<vmem>>, vector<8x8x64xf32>
    %175 = vector.shape_cast %174 : vector<8x8x64xf32> to vector<64x64xf32>
    %c2_234 = arith.constant 2 : index
    %c2_235 = arith.constant 2 : index
    %c0_236 = arith.constant 0 : index
    %c0_237 = arith.constant 0 : index
    %176 = vector.load %arg6[%c2_234, %c2_235, %c0_236, %c0_237] : memref<3x3x64x64xf32, #tpu.memory_space<vmem>>, vector<1x1x64x64xf32>
    %177 = vector.shape_cast %176 : vector<1x1x64x64xf32> to vector<64x64xf32>
    %cst_238 = arith.constant dense<0.000000e+00> : vector<64x64xf32>
    %178 = tpu.matmul %175, %177, %cst_238 {dimension_numbers = #tpu.dot_dimension_numbers<[1], [0], [0], [1], [0, 0, 1, 1], [], []>} : vector<64x64xf32>, vector<64x64xf32>, vector<64x64xf32> -> vector<64x64xf32>
    %179 = arith.addf %173, %178 : vector<64x64xf32>
    %c0_239 = arith.constant 0 : index
    %c0_240 = arith.constant 0 : index
    %180 = vector.load %arg7[%c0_239, %c0_240] : memref<1x64xf32, #tpu.memory_space<vmem>>, vector<1x64xf32>
    %181 = vector.broadcast %180 : vector<1x64xf32> to vector<64x64xf32>
    %182 = arith.addf %179, %181 : vector<64x64xf32>
    %183 = vector.shape_cast %182 : vector<64x64xf32> to vector<8x8x64xf32>
    %c0_241 = arith.constant 0 : index
    %c0_242 = arith.constant 0 : index
    %c0_243 = arith.constant 0 : index
    %c0_244 = arith.constant 0 : index
    %184 = vector.load %arg8[%c0_241, %c0_242, %c0_243, %c0_244] : memref<1x8x8x64xf32, #tpu.memory_space<vmem>>, vector<1x8x8x64xf32>
    %185 = vector.shape_cast %184 : vector<1x8x8x64xf32> to vector<8x8x64xf32>
    %186 = vector.shape_cast %183 : vector<8x8x64xf32> to vector<1x8x8x64xf32>
    tpu.vector_store %arg8[%c0_241, %c0_242, %c0_243, %c0_244], %186 {strides = array<i32>} : memref<1x8x8x64xf32, #tpu.memory_space<vmem>>, vector<1x8x8x64xf32>,
    return
  }
  func.func @transform_0(%arg0: i32) -> (i32, i32, i32) {
    %c0_i32 = arith.constant 0 : i32
    %c0_i32_0 = arith.constant 0 : i32
    %c0_i32_1 = arith.constant 0 : i32
    return %arg0, %c0_i32, %c0_i32_0 : i32, i32, i32
  }
  func.func @transform_1(%arg0: i32) -> (i32, i32) {
    %c0_i32 = arith.constant 0 : i32
    %c0_i32_0 = arith.constant 0 : i32
    %c0_i32_1 = arith.constant 0 : i32
    return %c0_i32, %c0_i32_0 : i32, i32
  }
  func.func @transform_2(%arg0: i32) -> (i32, i32) {
    %c0_i32 = arith.constant 0 : i32
    %c0_i32_0 = arith.constant 0 : i32
    %c0_i32_1 = arith.constant 0 : i32
    return %c0_i32, %c0_i32_0 : i32, i32
  }
  func.func @transform_3(%arg0: i32) -> (i32, i32, i32, i32) {
    %c0_i32 = arith.constant 0 : i32
    %c0_i32_0 = arith.constant 0 : i32
    %c0_i32_1 = arith.constant 0 : i32
    %c0_i32_2 = arith.constant 0 : i32
    %c0_i32_3 = arith.constant 0 : i32
    return %c0_i32, %c0_i32_0, %c0_i32_1, %c0_i32_2 : i32, i32, i32, i32
  }
  func.func @transform_4(%arg0: i32) -> (i32, i32) {
    %c0_i32 = arith.constant 0 : i32
    %c0_i32_0 = arith.constant 0 : i32
    %c0_i32_1 = arith.constant 0 : i32
    return %c0_i32, %c0_i32_0 : i32, i32
  }
  func.func @transform_5(%arg0: i32) -> (i32, i32, i32, i32) {
    %c0_i32 = arith.constant 0 : i32
    %c0_i32_0 = arith.constant 0 : i32
    %c0_i32_1 = arith.constant 0 : i32
    %c0_i32_2 = arith.constant 0 : i32
    %c0_i32_3 = arith.constant 0 : i32
    return %c0_i32, %c0_i32_0, %c0_i32_1, %c0_i32_2 : i32, i32, i32, i32
  }
  func.func @transform_6(%arg0: i32) -> (i32, i32) {
    %c0_i32 = arith.constant 0 : i32
    %c0_i32_0 = arith.constant 0 : i32
    %c0_i32_1 = arith.constant 0 : i32
    return %c0_i32, %c0_i32_0 : i32, i32
  }
  func.func @transform_7(%arg0: i32) -> (i32, i32, i32, i32) {
    %c0_i32 = arith.constant 0 : i32
    %c0_i32_0 = arith.constant 0 : i32
    %c0_i32_1 = arith.constant 0 : i32
    %c0_i32_2 = arith.constant 0 : i32
    return %arg0, %c0_i32, %c0_i32_0, %c0_i32_1 : i32, i32, i32, i32
  }
  func.func @transform_8(%arg0: i32) -> (i32, i32, i32, i32) {
    %c0_i32 = arith.constant 0 : i32
    %c0_i32_0 = arith.constant 0 : i32
    %c0_i32_1 = arith.constant 0 : i32
    %c0_i32_2 = arith.constant 0 : i32
    return %arg0, %c0_i32, %c0_i32_0, %c0_i32_1 : i32, i32, i32, i32
  }
}

</mosaic_0001>

<llo_original>
// kernel: stage0_forward.1
$region0: #{stage0_forward.1}
  #allocation0 [shape = 'u32[]', space=smem, size = 0x4, offset = 0x4, fixed_abs, tag = 'smem constant byte address 0x4 - core index']
  #allocation1 [shape = 'u32[72,128]{1,0:T(1,128)}', space=vmem, size = 0x9000, scoped, tag = 'internal scratch']
  #allocation2 [shape = 'f32[2,2,9,9,64]{4,3,2,1,0:T(8,128)}', space=vmem, size = 0x48000, scoped, tag = 'scratch operand']
  #allocation3 [shape = 'f32[10,10,64]{2,1,0:T(8,128)}', space=vmem, size = 0x14000, scoped, tag = 'scratch operand']
  %s0 = inlined_call_operand.vmem [shape: f32[2,256,147], index: 0, kind: input, shape index: {}]
  %s1 = inlined_call_operand.vmem [shape: f32[147,64], index: 1, kind: input, shape index: {}]
  %s2 = inlined_call_operand.vmem [shape: f32[1,64], index: 2, kind: input, shape index: {}]
  %s3 = inlined_call_operand.vmem [shape: f32[3,3,64,64], index: 3, kind: input, shape index: {}]
  %s4 = inlined_call_operand.vmem [shape: f32[1,64], index: 4, kind: input, shape index: {}]
  %s5 = inlined_call_operand.vmem [shape: f32[3,3,64,64], index: 5, kind: input, shape index: {}]
  %s6 = inlined_call_operand.vmem [shape: f32[1,64], index: 6, kind: input, shape index: {}]
  %s7 = inlined_call_operand.hbm [shape: f32[2,8,8,64], index: 7, kind: output, shape index: {0}]
  %s8 = inlined_call_operand.hbm [shape: f32[2,8,8,64], index: 8, kind: output, shape index: {1}]
  %9 = xla_tuple %s7, %s8
  %s10 = sld [smem:[#allocation0]]
  $region69: #{stage0_forward.1} parent=0
    _
  %s12 = ssub.s32 1, %s10
  %s13 = scalar_select 0, %s12, %s10
  $region1: #{stage0_forward.1} parent=0
    #allocation4 [shape = 'u8[65536]{0}', space=vmem, size = 0x10000, scoped, tag = 'output window, operand 0']
    #allocation5 [shape = 's32[2]{0}', space=sflag, size = 0x8, scoped, tag = 'scoped memory for stage0_forward.1']
    #allocation6 [shape = 'u8[65536]{0}', space=vmem, size = 0x10000, scoped, tag = 'output window, operand 1']
    #allocation7 [shape = 's32[2]{0}', space=sflag, size = 0x8, scoped, tag = 'scoped memory for stage0_forward.1']
    %14 = vsyncpa [#allocation5], 0
    %s15 = scalar_lea.sflag [#allocation5], 1
    %16 = vsyncpa %s15, 0
    %17 = vsyncpa [#allocation7], 0
    %s18 = scalar_lea.sflag [#allocation7], 1
    %19 = vsyncpa %s18, 0
    loop: start=0, step=1, limit=4
    $region2: #{stage0_forward.1} parent=1 // loop_pre_header
      _
    $region3: #{stage0_forward.1} parent=1 // loop_header
      %s21 = sphi 0, %s25
      %p22 = scmp.ge.s32.totalorder %s21, 4
      %s31 = sphi 0, %s33
      %s34 = sphi 0, %s31
      %s35 = sphi 0, %s34
      %s51 = sphi 0, %s35
      %s55 = sphi 0, %s55
      %s57 = sphi 0, %s55
      %s58 = sphi 0, %s57
      %s72 = sphi 0, %s58
      %s76 = sphi 0, %s76
      %s78 = sphi 0, %s76
      %s79 = sphi 0, %s78
      %s93 = sphi 0, %s79
      %s97 = sphi 0, %s97
      %s99 = sphi 0, %s97
      %s100 = sphi 0, %s99
      %s114 = sphi 0, %s100
      %s118 = sphi 0, %s118
      %s120 = sphi 0, %s118
      %s121 = sphi 0, %s120
      %s135 = sphi 0, %s121
      %s139 = sphi 0, %s139
      %s141 = sphi 0, %s139
      %s142 = sphi 0, %s141
      %s156 = sphi 0, %s142
      %s160 = sphi 0, %s160
      %s162 = sphi 0, %s160
      %s163 = sphi 0, %s162
      %s177 = sphi 0, %s163
      %s183 = sphi 0, %s185
      %s186 = sphi 0, %s183
      %s187 = sphi 0, %s186
      %s203 = sphi 0, %s187
      %s209 = sphi 0, %s211
      %s212 = sphi 0, %s209
      %s213 = sphi 0, %s212
      %s229 = sphi 0, %s213
    $region4: #{stage0_forward.1} parent=1 // loop_header_branch
      %24 = sbr.rel (%p22) target = $region8
    $region5: #{stage0_forward.1} parent=1 // loop_body
      %s26 = ssub.s32 %s21, 1
      %s27 = ssub.s32 %s21, 2
      %s28 = sadd.s32 %s21, 1
      %s29 = ssub.s32 %s21, %s28
      %p30 = scmp.eq.s32.totalorder %s29, 0
      %s32 = sadd.s32 %s31, 1
      %s33 = scalar_select %p30, %s31, %s32
      %p36 = pneg %p30
      %p37 = scmp.eq.s32.totalorder %s21, 1
      %p38 = por %p36, %p37
      %p39 = scmp.ne.s32.totalorder %s31, %s34
      %p40 = scmp.eq.s32.totalorder %s21, 0
      %p41 = por %p39, %p40
      %p42 = scmp.ne.s32.totalorder %s31, %s34
      %p43 = scmp.eq.s32.totalorder %s26, 1
      %p44 = por %p42, %p43
      %p45 = scmp.ne.s32.totalorder %s34, %s35
      %p46 = scmp.eq.s32.totalorder %s26, 0
      %p47 = por %p45, %p46
      %p48 = scmp.ne.s32.totalorder %s34, %s35
      %p49 = scmp.eq.s32.totalorder %s27, 1
      %p50 = por %p48, %p49
      %p52 = scmp.ne.s32.totalorder %s35, %s51
      %p53 = scmp.eq.s32.totalorder %s27, 0
      %p54 = por %p52, %p53
      %s56 = sadd.s32 %s55, 1
      %p59 = scmp.eq.s32.totalorder %s21, 1
      %p60 = scmp.ne.s32.totalorder %s55, %s57
      %p61 = scmp.eq.s32.totalorder %s21, 0
      %p62 = por %p60, %p61
      %p63 = scmp.ne.s32.totalorder %s55, %s57
      %p64 = scmp.eq.s32.totalorder %s26, 1
      %p65 = por %p63, %p64
      %p66 = scmp.ne.s32.totalorder %s57, %s58
      %p67 = scmp.eq.s32.totalorder %s26, 0
      %p68 = por %p66, %p67
      %p69 = scmp.ne.s32.totalorder %s57, %s58
      %p70 = scmp.eq.s32.totalorder %s27, 1
      %p71 = por %p69, %p70
      %p73 = scmp.ne.s32.totalorder %s58, %s72
      %p74 = scmp.eq.s32.totalorder %s27, 0
      %p75 = por %p73, %p74
      %s77 = sadd.s32 %s76, 1
      %p80 = scmp.eq.s32.totalorder %s21, 1
      %p81 = scmp.ne.s32.totalorder %s76, %s78
      %p82 = scmp.eq.s32.totalorder %s21, 0
      %p83 = por %p81, %p82
      %p84 = scmp.ne.s32.totalorder %s76, %s78
      %p85 = scmp.eq.s32.totalorder %s26, 1
      %p86 = por %p84, %p85
      %p87 = scmp.ne.s32.totalorder %s78, %s79
      %p88 = scmp.eq.s32.totalorder %s26, 0
      %p89 = por %p87, %p88
      %p90 = scmp.ne.s32.totalorder %s78, %s79
      %p91 = scmp.eq.s32.totalorder %s27, 1
      %p92 = por %p90, %p91
      %p94 = scmp.ne.s32.totalorder %s79, %s93
      %p95 = scmp.eq.s32.totalorder %s27, 0
      %p96 = por %p94, %p95
      %s98 = sadd.s32 %s97, 1
      %p101 = scmp.eq.s32.totalorder %s21, 1
      %p102 = scmp.ne.s32.totalorder %s97, %s99
      %p103 = scmp.eq.s32.totalorder %s21, 0
      %p104 = por %p102, %p103
      %p105 = scmp.ne.s32.totalorder %s97, %s99
      %p106 = scmp.eq.s32.totalorder %s26, 1
      %p107 = por %p105, %p106
      %p108 = scmp.ne.s32.totalorder %s99, %s100
      %p109 = scmp.eq.s32.totalorder %s26, 0
      %p110 = por %p108, %p109
      %p111 = scmp.ne.s32.totalorder %s99, %s100
      %p112 = scmp.eq.s32.totalorder %s27, 1
      %p113 = por %p111, %p112
      %p115 = scmp.ne.s32.totalorder %s100, %s114
      %p116 = scmp.eq.s32.totalorder %s27, 0
      %p117 = por %p115, %p116
      %s119 = sadd.s32 %s118, 1
      %p122 = scmp.eq.s32.totalorder %s21, 1
      %p123 = scmp.ne.s32.totalorder %s118, %s120
      %p124 = scmp.eq.s32.totalorder %s21, 0
      %p125 = por %p123, %p124
      %p126 = scmp.ne.s32.totalorder %s118, %s120
      %p127 = scmp.eq.s32.totalorder %s26, 1
      %p128 = por %p126, %p127
      %p129 = scmp.ne.s32.totalorder %s120, %s121
      %p130 = scmp.eq.s32.totalorder %s26, 0
      %p131 = por %p129, %p130
      %p132 = scmp.ne.s32.totalorder %s120, %s121
      %p133 = scmp.eq.s32.totalorder %s27, 1
      %p134 = por %p132, %p133
      %p136 = scmp.ne.s32.totalorder %s121, %s135
      %p137 = scmp.eq.s32.totalorder %s27, 0
      %p138 = por %p136, %p137
      %s140 = sadd.s32 %s139, 1
      %p143 = scmp.eq.s32.totalorder %s21, 1
      %p144 = scmp.ne.s32.totalorder %s139, %s141
      %p145 = scmp.eq.s32.totalorder %s21, 0
      %p146 = por %p144, %p145
      %p147 = scmp.ne.s32.totalorder %s139, %s141
      %p148 = scmp.eq.s32.totalorder %s26, 1
      %p149 = por %p147, %p148
      %p150 = scmp.ne.s32.totalorder %s141, %s142
      %p151 = scmp.eq.s32.totalorder %s26, 0
      %p152 = por %p150, %p151
      %p153 = scmp.ne.s32.totalorder %s141, %s142
      %p154 = scmp.eq.s32.totalorder %s27, 1
      %p155 = por %p153, %p154
      %p157 = scmp.ne.s32.totalorder %s142, %s156
      %p158 = scmp.eq.s32.totalorder %s27, 0
      %p159 = por %p157, %p158
      %s161 = sadd.s32 %s160, 1
      %p164 = scmp.eq.s32.totalorder %s21, 1
      %p165 = scmp.ne.s32.totalorder %s160, %s162
      %p166 = scmp.eq.s32.totalorder %s21, 0
      %p167 = por %p165, %p166
      %p168 = scmp.ne.s32.totalorder %s160, %s162
      %p169 = scmp.eq.s32.totalorder %s26, 1
      %p170 = por %p168, %p169
      %p171 = scmp.ne.s32.totalorder %s162, %s163
      %p172 = scmp.eq.s32.totalorder %s26, 0
      %p173 = por %p171, %p172
      %p174 = scmp.ne.s32.totalorder %s162, %s163
      %p175 = scmp.eq.s32.totalorder %s27, 1
      %p176 = por %p174, %p175
      %p178 = scmp.ne.s32.totalorder %s163, %s177
      %p179 = scmp.eq.s32.totalorder %s27, 0
      %p180 = por %p178, %p179
      %s181 = ssub.s32 %s21, %s28
      %p182 = scmp.eq.s32.totalorder %s181, 0
      %s184 = sadd.s32 %s183, 1
      %s185 = scalar_select %p182, %s183, %s184
      %p188 = pneg %p182
      %p189 = scmp.eq.s32.totalorder %s21, 1
      %p190 = por %p188, %p189
      %p191 = scmp.ne.s32.totalorder %s183, %s186
      %p192 = scmp.eq.s32.totalorder %s21, 0
      %p193 = por %p191, %p192
      %p194 = scmp.ne.s32.totalorder %s183, %s186
      %p195 = scmp.eq.s32.totalorder %s26, 1
      %p196 = por %p194, %p195
      %p197 = scmp.ne.s32.totalorder %s186, %s187
      %p198 = scmp.eq.s32.totalorder %s26, 0
      %p199 = por %p197, %p198
      %p200 = scmp.ne.s32.totalorder %s186, %s187
      %p201 = scmp.eq.s32.totalorder %s27, 1
      %p202 = por %p200, %p201
      %p204 = scmp.ne.s32.totalorder %s187, %s203
      %p205 = scmp.eq.s32.totalorder %s27, 0
      %p206 = por %p204, %p205
      %s207 = ssub.s32 %s21, %s28
      %p208 = scmp.eq.s32.totalorder %s207, 0
      %s210 = sadd.s32 %s209, 1
      %s211 = scalar_select %p208, %s209, %s210
      %p214 = pneg %p208
      %p215 = scmp.eq.s32.totalorder %s21, 1
      %p216 = por %p214, %p215
      %p217 = scmp.ne.s32.totalorder %s209, %s212
      %p218 = scmp.eq.s32.totalorder %s21, 0
      %p219 = por %p217, %p218
      %p220 = scmp.ne.s32.totalorder %s209, %s212
      %p221 = scmp.eq.s32.totalorder %s26, 1
      %p222 = por %p220, %p221
      %p223 = scmp.ne.s32.totalorder %s212, %s213
      %p224 = scmp.eq.s32.totalorder %s26, 0
      %p225 = por %p223, %p224
      %p226 = scmp.ne.s32.totalorder %s212, %s213
      %p227 = scmp.eq.s32.totalorder %s27, 1
      %p228 = por %p226, %p227
      %p230 = scmp.ne.s32.totalorder %s213, %s229
      %p231 = scmp.eq.s32.totalorder %s27, 0
      %p232 = por %p230, %p231
      %p233 = scmp.le.s32.totalorder 1, %s21
      %p234 = scmp.lt.s32.totalorder %s21, 3
      %p235 = pnand %p233, %p234
      %p236 = pneg %p235
      // Predicated region
      $region9: #{stage0_forward.1} parent=5 // pred_check
        _
      $region10: #{stage0_forward.1} parent=5 // pred_check_branch
        %238 = sbr.rel (%p235) target = $region12
      $region11: #{stage0_forward.1} parent=5 // pred_region
        %s239 = ssub.s32 %s21, 1
        // Predicated region
        $region13: #{stage0_forward.1} parent=11 // pred_check
          %p240 = pneg %p68
        $region14: #{stage0_forward.1} parent=11 // pred_check_branch
          %242 = sbr.rel (%p240) target = $region16
        $region15: #{stage0_forward.1} parent=11 // pred_region
          _
        $region16: #{stage0_forward.1} parent=11 // pred_fallthru
          _
        // Predicated region
        $region17: #{stage0_forward.1} parent=11 // pred_check
          %p243 = pneg %p89
        $region18: #{stage0_forward.1} parent=11 // pred_check_branch
          %245 = sbr.rel (%p243) target = $region20
        $region19: #{stage0_forward.1} parent=11 // pred_region
          _
        $region20: #{stage0_forward.1} parent=11 // pred_fallthru
          _
        // Predicated region
        $region21: #{stage0_forward.1} parent=11 // pred_check
          %p246 = pneg %p110
        $region22: #{stage0_forward.1} parent=11 // pred_check_branch
          %248 = sbr.rel (%p246) target = $region24
        $region23: #{stage0_forward.1} parent=11 // pred_region
          _
        $region24: #{stage0_forward.1} parent=11 // pred_fallthru
          _
        // Predicated region
        $region25: #{stage0_forward.1} parent=11 // pred_check
          %p249 = pneg %p131
        $region26: #{stage0_forward.1} parent=11 // pred_check_branch
          %251 = sbr.rel (%p249) target = $region28
        $region27: #{stage0_forward.1} parent=11 // pred_region
          _
        $region28: #{stage0_forward.1} parent=11 // pred_fallthru
          _
        // Predicated region
        $region29: #{stage0_forward.1} parent=11 // pred_check
          %p252 = pneg %p152
        $region30: #{stage0_forward.1} parent=11 // pred_check_branch
          %254 = sbr.rel (%p252) target = $region32
        $region31: #{stage0_forward.1} parent=11 // pred_region
          _
        $region32: #{stage0_forward.1} parent=11 // pred_fallthru
          _
        // Predicated region
        $region33: #{stage0_forward.1} parent=11 // pred_check
          %p255 = pneg %p173
        $region34: #{stage0_forward.1} parent=11 // pred_check_branch
          %257 = sbr.rel (%p255) target = $region36
        $region35: #{stage0_forward.1} parent=11 // pred_region
          _
        $region36: #{stage0_forward.1} parent=11 // pred_fallthru
          _
      $region12: #{stage0_forward.1} parent=5 // pred_fallthru
        _
      %p258 = scmp.lt.s32.totalorder %s21, 2
      // Predicated region
      $region37: #{stage0_forward.1} parent=5 // pred_check
        %p259 = pneg %p258
      $region38: #{stage0_forward.1} parent=5 // pred_check_branch
        %261 = sbr.rel (%p259) target = $region40
      $region39: #{stage0_forward.1} parent=5 // pred_region
        // Predicated region
        $region41: #{stage0_forward.1} parent=39 // pred_check
          %p262 = pneg %p41
        $region42: #{stage0_forward.1} parent=39 // pred_check_branch
          %264 = sbr.rel (%p262) target = $region44
        $region43: #{stage0_forward.1} parent=39 // pred_region
          %p265 = scmp.lt.s32.totalorder %s21, 1
          %s266 = scalar_select %p265, %s21, 1
          %s267 = smul.addr %s266, 64
          %s268 = smul.addr %s267, 8
          %s269 = scalar_lea.vmem %s0, %s268
        $region44: #{stage0_forward.1} parent=39 // pred_fallthru
          _
      $region40: #{stage0_forward.1} parent=5 // pred_fallthru
        _
      %p270 = scmp.le.s32.totalorder 1, %s21
      %p271 = scmp.lt.s32.totalorder %s21, 3
      %p272 = pnand %p270, %p271
      %p273 = pneg %p272
      // Predicated region
      $region45: #{stage0_forward.1} parent=5 // pred_check
        _
      $region46: #{stage0_forward.1} parent=5 // pred_check_branch
        %275 = sbr.rel (%p272) target = $region48
      $region47: #{stage0_forward.1} parent=5 // pred_region
        %s276 = ssub.s32 %s21, 1
        %p277 = scmp.lt.s32.totalorder %s26, 1
        %s278 = scalar_select %p277, %s26, 1
        %s279 = smul.addr %s278, 64
        %s280 = smul.addr %s279, 8
        %s281 = scalar_lea.vmem %s0, %s280
        %p282 = pneg %p47
        %p283 = pneg %p44
        %p284 = pneg %p68
        %p285 = pneg %p65
        %p286 = pneg %p89
        %p287 = pneg %p86
        %p288 = pneg %p110
        %p289 = pneg %p107
        %p290 = pneg %p131
        %p291 = pneg %p128
        %p292 = pneg %p152
        %p293 = pneg %p149
        %p294 = pneg %p173
        %p295 = pneg %p170
        %p296 = pneg %p199
        %p297 = pneg %p196
        %s298 = sand.u32 %s186, 1
        %s299 = scalar_lea.sflag [#allocation5], %s298
        %s300 = sand.u32 %s186, 1
        %s301 = smul.addr %s300, 64
        %s302 = scalar_lea.vmem [#allocation4], %s301
        %p303 = pneg %p225
        %p304 = pneg %p222
        %s305 = sand.u32 %s212, 1
        %s306 = scalar_lea.sflag [#allocation7], %s305
        %s307 = sand.u32 %s212, 1
        %s308 = smul.addr %s307, 64
        %s309 = scalar_lea.vmem [#allocation6], %s308
        %p310 = scmp.lt.s32.totalorder %s26, 1
        %s311 = scalar_select %p310, %s26, 1
        %s312 = smul.addr %s311, 64
        %s313 = smul.addr %s312, 8
        %s314 = scalar_lea.vmem %s0, %s313
        %v315 = vld [vmem:[%s314] sm:$0xff]
        %v316 = vld [vmem:[%s314 + $0x8] sm:$0xff]
        %v317 = vld [vmem:[%s314 + $0x10] sm:$0xff]
        %v318 = vld [vmem:[%s314 + $0x18] sm:$0xff]
        %v319 = vld [vmem:[%s314 + $0x20] sm:$0xff]
        %v320 = vld [vmem:[%s314 + $0x28] sm:$0xff]
        %v321 = vld [vmem:[%s314 + $0x30] sm:$0xff]
        %v322 = vld [vmem:[%s314 + $0x38] sm:$0xff]
        %v323 = vld [vmem:[%s314 + $0x40] sm:$0xff]
        %v324 = vld [vmem:[%s314 + $0x48] sm:$0xff]
        %v325 = vld [vmem:[%s314 + $0x50] sm:$0xff]
        %v326 = vld [vmem:[%s314 + $0x58] sm:$0xff]
        %v327 = vld [vmem:[%s314 + $0x60] sm:$0xff]
        %v328 = vld [vmem:[%s314 + $0x68] sm:$0xff]
        %v329 = vld [vmem:[%s314 + $0x70] sm:$0xff]
        %v330 = vld [vmem:[%s314 + $0x78] sm:$0xff]
        %v331 = vld [vmem:[%s314 + $0x80] sm:$0xff]
        %v332 = vld [vmem:[%s314 + $0x88] sm:$0xff]
        %v333 = vld [vmem:[%s314 + $0x90] sm:$0xff]
        %v334 = vld [vmem:[%s314 + $0x98] sm:$0xff]
        %v335 = vld [vmem:[%s314 + $0xa0] sm:$0xff]
        %v336 = vld [vmem:[%s314 + $0xa8] sm:$0xff]
        %v337 = vld [vmem:[%s314 + $0xb0] sm:$0xff]
        %v338 = vld [vmem:[%s314 + $0xb8] sm:$0xff]
        %v339 = vld [vmem:[%s314 + $0xc0] sm:$0xff]
        %v340 = vld [vmem:[%s314 + $0xc8] sm:$0xff]
        %v341 = vld [vmem:[%s314 + $0xd0] sm:$0xff]
        %v342 = vld [vmem:[%s314 + $0xd8] sm:$0xff]
        %v343 = vld [vmem:[%s314 + $0xe0] sm:$0xff]
        %v344 = vld [vmem:[%s314 + $0xe8] sm:$0xff]
        %v345 = vld [vmem:[%s314 + $0xf0] sm:$0xff]
        %v346 = vld [vmem:[%s314 + $0xf8] sm:$0xff]
        %v347 = vld [vmem:[%s314 + $0x100] sm:$0xff]
        %v348 = vld [vmem:[%s314 + $0x108] sm:$0xff]
        %v349 = vld [vmem:[%s314 + $0x110] sm:$0xff]
        %v350 = vld [vmem:[%s314 + $0x118] sm:$0xff]
        %v351 = vld [vmem:[%s314 + $0x120] sm:$0xff]
        %v352 = vld [vmem:[%s314 + $0x128] sm:$0xff]
        %v353 = vld [vmem:[%s314 + $0x130] sm:$0xff]
        %v354 = vld [vmem:[%s314 + $0x138] sm:$0xff]
        %v355 = vld [vmem:[%s314 + $0x140] sm:$0xff]
        %v356 = vld [vmem:[%s314 + $0x148] sm:$0xff]
        %v357 = vld [vmem:[%s314 + $0x150] sm:$0xff]
        %v358 = vld [vmem:[%s314 + $0x158] sm:$0xff]
        %v359 = vld [vmem:[%s314 + $0x160] sm:$0xff]
        %v360 = vld [vmem:[%s314 + $0x168] sm:$0xff]
        %v361 = vld [vmem:[%s314 + $0x170] sm:$0xff]
        %v362 = vld [vmem:[%s314 + $0x178] sm:$0xff]
        %v363 = vld [vmem:[%s314 + $0x180] sm:$0xff]
        %v364 = vld [vmem:[%s314 + $0x188] sm:$0xff]
        %v365 = vld [vmem:[%s314 + $0x190] sm:$0xff]
        %v366 = vld [vmem:[%s314 + $0x198] sm:$0xff]
        %v367 = vld [vmem:[%s314 + $0x1a0] sm:$0xff]
        %v368 = vld [vmem:[%s314 + $0x1a8] sm:$0xff]
        %v369 = vld [vmem:[%s314 + $0x1b0] sm:$0xff]
        %v370 = vld [vmem:[%s314 + $0x1b8] sm:$0xff]
        %v371 = vld [vmem:[%s314 + $0x1c0] sm:$0xff]
        %v372 = vld [vmem:[%s314 + $0x1c8] sm:$0xff]
        %v373 = vld [vmem:[%s314 + $0x1d0] sm:$0xff]
        %v374 = vld [vmem:[%s314 + $0x1d8] sm:$0xff]
        %v375 = vld [vmem:[%s314 + $0x1e0] sm:$0xff]
        %v376 = vld [vmem:[%s314 + $0x1e8] sm:$0xff]
        %v377 = vld [vmem:[%s314 + $0x1f0] sm:$0xff]
        %v378 = vld [vmem:[%s314 + $0x1f8] sm:$0xff]
        %v379 = vld [vmem:[%s1] sm:$0xff]
        %v380 = vld [vmem:[%s1 + $0x8] sm:$0xff]
        %v381 = vld [vmem:[%s1 + $0x10] sm:$0xff]
        %v382 = vld [vmem:[%s1 + $0x18] sm:$0xff]
        %v383 = vld [vmem:[%s1 + $0x20] sm:$0xff]
        %v384 = vld [vmem:[%s1 + $0x28] sm:$0xff]
        %v385 = vld [vmem:[%s1 + $0x30] sm:$0xff]
        %v386 = vld [vmem:[%s1 + $0x38] sm:$0xff]
        %v387 = vld [vmem:[%s1 + $0x40] sm:$0xff]
        %v388 = vld [vmem:[%s1 + $0x48] sm:$0xff]
        %v389 = vld [vmem:[%s1 + $0x50] sm:$0xff]
        %v390 = vld [vmem:[%s1 + $0x58] sm:$0xff]
        %v391 = vld [vmem:[%s1 + $0x60] sm:$0xff]
        %v392 = vld [vmem:[%s1 + $0x68] sm:$0xff]
        %v393 = vld [vmem:[%s1 + $0x70] sm:$0xff]
        %v394 = vld [vmem:[%s1 + $0x78] sm:$0xff]
        %v395 = vld [vmem:[%s1 + $0x80] sm:$0xff]
        %v396 = vld [vmem:[%s1 + $0x88] sm:$0xff]
        %v397 = vld [vmem:[%s1 + $0x90] sm:$0x7]
        %v398 = vld [vmem:[%s2] sm:$0x1]
        %v400 = vperm.slane %v398, 0
        %vm402 = vcmask 154624
        %v404 = vsel %vm402, %v316, 0
        %v407 = vsel %vm402, %v318, 0
        %v410 = vsel %vm402, %v320, 0
        %v413 = vsel %vm402, %v322, 0
        %v416 = vsel %vm402, %v324, 0
        %v419 = vsel %vm402, %v326, 0
        %v422 = vsel %vm402, %v328, 0
        %v425 = vsel %vm402, %v330, 0
        %v428 = vsel %vm402, %v332, 0
        %v431 = vsel %vm402, %v334, 0
        %v434 = vsel %vm402, %v336, 0
        %v437 = vsel %vm402, %v338, 0
        %v440 = vsel %vm402, %v340, 0
        %v443 = vsel %vm402, %v342, 0
        %v446 = vsel %vm402, %v344, 0
        %v449 = vsel %vm402, %v346, 0
        %v452 = vsel %vm402, %v348, 0
        %v455 = vsel %vm402, %v350, 0
        %v458 = vsel %vm402, %v352, 0
        %v461 = vsel %vm402, %v354, 0
        %v464 = vsel %vm402, %v356, 0
        %v467 = vsel %vm402, %v358, 0
        %v470 = vsel %vm402, %v360, 0
        %v473 = vsel %vm402, %v362, 0
        %v476 = vsel %vm402, %v364, 0
        %v479 = vsel %vm402, %v366, 0
        %v482 = vsel %vm402, %v368, 0
        %v485 = vsel %vm402, %v370, 0
        %v488 = vsel %vm402, %v372, 0
        %v491 = vsel %vm402, %v374, 0
        %v494 = vsel %vm402, %v376, 0
        %v497 = vsel %vm402, %v378, 0
        %vm499 = vcmask 1042432
        %v501 = vsel %vm499, %v397, 0
        %503 = vmatpush.msra.mxu0 %v394
        %504 = vmatpush.msra.mxu0 %v393
        %505 = vmatpush.msra.mxu0 %v392
        %506 = vmatpush.msra.mxu0 %v391
        %507 = vmatpush.msra.mxu0 %v390
        %508 = vmatpush.msra.mxu0 %v389
        %509 = vmatpush.msra.mxu0 %v388
        %510 = vmatpush.msra.mxu0 %v387
        %511 = vmatpush.msra.mxu0 %v386
        %512 = vmatpush.msra.mxu0 %v385
        %513 = vmatpush.msra.mxu0 %v384
        %514 = vmatpush.msra.mxu0 %v383
        %515 = vmatpush.msra.mxu0 %v382
        %516 = vmatpush.msra.mxu0 %v381
        %517 = vmatpush.msra.mxu0 %v380
        %518 = vmatpush.msra.mxu0 %v379
        %519 = vmatmul.f32.gmra.mxu0 %v315
        %v520 = vpop.f32.mrf.mxu0
        %v521 = vadd.f32 %v400, %v520
        %522 = vmatmul.f32.gmra.mxu0 %v317
        %v523 = vpop.f32.mrf.mxu0
        %v524 = vadd.f32 %v400, %v523
        %525 = vmatmul.f32.gmra.mxu0 %v319
        %v526 = vpop.f32.mrf.mxu0
        %v527 = vadd.f32 %v400, %v526
        %528 = vmatmul.f32.gmra.mxu0 %v321
        %v529 = vpop.f32.mrf.mxu0
        %v530 = vadd.f32 %v400, %v529
        %531 = vmatmul.f32.gmra.mxu0 %v323
        %v532 = vpop.f32.mrf.mxu0
        %v533 = vadd.f32 %v400, %v532
        %534 = vmatmul.f32.gmra.mxu0 %v325
        %v535 = vpop.f32.mrf.mxu0
        %v536 = vadd.f32 %v400, %v535
        %537 = vmatmul.f32.gmra.mxu0 %v327
        %v538 = vpop.f32.mrf.mxu0
        %v539 = vadd.f32 %v400, %v538
        %540 = vmatmul.f32.gmra.mxu0 %v329
        %v541 = vpop.f32.mrf.mxu0
        %v542 = vadd.f32 %v400, %v541
        %543 = vmatmul.f32.gmra.mxu0 %v331
        %v544 = vpop.f32.mrf.mxu0
        %v545 = vadd.f32 %v400, %v544
        %546 = vmatmul.f32.gmra.mxu0 %v333
        %v547 = vpop.f32.mrf.mxu0
        %v548 = vadd.f32 %v400, %v547
        %549 = vmatmul.f32.gmra.mxu0 %v335
        %v550 = vpop.f32.mrf.mxu0
        %v551 = vadd.f32 %v400, %v550
        %552 = vmatmul.f32.gmra.mxu0 %v337
        %v553 = vpop.f32.mrf.mxu0
        %v554 = vadd.f32 %v400, %v553
        %555 = vmatmul.f32.gmra.mxu0 %v339
        %v556 = vpop.f32.mrf.mxu0
        %v557 = vadd.f32 %v400, %v556
        %558 = vmatmul.f32.gmra.mxu0 %v341
        %v559 = vpop.f32.mrf.mxu0
        %v560 = vadd.f32 %v400, %v559
        %561 = vmatmul.f32.gmra.mxu0 %v343
        %v562 = vpop.f32.mrf.mxu0
        %v563 = vadd.f32 %v400, %v562
        %564 = vmatmul.f32.gmra.mxu0 %v345
        %v565 = vpop.f32.mrf.mxu0
        %v566 = vadd.f32 %v400, %v565
        %567 = vmatmul.f32.gmra.mxu0 %v347
        %v568 = vpop.f32.mrf.mxu0
        %v569 = vadd.f32 %v400, %v568
        %570 = vmatmul.f32.gmra.mxu0 %v349
        %v571 = vpop.f32.mrf.mxu0
        %v572 = vadd.f32 %v400, %v571
        %573 = vmatmul.f32.gmra.mxu0 %v351
        %v574 = vpop.f32.mrf.mxu0
        %v575 = vadd.f32 %v400, %v574
        %576 = vmatmul.f32.gmra.mxu0 %v353
        %v577 = vpop.f32.mrf.mxu0
        %v578 = vadd.f32 %v400, %v577
        %579 = vmatmul.f32.gmra.mxu0 %v355
        %v580 = vpop.f32.mrf.mxu0
        %v581 = vadd.f32 %v400, %v580
        %582 = vmatmul.f32.gmra.mxu0 %v357
        %v583 = vpop.f32.mrf.mxu0
        %v584 = vadd.f32 %v400, %v583
        %585 = vmatmul.f32.gmra.mxu0 %v359
        %v586 = vpop.f32.mrf.mxu0
        %v587 = vadd.f32 %v400, %v586
        %588 = vmatmul.f32.gmra.mxu0 %v361
        %v589 = vpop.f32.mrf.mxu0
        %v590 = vadd.f32 %v400, %v589
        %591 = vmatmul.f32.gmra.mxu0 %v363
        %v592 = vpop.f32.mrf.mxu0
        %v593 = vadd.f32 %v400, %v592
        %594 = vmatmul.f32.gmra.mxu0 %v365
        %v595 = vpop.f32.mrf.mxu0
        %v596 = vadd.f32 %v400, %v595
        %597 = vmatmul.f32.gmra.mxu0 %v367
        %v598 = vpop.f32.mrf.mxu0
        %v599 = vadd.f32 %v400, %v598
        %600 = vmatmul.f32.gmra.mxu0 %v369
        %v601 = vpop.f32.mrf.mxu0
        %v602 = vadd.f32 %v400, %v601
        %603 = vmatmul.f32.gmra.mxu0 %v371
        %v604 = vpop.f32.mrf.mxu0
        %v605 = vadd.f32 %v400, %v604
        %606 = vmatmul.f32.gmra.mxu0 %v373
        %v607 = vpop.f32.mrf.mxu0
        %v608 = vadd.f32 %v400, %v607
        %609 = vmatmul.f32.gmra.mxu0 %v375
        %v610 = vpop.f32.mrf.mxu0
        %v611 = vadd.f32 %v400, %v610
        %612 = vmatmul.f32.gmra.mxu0 %v377
        %v613 = vpop.f32.mrf.mxu0
        %v614 = vadd.f32 %v400, %v613
        %615 = vdwg.mxu0
        %616 = vmatpush.msra.mxu0 0.0
        %617 = vmatpush.msra.mxu0 0.0
        %618 = vmatpush.msra.mxu0 0.0
        %619 = vmatpush.msra.mxu0 0.0
        %620 = vmatpush.msra.mxu0 0.0
        %621 = vmatpush.msra.mxu0 0.0
        %622 = vmatpush.msra.mxu0 0.0
        %623 = vmatpush.msra.mxu0 0.0
        %624 = vmatpush.msra.mxu0 0.0
        %625 = vmatpush.msra.mxu0 0.0
        %626 = vmatpush.msra.mxu0 0.0
        %627 = vmatpush.msra.mxu0 0.0
        %628 = vmatpush.msra.mxu0 0.0
        %629 = vmatpush.msra.mxu0 %v501
        %630 = vmatpush.msra.mxu0 %v396
        %631 = vmatpush.msra.mxu0 %v395
        %632 = vmatmul.f32.gmra.mxu0 %v404
        %v633 = vpop.f32.mrf.mxu0
        %v634 = vadd.f32 %v521, %v633
        %635 = vmatmul.f32.gmra.mxu0 %v407
        %v636 = vpop.f32.mrf.mxu0
        %v637 = vadd.f32 %v524, %v636
        %638 = vmatmul.f32.gmra.mxu0 %v410
        %v639 = vpop.f32.mrf.mxu0
        %v640 = vadd.f32 %v527, %v639
        %641 = vmatmul.f32.gmra.mxu0 %v413
        %v642 = vpop.f32.mrf.mxu0
        %v643 = vadd.f32 %v530, %v642
        %644 = vmatmul.f32.gmra.mxu0 %v416
        %v645 = vpop.f32.mrf.mxu0
        %v646 = vadd.f32 %v533, %v645
        %647 = vmatmul.f32.gmra.mxu0 %v419
        %v648 = vpop.f32.mrf.mxu0
        %v649 = vadd.f32 %v536, %v648
        %650 = vmatmul.f32.gmra.mxu0 %v422
        %v651 = vpop.f32.mrf.mxu0
        %v652 = vadd.f32 %v539, %v651
        %653 = vmatmul.f32.gmra.mxu0 %v425
        %v654 = vpop.f32.mrf.mxu0
        %v655 = vadd.f32 %v542, %v654
        %656 = vmatmul.f32.gmra.mxu0 %v428
        %v657 = vpop.f32.mrf.mxu0
        %v658 = vadd.f32 %v545, %v657
        %659 = vmatmul.f32.gmra.mxu0 %v431
        %v660 = vpop.f32.mrf.mxu0
        %v661 = vadd.f32 %v548, %v660
        %662 = vmatmul.f32.gmra.mxu0 %v434
        %v663 = vpop.f32.mrf.mxu0
        %v664 = vadd.f32 %v551, %v663
        %665 = vmatmul.f32.gmra.mxu0 %v437
        %v666 = vpop.f32.mrf.mxu0
        %v667 = vadd.f32 %v554, %v666
        %668 = vmatmul.f32.gmra.mxu0 %v440
        %v669 = vpop.f32.mrf.mxu0
        %v670 = vadd.f32 %v557, %v669
        %671 = vmatmul.f32.gmra.mxu0 %v443
        %v672 = vpop.f32.mrf.mxu0
        %v673 = vadd.f32 %v560, %v672
        %674 = vmatmul.f32.gmra.mxu0 %v446
        %v675 = vpop.f32.mrf.mxu0
        %v676 = vadd.f32 %v563, %v675
        %677 = vmatmul.f32.gmra.mxu0 %v449
        %v678 = vpop.f32.mrf.mxu0
        %v679 = vadd.f32 %v566, %v678
        %680 = vmatmul.f32.gmra.mxu0 %v452
        %v681 = vpop.f32.mrf.mxu0
        %v682 = vadd.f32 %v569, %v681
        %683 = vmatmul.f32.gmra.mxu0 %v455
        %v684 = vpop.f32.mrf.mxu0
        %v685 = vadd.f32 %v572, %v684
        %686 = vmatmul.f32.gmra.mxu0 %v458
        %v687 = vpop.f32.mrf.mxu0
        %v688 = vadd.f32 %v575, %v687
        %689 = vmatmul.f32.gmra.mxu0 %v461
        %v690 = vpop.f32.mrf.mxu0
        %v691 = vadd.f32 %v578, %v690
        %692 = vmatmul.f32.gmra.mxu0 %v464
        %v693 = vpop.f32.mrf.mxu0
        %v694 = vadd.f32 %v581, %v693
        %695 = vmatmul.f32.gmra.mxu0 %v467
        %v696 = vpop.f32.mrf.mxu0
        %v697 = vadd.f32 %v584, %v696
        %698 = vmatmul.f32.gmra.mxu0 %v470
        %v699 = vpop.f32.mrf.mxu0
        %v700 = vadd.f32 %v587, %v699
        %701 = vmatmul.f32.gmra.mxu0 %v473
        %v702 = vpop.f32.mrf.mxu0
        %v703 = vadd.f32 %v590, %v702
        %704 = vmatmul.f32.gmra.mxu0 %v476
        %v705 = vpop.f32.mrf.mxu0
        %v706 = vadd.f32 %v593, %v705
        %707 = vmatmul.f32.gmra.mxu0 %v479
        %v708 = vpop.f32.mrf.mxu0
        %v709 = vadd.f32 %v596, %v708
        %710 = vmatmul.f32.gmra.mxu0 %v482
        %v711 = vpop.f32.mrf.mxu0
        %v712 = vadd.f32 %v599, %v711
        %713 = vmatmul.f32.gmra.mxu0 %v485
        %v714 = vpop.f32.mrf.mxu0
        %v715 = vadd.f32 %v602, %v714
        %716 = vmatmul.f32.gmra.mxu0 %v488
        %v717 = vpop.f32.mrf.mxu0
        %v718 = vadd.f32 %v605, %v717
        %719 = vmatmul.f32.gmra.mxu0 %v491
        %v720 = vpop.f32.mrf.mxu0
        %v721 = vadd.f32 %v608, %v720
        %722 = vmatmul.f32.gmra.mxu0 %v494
        %v723 = vpop.f32.mrf.mxu0
        %v724 = vadd.f32 %v611, %v723
        %725 = vmatmul.f32.gmra.mxu0 %v497
        %v726 = vpop.f32.mrf.mxu0
        %v727 = vadd.f32 %v614, %v726
        %728 = vdwg.mxu0
        %v729 = vmax.f32 %v634, 0.0
        %v730 = vmax.f32 %v637, 0.0
        %v731 = vmax.f32 %v640, 0.0
        %v732 = vmax.f32 %v643, 0.0
        %v733 = vmax.f32 %v646, 0.0
        %v734 = vmax.f32 %v649, 0.0
        %v735 = vmax.f32 %v652, 0.0
        %v736 = vmax.f32 %v655, 0.0
        %v737 = vmax.f32 %v658, 0.0
        %v738 = vmax.f32 %v661, 0.0
        %v739 = vmax.f32 %v664, 0.0
        %v740 = vmax.f32 %v667, 0.0
        %v741 = vmax.f32 %v670, 0.0
        %v742 = vmax.f32 %v673, 0.0
        %v743 = vmax.f32 %v676, 0.0
        %v744 = vmax.f32 %v679, 0.0
        %v745 = vmax.f32 %v682, 0.0
        %v746 = vmax.f32 %v685, 0.0
        %v747 = vmax.f32 %v688, 0.0
        %v748 = vmax.f32 %v691, 0.0
        %v749 = vmax.f32 %v694, 0.0
        %v750 = vmax.f32 %v697, 0.0
        %v751 = vmax.f32 %v700, 0.0
        %v752 = vmax.f32 %v703, 0.0
        %v753 = vmax.f32 %v706, 0.0
        %v754 = vmax.f32 %v709, 0.0
        %v755 = vmax.f32 %v712, 0.0
        %v756 = vmax.f32 %v715, 0.0
        %v757 = vmax.f32 %v718, 0.0
        %v758 = vmax.f32 %v721, 0.0
        %v759 = vmax.f32 %v724, 0.0
        %v760 = vmax.f32 %v727, 0.0
        %vm761 = vcmask 523264
        %762 = vst.msk [vmem:[#allocation2] sm:$0xff] %vm761, 0.0
        %vm763 = vcmask 516096
        %764 = vst.msk [vmem:[#allocation2 + $0x8] sm:$0x1] %vm763, 0.0
        %765 = vst.msk [vmem:[#allocation2 + $0x10] sm:$0xff] %vm761, 0.0
        %766 = vst.msk [vmem:[#allocation2 + $0x18] sm:$0x1] %vm763, 0.0
        %767 = vst.msk [vmem:[#allocation2 + $0x20] sm:$0xff] %vm761, 0.0
        %768 = vst.msk [vmem:[#allocation2 + $0x28] sm:$0x1] %vm763, 0.0
        %769 = vst.msk [vmem:[#allocation2 + $0x30] sm:$0xff] %vm761, 0.0
        %770 = vst.msk [vmem:[#allocation2 + $0x38] sm:$0x1] %vm763, 0.0
        %771 = vst.msk [vmem:[#allocation2 + $0x40] sm:$0xff] %vm761, 0.0
        %772 = vst.msk [vmem:[#allocation2 + $0x48] sm:$0x1] %vm763, 0.0
        %773 = vst.msk [vmem:[#allocation2 + $0x50] sm:$0xff] %vm761, 0.0
        %774 = vst.msk [vmem:[#allocation2 + $0x58] sm:$0x1] %vm763, 0.0
        %775 = vst.msk [vmem:[#allocation2 + $0x60] sm:$0xff] %vm761, 0.0
        %776 = vst.msk [vmem:[#allocation2 + $0x68] sm:$0x1] %vm763, 0.0
        %777 = vst.msk [vmem:[#allocation2 + $0x70] sm:$0xff] %vm761, 0.0
        %778 = vst.msk [vmem:[#allocation2 + $0x78] sm:$0x1] %vm763, 0.0
        %779 = vst.msk [vmem:[#allocation2 + $0x80] sm:$0xff] %vm761, 0.0
        %780 = vst.msk [vmem:[#allocation2 + $0x88] sm:$0x1] %vm763, 0.0
        %781 = vst.msk [vmem:[#allocation2 + $0x90] sm:$0xff] %vm761, 0.0
        %782 = vst.msk [vmem:[#allocation2 + $0x98] sm:$0x1] %vm763, 0.0
        %783 = vst.msk [vmem:[#allocation2 + $0xa0] sm:$0xff] %vm761, 0.0
        %784 = vst.msk [vmem:[#allocation2 + $0xa8] sm:$0x1] %vm763, 0.0
        %785 = vst.msk [vmem:[#allocation2 + $0xb0] sm:$0xff] %vm761, 0.0
        %786 = vst.msk [vmem:[#allocation2 + $0xb8] sm:$0x1] %vm763, 0.0
        %787 = vst.msk [vmem:[#allocation2 + $0xc0] sm:$0xff] %vm761, 0.0
        %788 = vst.msk [vmem:[#allocation2 + $0xc8] sm:$0x1] %vm763, 0.0
        %789 = vst.msk [vmem:[#allocation2 + $0xd0] sm:$0xff] %vm761, 0.0
        %790 = vst.msk [vmem:[#allocation2 + $0xd8] sm:$0x1] %vm763, 0.0
        %791 = vst.msk [vmem:[#allocation2 + $0xe0] sm:$0xff] %vm761, 0.0
        %792 = vst.msk [vmem:[#allocation2 + $0xe8] sm:$0x1] %vm763, 0.0
        %793 = vst.msk [vmem:[#allocation2 + $0xf0] sm:$0xff] %vm761, 0.0
        %794 = vst.msk [vmem:[#allocation2 + $0xf8] sm:$0x1] %vm763, 0.0
        %795 = vst.msk [vmem:[#allocation2 + $0x100] sm:$0xff] %vm761, 0.0
        %796 = vst.msk [vmem:[#allocation2 + $0x108] sm:$0x1] %vm763, 0.0
        %797 = vst.msk [vmem:[#allocation2 + $0x110] sm:$0xff] %vm761, 0.0
        %798 = vst.msk [vmem:[#allocation2 + $0x118] sm:$0x1] %vm763, 0.0
        %799 = vst.msk [vmem:[#allocation2 + $0x120] sm:$0xff] %vm761, 0.0
        %800 = vst.msk [vmem:[#allocation2 + $0x128] sm:$0x1] %vm763, 0.0
        %801 = vst.msk [vmem:[#allocation2 + $0x130] sm:$0xff] %vm761, 0.0
        %802 = vst.msk [vmem:[#allocation2 + $0x138] sm:$0x1] %vm763, 0.0
        %803 = vst.msk [vmem:[#allocation2 + $0x140] sm:$0xff] %vm761, 0.0
        %804 = vst.msk [vmem:[#allocation2 + $0x148] sm:$0x1] %vm763, 0.0
        %805 = vst.msk [vmem:[#allocation2 + $0x150] sm:$0xff] %vm761, 0.0
        %806 = vst.msk [vmem:[#allocation2 + $0x158] sm:$0x1] %vm763, 0.0
        %807 = vst.msk [vmem:[#allocation2 + $0x160] sm:$0xff] %vm761, 0.0
        %808 = vst.msk [vmem:[#allocation2 + $0x168] sm:$0x1] %vm763, 0.0
        %809 = vst.msk [vmem:[#allocation2 + $0x170] sm:$0xff] %vm761, 0.0
        %810 = vst.msk [vmem:[#allocation2 + $0x178] sm:$0x1] %vm763, 0.0
        %811 = vst.msk [vmem:[#allocation2 + $0x180] sm:$0xff] %vm761, 0.0
        %812 = vst.msk [vmem:[#allocation2 + $0x188] sm:$0x1] %vm763, 0.0
        %813 = vst.msk [vmem:[#allocation2 + $0x190] sm:$0xff] %vm761, 0.0
        %814 = vst.msk [vmem:[#allocation2 + $0x198] sm:$0x1] %vm763, 0.0
        %815 = vst.msk [vmem:[#allocation2 + $0x1a0] sm:$0xff] %vm761, 0.0
        %816 = vst.msk [vmem:[#allocation2 + $0x1a8] sm:$0x1] %vm763, 0.0
        %817 = vst.msk [vmem:[#allocation2 + $0x1b0] sm:$0xff] %vm761, 0.0
        %818 = vst.msk [vmem:[#allocation2 + $0x1b8] sm:$0x1] %vm763, 0.0
        %819 = vst.msk [vmem:[#allocation2 + $0x1c0] sm:$0xff] %vm761, 0.0
        %820 = vst.msk [vmem:[#allocation2 + $0x1c8] sm:$0x1] %vm763, 0.0
        %821 = vst.msk [vmem:[#allocation2 + $0x1d0] sm:$0xff] %vm761, 0.0
        %822 = vst.msk [vmem:[#allocation2 + $0x1d8] sm:$0x1] %vm763, 0.0
        %823 = vst.msk [vmem:[#allocation2 + $0x1e0] sm:$0xff] %vm761, 0.0
        %824 = vst.msk [vmem:[#allocation2 + $0x1e8] sm:$0x1] %vm763, 0.0
        %825 = vst.msk [vmem:[#allocation2 + $0x1f0] sm:$0xff] %vm761, 0.0
        %826 = vst.msk [vmem:[#allocation2 + $0x1f8] sm:$0x1] %vm763, 0.0
        %827 = vst.msk [vmem:[#allocation2 + $0x200] sm:$0xff] %vm761, 0.0
        %828 = vst.msk [vmem:[#allocation2 + $0x208] sm:$0x1] %vm763, 0.0
        %829 = vst.msk [vmem:[#allocation2 + $0x210] sm:$0xff] %vm761, 0.0
        %830 = vst.msk [vmem:[#allocation2 + $0x218] sm:$0x1] %vm763, 0.0
        %831 = vst.msk [vmem:[#allocation2 + $0x220] sm:$0xff] %vm761, 0.0
        %832 = vst.msk [vmem:[#allocation2 + $0x228] sm:$0x1] %vm763, 0.0
        %833 = vst.msk [vmem:[#allocation2 + $0x230] sm:$0xff] %vm761, 0.0
        %834 = vst.msk [vmem:[#allocation2 + $0x238] sm:$0x1] %vm763, 0.0
        %s835 = scalar_lea.vmem [#allocation2], 432
        %836 = vst.msk [vmem:[%s835] sm:$0xff] %vm761, %v729
        %837 = vst.msk [vmem:[%s835 + $0x10] sm:$0xff] %vm761, %v730
        %838 = vst.msk [vmem:[%s835 + $0x20] sm:$0xff] %vm761, %v731
        %839 = vst.msk [vmem:[%s835 + $0x30] sm:$0xff] %vm761, %v732
        %840 = vst.msk [vmem:[%s835 + $0x40] sm:$0xff] %vm761, %v733
        %841 = vst.msk [vmem:[%s835 + $0x50] sm:$0xff] %vm761, %v734
        %842 = vst.msk [vmem:[%s835 + $0x60] sm:$0xff] %vm761, %v735
        %843 = vst.msk [vmem:[%s835 + $0x70] sm:$0xff] %vm761, %v736
        %s844 = scalar_lea.vmem [#allocation2], 288
        %845 = vst.msk [vmem:[%s844 + $0x1] sm:$0xff] %vm761, %v737
        %846 = vst.msk [vmem:[%s844 + $0x11] sm:$0xff] %vm761, %v738
        %847 = vst.msk [vmem:[%s844 + $0x21] sm:$0xff] %vm761, %v739
        %848 = vst.msk [vmem:[%s844 + $0x31] sm:$0xff] %vm761, %v740
        %849 = vst.msk [vmem:[%s844 + $0x41] sm:$0xff] %vm761, %v741
        %850 = vst.msk [vmem:[%s844 + $0x51] sm:$0xff] %vm761, %v742
        %851 = vst.msk [vmem:[%s844 + $0x61] sm:$0xff] %vm761, %v743
        %852 = vst.msk [vmem:[%s844 + $0x71] sm:$0xff] %vm761, %v744
        %s853 = scalar_lea.vmem [#allocation2], 160
        %854 = vst.msk [vmem:[%s853] sm:$0xff] %vm761, %v745
        %855 = vst.msk [vmem:[%s853 + $0x10] sm:$0xff] %vm761, %v746
        %856 = vst.msk [vmem:[%s853 + $0x20] sm:$0xff] %vm761, %v747
        %857 = vst.msk [vmem:[%s853 + $0x30] sm:$0xff] %vm761, %v748
        %858 = vst.msk [vmem:[%s853 + $0x40] sm:$0xff] %vm761, %v749
        %859 = vst.msk [vmem:[%s853 + $0x50] sm:$0xff] %vm761, %v750
        %860 = vst.msk [vmem:[%s853 + $0x60] sm:$0xff] %vm761, %v751
        %861 = vst.msk [vmem:[%s853 + $0x70] sm:$0xff] %vm761, %v752
        %s862 = scalar_lea.vmem [#allocation2], 16
        %863 = vst.msk [vmem:[%s862 + $0x1] sm:$0xff] %vm761, %v753
        %864 = vst.msk [vmem:[%s862 + $0x11] sm:$0xff] %vm761, %v754
        %865 = vst.msk [vmem:[%s862 + $0x21] sm:$0xff] %vm761, %v755
        %866 = vst.msk [vmem:[%s862 + $0x31] sm:$0xff] %vm761, %v756
        %867 = vst.msk [vmem:[%s862 + $0x41] sm:$0xff] %vm761, %v757
        %868 = vst.msk [vmem:[%s862 + $0x51] sm:$0xff] %vm761, %v758
        %869 = vst.msk [vmem:[%s862 + $0x61] sm:$0xff] %vm761, %v759
        %870 = vst.msk [vmem:[%s862 + $0x71] sm:$0xff] %vm761, %v760
        %v871 = vld [vmem:[#allocation2] sm:$0xff]
        %v872 = vld [vmem:[#allocation2 + $0x10] sm:$0xff]
        %v873 = vld [vmem:[#allocation2 + $0x20] sm:$0xff]
        %v874 = vld [vmem:[#allocation2 + $0x30] sm:$0xff]
        %v875 = vld [vmem:[#allocation2 + $0x40] sm:$0xff]
        %v876 = vld [vmem:[#allocation2 + $0x50] sm:$0xff]
        %v877 = vld [vmem:[#allocation2 + $0x60] sm:$0xff]
        %v878 = vld [vmem:[#allocation2 + $0x70] sm:$0xff]
        %s879 = scalar_lea.vmem [#allocation2], 144
        %v880 = vld [vmem:[%s879] sm:$0xff]
        %v881 = vld [vmem:[%s879 + $0x10] sm:$0xff]
        %v882 = vld [vmem:[%s879 + $0x20] sm:$0xff]
        %v883 = vld [vmem:[%s879 + $0x30] sm:$0xff]
        %v884 = vld [vmem:[%s879 + $0x40] sm:$0xff]
        %v885 = vld [vmem:[%s879 + $0x50] sm:$0xff]
        %v886 = vld [vmem:[%s879 + $0x60] sm:$0xff]
        %v887 = vld [vmem:[%s879 + $0x70] sm:$0xff]
        %v888 = vmax.f32 %v871, %v880
        %v889 = vmax.f32 %v872, %v881
        %v890 = vmax.f32 %v873, %v882
        %v891 = vmax.f32 %v874, %v883
        %v892 = vmax.f32 %v875, %v884
        %v893 = vmax.f32 %v876, %v885
        %v894 = vmax.f32 %v877, %v886
        %v895 = vmax.f32 %v878, %v887
        %v896 = vld [vmem:[#allocation2 + $0x1] sm:$0xff]
        %v897 = vld [vmem:[#allocation2 + $0x11] sm:$0xff]
        %v898 = vld [vmem:[#allocation2 + $0x21] sm:$0xff]
        %v899 = vld [vmem:[#allocation2 + $0x31] sm:$0xff]
        %v900 = vld [vmem:[#allocation2 + $0x41] sm:$0xff]
        %v901 = vld [vmem:[#allocation2 + $0x51] sm:$0xff]
        %v902 = vld [vmem:[#allocation2 + $0x61] sm:$0xff]
        %v903 = vld [vmem:[#allocation2 + $0x71] sm:$0xff]
        %v904 = vmax.f32 %v888, %v896
        %v905 = vmax.f32 %v889, %v897
        %v906 = vmax.f32 %v890, %v898
        %v907 = vmax.f32 %v891, %v899
        %v908 = vmax.f32 %v892, %v900
        %v909 = vmax.f32 %v893, %v901
        %v910 = vmax.f32 %v894, %v902
        %v911 = vmax.f32 %v895, %v903
        %v912 = vld [vmem:[%s844] sm:$0xff]
        %v913 = vld [vmem:[%s844 + $0x10] sm:$0xff]
        %v914 = vld [vmem:[%s844 + $0x20] sm:$0xff]
        %v915 = vld [vmem:[%s844 + $0x30] sm:$0xff]
        %v916 = vld [vmem:[%s844 + $0x40] sm:$0xff]
        %v917 = vld [vmem:[%s844 + $0x50] sm:$0xff]
        %v918 = vld [vmem:[%s844 + $0x60] sm:$0xff]
        %v919 = vld [vmem:[%s844 + $0x70] sm:$0xff]
        %v920 = vmax.f32 %v904, %v912
        %v921 = vmax.f32 %v905, %v913
        %v922 = vmax.f32 %v906, %v914
        %v923 = vmax.f32 %v907, %v915
        %v924 = vmax.f32 %v908, %v916
        %v925 = vmax.f32 %v909, %v917
        %v926 = vmax.f32 %v910, %v918
        %v927 = vmax.f32 %v911, %v919
        %v928 = vld [vmem:[%s835] sm:$0xff]
        %v929 = vld [vmem:[%s835 + $0x10] sm:$0xff]
        %v930 = vld [vmem:[%s835 + $0x20] sm:$0xff]
        %v931 = vld [vmem:[%s835 + $0x30] sm:$0xff]
        %v932 = vld [vmem:[%s835 + $0x40] sm:$0xff]
        %v933 = vld [vmem:[%s835 + $0x50] sm:$0xff]
        %v934 = vld [vmem:[%s835 + $0x60] sm:$0xff]
        %v935 = vld [vmem:[%s835 + $0x70] sm:$0xff]
        %v936 = vmax.f32 %v920, %v928
        %v937 = vmax.f32 %v921, %v929
        %v938 = vmax.f32 %v922, %v930
        %v939 = vmax.f32 %v923, %v931
        %v940 = vmax.f32 %v924, %v932
        %v941 = vmax.f32 %v925, %v933
        %v942 = vmax.f32 %v926, %v934
        %v943 = vmax.f32 %v927, %v935
        %v944 = vld [vmem:[%s844 + $0x1] sm:$0xff]
        %v945 = vld [vmem:[%s844 + $0x11] sm:$0xff]
        %v946 = vld [vmem:[%s844 + $0x21] sm:$0xff]
        %v947 = vld [vmem:[%s844 + $0x31] sm:$0xff]
        %v948 = vld [vmem:[%s844 + $0x41] sm:$0xff]
        %v949 = vld [vmem:[%s844 + $0x51] sm:$0xff]
        %v950 = vld [vmem:[%s844 + $0x61] sm:$0xff]
        %v951 = vld [vmem:[%s844 + $0x71] sm:$0xff]
        %v952 = vmax.f32 %v936, %v944
        %v953 = vmax.f32 %v937, %v945
        %v954 = vmax.f32 %v938, %v946
        %v955 = vmax.f32 %v939, %v947
        %v956 = vmax.f32 %v940, %v948
        %v957 = vmax.f32 %v941, %v949
        %v958 = vmax.f32 %v942, %v950
        %v959 = vmax.f32 %v943, %v951
        %v960 = vld [vmem:[%s862] sm:$0xff]
        %v961 = vld [vmem:[%s862 + $0x10] sm:$0xff]
        %v962 = vld [vmem:[%s862 + $0x20] sm:$0xff]
        %v963 = vld [vmem:[%s862 + $0x30] sm:$0xff]
        %v964 = vld [vmem:[%s862 + $0x40] sm:$0xff]
        %v965 = vld [vmem:[%s862 + $0x50] sm:$0xff]
        %v966 = vld [vmem:[%s862 + $0x60] sm:$0xff]
        %v967 = vld [vmem:[%s862 + $0x70] sm:$0xff]
        %v968 = vmax.f32 %v952, %v960
        %v969 = vmax.f32 %v953, %v961
        %v970 = vmax.f32 %v954, %v962
        %v971 = vmax.f32 %v955, %v963
        %v972 = vmax.f32 %v956, %v964
        %v973 = vmax.f32 %v957, %v965
        %v974 = vmax.f32 %v958, %v966
        %v975 = vmax.f32 %v959, %v967
        %v976 = vld [vmem:[%s853] sm:$0xff]
        %v977 = vld [vmem:[%s853 + $0x10] sm:$0xff]
        %v978 = vld [vmem:[%s853 + $0x20] sm:$0xff]
        %v979 = vld [vmem:[%s853 + $0x30] sm:$0xff]
        %v980 = vld [vmem:[%s853 + $0x40] sm:$0xff]
        %v981 = vld [vmem:[%s853 + $0x50] sm:$0xff]
        %v982 = vld [vmem:[%s853 + $0x60] sm:$0xff]
        %v983 = vld [vmem:[%s853 + $0x70] sm:$0xff]
        %v984 = vmax.f32 %v968, %v976
        %v985 = vmax.f32 %v969, %v977
        %v986 = vmax.f32 %v970, %v978
        %v987 = vmax.f32 %v971, %v979
        %v988 = vmax.f32 %v972, %v980
        %v989 = vmax.f32 %v973, %v981
        %v990 = vmax.f32 %v974, %v982
        %v991 = vmax.f32 %v975, %v983
        %v992 = vld [vmem:[%s862 + $0x1] sm:$0xff]
        %v993 = vld [vmem:[%s862 + $0x11] sm:$0xff]
        %v994 = vld [vmem:[%s862 + $0x21] sm:$0xff]
        %v995 = vld [vmem:[%s862 + $0x31] sm:$0xff]
        %v996 = vld [vmem:[%s862 + $0x41] sm:$0xff]
        %v997 = vld [vmem:[%s862 + $0x51] sm:$0xff]
        %v998 = vld [vmem:[%s862 + $0x61] sm:$0xff]
        %v999 = vld [vmem:[%s862 + $0x71] sm:$0xff]
        %v1000 = vmax.f32 %v984, %v992
        %v1001 = vmax.f32 %v985, %v993
        %v1002 = vmax.f32 %v986, %v994
        %v1003 = vmax.f32 %v987, %v995
        %v1004 = vmax.f32 %v988, %v996
        %v1005 = vmax.f32 %v989, %v997
        %v1006 = vmax.f32 %v990, %v998
        %v1007 = vmax.f32 %v991, %v999
        %1008 = vst.msk [vmem:[%s309] sm:$0xff] %vm761, %v1000
        %1009 = vst.msk [vmem:[%s309 + $0x8] sm:$0xff] %vm761, %v1001
        %1010 = vst.msk [vmem:[%s309 + $0x10] sm:$0xff] %vm761, %v1002
        %1011 = vst.msk [vmem:[%s309 + $0x18] sm:$0xff] %vm761, %v1003
        %1012 = vst.msk [vmem:[%s309 + $0x20] sm:$0xff] %vm761, %v1004
        %1013 = vst.msk [vmem:[%s309 + $0x28] sm:$0xff] %vm761, %v1005
        %1014 = vst.msk [vmem:[%s309 + $0x30] sm:$0xff] %vm761, %v1006
        %1015 = vst.msk [vmem:[%s309 + $0x38] sm:$0xff] %vm761, %v1007
        %1016 = vst.msk [vmem:[#allocation3] sm:$0xff] %vm761, 0.0
        %vm1017 = vcmask 517120
        %1018 = vst.msk [vmem:[#allocation3 + $0x8] sm:$0x3] %vm1017, 0.0
        %1019 = vst.msk [vmem:[#allocation3 + $0x10] sm:$0xff] %vm761, 0.0
        %1020 = vst.msk [vmem:[#allocation3 + $0x18] sm:$0x3] %vm1017, 0.0
        %1021 = vst.msk [vmem:[#allocation3 + $0x20] sm:$0xff] %vm761, 0.0
        %1022 = vst.msk [vmem:[#allocation3 + $0x28] sm:$0x3] %vm1017, 0.0
        %1023 = vst.msk [vmem:[#allocation3 + $0x30] sm:$0xff] %vm761, 0.0
        %1024 = vst.msk [vmem:[#allocation3 + $0x38] sm:$0x3] %vm1017, 0.0
        %1025 = vst.msk [vmem:[#allocation3 + $0x40] sm:$0xff] %vm761, 0.0
        %1026 = vst.msk [vmem:[#allocation3 + $0x48] sm:$0x3] %vm1017, 0.0
        %1027 = vst.msk [vmem:[#allocation3 + $0x50] sm:$0xff] %vm761, 0.0
        %1028 = vst.msk [vmem:[#allocation3 + $0x58] sm:$0x3] %vm1017, 0.0
        %1029 = vst.msk [vmem:[#allocation3 + $0x60] sm:$0xff] %vm761, 0.0
        %1030 = vst.msk [vmem:[#allocation3 + $0x68] sm:$0x3] %vm1017, 0.0
        %1031 = vst.msk [vmem:[#allocation3 + $0x70] sm:$0xff] %vm761, 0.0
        %1032 = vst.msk [vmem:[#allocation3 + $0x78] sm:$0x3] %vm1017, 0.0
        %1033 = vst.msk [vmem:[#allocation3 + $0x80] sm:$0xff] %vm761, 0.0
        %1034 = vst.msk [vmem:[#allocation3 + $0x88] sm:$0x3] %vm1017, 0.0
        %1035 = vst.msk [vmem:[#allocation3 + $0x90] sm:$0xff] %vm761, 0.0
        %1036 = vst.msk [vmem:[#allocation3 + $0x98] sm:$0x3] %vm1017, 0.0
        %s1037 = scalar_lea.vmem [#allocation3], 16
        %1038 = vst.msk [vmem:[%s1037 + $0x1] sm:$0xff] %vm761, %v1000
        %1039 = vst.msk [vmem:[%s1037 + $0x11] sm:$0xff] %vm761, %v1001
        %1040 = vst.msk [vmem:[%s1037 + $0x21] sm:$0xff] %vm761, %v1002
        %1041 = vst.msk [vmem:[%s1037 + $0x31] sm:$0xff] %vm761, %v1003
        %1042 = vst.msk [vmem:[%s1037 + $0x41] sm:$0xff] %vm761, %v1004
        %1043 = vst.msk [vmem:[%s1037 + $0x51] sm:$0xff] %vm761, %v1005
        %1044 = vst.msk [vmem:[%s1037 + $0x61] sm:$0xff] %vm761, %v1006
        %1045 = vst.msk [vmem:[%s1037 + $0x71] sm:$0xff] %vm761, %v1007
        %v1046 = vld [vmem:[#allocation3] sm:$0xff]
        %v1047 = vld [vmem:[#allocation3 + $0x10] sm:$0xff]
        %v1048 = vld [vmem:[#allocation3 + $0x20] sm:$0xff]
        %v1049 = vld [vmem:[#allocation3 + $0x30] sm:$0xff]
        %v1050 = vld [vmem:[#allocation3 + $0x40] sm:$0xff]
        %v1051 = vld [vmem:[#allocation3 + $0x50] sm:$0xff]
        %v1052 = vld [vmem:[#allocation3 + $0x60] sm:$0xff]
        %v1053 = vld [vmem:[#allocation3 + $0x70] sm:$0xff]
        %v1054 = vld [vmem:[%s3] sm:$0xff]
        %v1055 = vld [vmem:[%s3 + $0x8] sm:$0xff]
        %v1056 = vld [vmem:[%s3 + $0x10] sm:$0xff]
        %v1057 = vld [vmem:[%s3 + $0x18] sm:$0xff]
        %v1058 = vld [vmem:[%s3 + $0x20] sm:$0xff]
        %v1059 = vld [vmem:[%s3 + $0x28] sm:$0xff]
        %v1060 = vld [vmem:[%s3 + $0x30] sm:$0xff]
        %v1061 = vld [vmem:[%s3 + $0x38] sm:$0xff]
        %v1062 = vld [vmem:[#allocation3 + $0x1] sm:$0xff]
        %v1063 = vld [vmem:[#allocation3 + $0x11] sm:$0xff]
        %v1064 = vld [vmem:[#allocation3 + $0x21] sm:$0xff]
        %v1065 = vld [vmem:[#allocation3 + $0x31] sm:$0xff]
        %v1066 = vld [vmem:[#allocation3 + $0x41] sm:$0xff]
        %v1067 = vld [vmem:[#allocation3 + $0x51] sm:$0xff]
        %v1068 = vld [vmem:[#allocation3 + $0x61] sm:$0xff]
        %v1069 = vld [vmem:[#allocation3 + $0x71] sm:$0xff]
        %s1070 = scalar_lea.vmem %s3, 64
        %v1071 = vld [vmem:[%s1070] sm:$0xff]
        %v1072 = vld [vmem:[%s1070 + $0x8] sm:$0xff]
        %v1073 = vld [vmem:[%s1070 + $0x10] sm:$0xff]
        %v1074 = vld [vmem:[%s1070 + $0x18] sm:$0xff]
        %v1075 = vld [vmem:[%s1070 + $0x20] sm:$0xff]
        %v1076 = vld [vmem:[%s1070 + $0x28] sm:$0xff]
        %v1077 = vld [vmem:[%s1070 + $0x30] sm:$0xff]
        %v1078 = vld [vmem:[%s1070 + $0x38] sm:$0xff]
        %v1080 = vsel %vm761, %v1062, 0
        %v1083 = vsel %vm761, %v1063, 0
        %v1086 = vsel %vm761, %v1064, 0
        %v1089 = vsel %vm761, %v1065, 0
        %v1092 = vsel %vm761, %v1066, 0
        %v1095 = vsel %vm761, %v1067, 0
        %v1098 = vsel %vm761, %v1068, 0
        %v1101 = vsel %vm761, %v1069, 0
        %1103 = vmatpush.msra.mxu0 0.0
        %1104 = vmatpush.msra.mxu0 0.0
        %1105 = vmatpush.msra.mxu0 0.0
        %1106 = vmatpush.msra.mxu0 0.0
        %1107 = vmatpush.msra.mxu0 0.0
        %1108 = vmatpush.msra.mxu0 0.0
        %1109 = vmatpush.msra.mxu0 0.0
        %1110 = vmatpush.msra.mxu0 0.0
        %1111 = vmatpush.msra.mxu0 %v1078
        %1112 = vmatpush.msra.mxu0 %v1077
        %1113 = vmatpush.msra.mxu0 %v1076
        %1114 = vmatpush.msra.mxu0 %v1075
        %1115 = vmatpush.msra.mxu0 %v1074
        %1116 = vmatpush.msra.mxu0 %v1073
        %1117 = vmatpush.msra.mxu0 %v1072
        %1118 = vmatpush.msra.mxu0 %v1071
        %1119 = vmatmul.f32.gmra.mxu0 %v1080
        %v1120 = vpop.f32.mrf.mxu0
        %v1121 = vadd.f32 0.0, %v1120
        %1122 = vmatmul.f32.gmra.mxu0 %v1083
        %v1123 = vpop.f32.mrf.mxu0
        %v1124 = vadd.f32 0.0, %v1123
        %1125 = vmatmul.f32.gmra.mxu0 %v1086
        %v1126 = vpop.f32.mrf.mxu0
        %v1127 = vadd.f32 0.0, %v1126
        %1128 = vmatmul.f32.gmra.mxu0 %v1089
        %v1129 = vpop.f32.mrf.mxu0
        %v1130 = vadd.f32 0.0, %v1129
        %1131 = vmatmul.f32.gmra.mxu0 %v1092
        %v1132 = vpop.f32.mrf.mxu0
        %v1133 = vadd.f32 0.0, %v1132
        %1134 = vmatmul.f32.gmra.mxu0 %v1095
        %v1135 = vpop.f32.mrf.mxu0
        %v1136 = vadd.f32 0.0, %v1135
        %1137 = vmatmul.f32.gmra.mxu0 %v1098
        %v1138 = vpop.f32.mrf.mxu0
        %v1139 = vadd.f32 0.0, %v1138
        %1140 = vmatmul.f32.gmra.mxu0 %v1101
        %v1141 = vpop.f32.mrf.mxu0
        %v1142 = vadd.f32 0.0, %v1141
        %1143 = vdwg.mxu0
        %v1145 = vsel %vm761, %v1046, 0
        %v1148 = vsel %vm761, %v1047, 0
        %v1151 = vsel %vm761, %v1048, 0
        %v1154 = vsel %vm761, %v1049, 0
        %v1157 = vsel %vm761, %v1050, 0
        %v1160 = vsel %vm761, %v1051, 0
        %v1163 = vsel %vm761, %v1052, 0
        %v1166 = vsel %vm761, %v1053, 0
        %1168 = vmatpush.msra.mxu0 0.0
        %1169 = vmatpush.msra.mxu0 0.0
        %1170 = vmatpush.msra.mxu0 0.0
        %1171 = vmatpush.msra.mxu0 0.0
        %1172 = vmatpush.msra.mxu0 0.0
        %1173 = vmatpush.msra.mxu0 0.0
        %1174 = vmatpush.msra.mxu0 0.0
        %1175 = vmatpush.msra.mxu0 0.0
        %1176 = vmatpush.msra.mxu0 %v1061
        %1177 = vmatpush.msra.mxu0 %v1060
        %1178 = vmatpush.msra.mxu0 %v1059
        %1179 = vmatpush.msra.mxu0 %v1058
        %1180 = vmatpush.msra.mxu0 %v1057
        %1181 = vmatpush.msra.mxu0 %v1056
        %1182 = vmatpush.msra.mxu0 %v1055
        %1183 = vmatpush.msra.mxu0 %v1054
        %1184 = vmatmul.f32.gmra.mxu0 %v1145
        %v1185 = vpop.f32.mrf.mxu0
        %v1186 = vadd.f32 %v1121, %v1185
        %1187 = vmatmul.f32.gmra.mxu0 %v1148
        %v1188 = vpop.f32.mrf.mxu0
        %v1189 = vadd.f32 %v1124, %v1188
        %1190 = vmatmul.f32.gmra.mxu0 %v1151
        %v1191 = vpop.f32.mrf.mxu0
        %v1192 = vadd.f32 %v1127, %v1191
        %1193 = vmatmul.f32.gmra.mxu0 %v1154
        %v1194 = vpop.f32.mrf.mxu0
        %v1195 = vadd.f32 %v1130, %v1194
        %1196 = vmatmul.f32.gmra.mxu0 %v1157
        %v1197 = vpop.f32.mrf.mxu0
        %v1198 = vadd.f32 %v1133, %v1197
        %1199 = vmatmul.f32.gmra.mxu0 %v1160
        %v1200 = vpop.f32.mrf.mxu0
        %v1201 = vadd.f32 %v1136, %v1200
        %1202 = vmatmul.f32.gmra.mxu0 %v1163
        %v1203 = vpop.f32.mrf.mxu0
        %v1204 = vadd.f32 %v1139, %v1203
        %1205 = vmatmul.f32.gmra.mxu0 %v1166
        %v1206 = vpop.f32.mrf.mxu0
        %v1207 = vadd.f32 %v1142, %v1206
        %1208 = vdwg.mxu0
        %v1209 = vld [vmem:[#allocation3 + $0x2] sm:$0xff]
        %v1210 = vld [vmem:[#allocation3 + $0x12] sm:$0xff]
        %v1211 = vld [vmem:[#allocation3 + $0x22] sm:$0xff]
        %v1212 = vld [vmem:[#allocation3 + $0x32] sm:$0xff]
        %v1213 = vld [vmem:[#allocation3 + $0x42] sm:$0xff]
        %v1214 = vld [vmem:[#allocation3 + $0x52] sm:$0xff]
        %v1215 = vld [vmem:[#allocation3 + $0x62] sm:$0xff]
        %v1216 = vld [vmem:[#allocation3 + $0x72] sm:$0xff]
        %s1217 = scalar_lea.vmem %s3, 128
        %v1218 = vld [vmem:[%s1217] sm:$0xff]
        %v1219 = vld [vmem:[%s1217 + $0x8] sm:$0xff]
        %v1220 = vld [vmem:[%s1217 + $0x10] sm:$0xff]
        %v1221 = vld [vmem:[%s1217 + $0x18] sm:$0xff]
        %v1222 = vld [vmem:[%s1217 + $0x20] sm:$0xff]
        %v1223 = vld [vmem:[%s1217 + $0x28] sm:$0xff]
        %v1224 = vld [vmem:[%s1217 + $0x30] sm:$0xff]
        %v1225 = vld [vmem:[%s1217 + $0x38] sm:$0xff]
        %v1227 = vsel %vm761, %v1209, 0
        %v1230 = vsel %vm761, %v1210, 0
        %v1233 = vsel %vm761, %v1211, 0
        %v1236 = vsel %vm761, %v1212, 0
        %v1239 = vsel %vm761, %v1213, 0
        %v1242 = vsel %vm761, %v1214, 0
        %v1245 = vsel %vm761, %v1215, 0
        %v1248 = vsel %vm761, %v1216, 0
        %1250 = vmatpush.msra.mxu0 0.0
        %1251 = vmatpush.msra.mxu0 0.0
        %1252 = vmatpush.msra.mxu0 0.0
        %1253 = vmatpush.msra.mxu0 0.0
        %1254 = vmatpush.msra.mxu0 0.0
        %1255 = vmatpush.msra.mxu0 0.0
        %1256 = vmatpush.msra.mxu0 0.0
        %1257 = vmatpush.msra.mxu0 0.0
        %1258 = vmatpush.msra.mxu0 %v1225
        %1259 = vmatpush.msra.mxu0 %v1224
        %1260 = vmatpush.msra.mxu0 %v1223
        %1261 = vmatpush.msra.mxu0 %v1222
        %1262 = vmatpush.msra.mxu0 %v1221
        %1263 = vmatpush.msra.mxu0 %v1220
        %1264 = vmatpush.msra.mxu0 %v1219
        %1265 = vmatpush.msra.mxu0 %v1218
        %1266 = vmatmul.f32.gmra.mxu0 %v1227
        %v1267 = vpop.f32.mrf.mxu0
        %v1268 = vadd.f32 0.0, %v1267
        %1269 = vmatmul.f32.gmra.mxu0 %v1230
        %v1270 = vpop.f32.mrf.mxu0
        %v1271 = vadd.f32 0.0, %v1270
        %1272 = vmatmul.f32.gmra.mxu0 %v1233
        %v1273 = vpop.f32.mrf.mxu0
        %v1274 = vadd.f32 0.0, %v1273
        %1275 = vmatmul.f32.gmra.mxu0 %v1236
        %v1276 = vpop.f32.mrf.mxu0
        %v1277 = vadd.f32 0.0, %v1276
        %1278 = vmatmul.f32.gmra.mxu0 %v1239
        %v1279 = vpop.f32.mrf.mxu0
        %v1280 = vadd.f32 0.0, %v1279
        %1281 = vmatmul.f32.gmra.mxu0 %v1242
        %v1282 = vpop.f32.mrf.mxu0
        %v1283 = vadd.f32 0.0, %v1282
        %1284 = vmatmul.f32.gmra.mxu0 %v1245
        %v1285 = vpop.f32.mrf.mxu0
        %v1286 = vadd.f32 0.0, %v1285
        %1287 = vmatmul.f32.gmra.mxu0 %v1248
        %v1288 = vpop.f32.mrf.mxu0
        %v1289 = vadd.f32 0.0, %v1288
        %1290 = vdwg.mxu0
        %v1291 = vadd.f32 %v1186, %v1268
        %v1292 = vadd.f32 %v1189, %v1271
        %v1293 = vadd.f32 %v1192, %v1274
        %v1294 = vadd.f32 %v1195, %v1277
        %v1295 = vadd.f32 %v1198, %v1280
        %v1296 = vadd.f32 %v1201, %v1283
        %v1297 = vadd.f32 %v1204, %v1286
        %v1298 = vadd.f32 %v1207, %v1289
        %v1299 = vld [vmem:[%s1037] sm:$0xff]
        %v1300 = vld [vmem:[%s1037 + $0x10] sm:$0xff]
        %v1301 = vld [vmem:[%s1037 + $0x20] sm:$0xff]
        %v1302 = vld [vmem:[%s1037 + $0x30] sm:$0xff]
        %v1303 = vld [vmem:[%s1037 + $0x40] sm:$0xff]
        %v1304 = vld [vmem:[%s1037 + $0x50] sm:$0xff]
        %v1305 = vld [vmem:[%s1037 + $0x60] sm:$0xff]
        %v1306 = vld [vmem:[%s1037 + $0x70] sm:$0xff]
        %s1307 = scalar_lea.vmem %s3, 192
        %v1308 = vld [vmem:[%s1307] sm:$0xff]
        %v1309 = vld [vmem:[%s1307 + $0x8] sm:$0xff]
        %v1310 = vld [vmem:[%s1307 + $0x10] sm:$0xff]
        %v1311 = vld [vmem:[%s1307 + $0x18] sm:$0xff]
        %v1312 = vld [vmem:[%s1307 + $0x20] sm:$0xff]
        %v1313 = vld [vmem:[%s1307 + $0x28] sm:$0xff]
        %v1314 = vld [vmem:[%s1307 + $0x30] sm:$0xff]
        %v1315 = vld [vmem:[%s1307 + $0x38] sm:$0xff]
        %v1317 = vsel %vm761, %v1299, 0
        %v1320 = vsel %vm761, %v1300, 0
        %v1323 = vsel %vm761, %v1301, 0
        %v1326 = vsel %vm761, %v1302, 0
        %v1329 = vsel %vm761, %v1303, 0
        %v1332 = vsel %vm761, %v1304, 0
        %v1335 = vsel %vm761, %v1305, 0
        %v1338 = vsel %vm761, %v1306, 0
        %1340 = vmatpush.msra.mxu0 0.0
        %1341 = vmatpush.msra.mxu0 0.0
        %1342 = vmatpush.msra.mxu0 0.0
        %1343 = vmatpush.msra.mxu0 0.0
        %1344 = vmatpush.msra.mxu0 0.0
        %1345 = vmatpush.msra.mxu0 0.0
        %1346 = vmatpush.msra.mxu0 0.0
        %1347 = vmatpush.msra.mxu0 0.0
        %1348 = vmatpush.msra.mxu0 %v1315
        %1349 = vmatpush.msra.mxu0 %v1314
        %1350 = vmatpush.msra.mxu0 %v1313
        %1351 = vmatpush.msra.mxu0 %v1312
        %1352 = vmatpush.msra.mxu0 %v1311
        %1353 = vmatpush.msra.mxu0 %v1310
        %1354 = vmatpush.msra.mxu0 %v1309
        %1355 = vmatpush.msra.mxu0 %v1308
        %1356 = vmatmul.f32.gmra.mxu0 %v1317
        %v1357 = vpop.f32.mrf.mxu0
        %v1358 = vadd.f32 0.0, %v1357
        %1359 = vmatmul.f32.gmra.mxu0 %v1320
        %v1360 = vpop.f32.mrf.mxu0
        %v1361 = vadd.f32 0.0, %v1360
        %1362 = vmatmul.f32.gmra.mxu0 %v1323
        %v1363 = vpop.f32.mrf.mxu0
        %v1364 = vadd.f32 0.0, %v1363
        %1365 = vmatmul.f32.gmra.mxu0 %v1326
        %v1366 = vpop.f32.mrf.mxu0
        %v1367 = vadd.f32 0.0, %v1366
        %1368 = vmatmul.f32.gmra.mxu0 %v1329
        %v1369 = vpop.f32.mrf.mxu0
        %v1370 = vadd.f32 0.0, %v1369
        %1371 = vmatmul.f32.gmra.mxu0 %v1332
        %v1372 = vpop.f32.mrf.mxu0
        %v1373 = vadd.f32 0.0, %v1372
        %1374 = vmatmul.f32.gmra.mxu0 %v1335
        %v1375 = vpop.f32.mrf.mxu0
        %v1376 = vadd.f32 0.0, %v1375
        %1377 = vmatmul.f32.gmra.mxu0 %v1338
        %v1378 = vpop.f32.mrf.mxu0
        %v1379 = vadd.f32 0.0, %v1378
        %1380 = vdwg.mxu0
        %v1381 = vadd.f32 %v1291, %v1358
        %v1382 = vadd.f32 %v1292, %v1361
        %v1383 = vadd.f32 %v1293, %v1364
        %v1384 = vadd.f32 %v1294, %v1367
        %v1385 = vadd.f32 %v1295, %v1370
        %v1386 = vadd.f32 %v1296, %v1373
        %v1387 = vadd.f32 %v1297, %v1376
        %v1388 = vadd.f32 %v1298, %v1379
        %v1389 = vld [vmem:[%s1037 + $0x1] sm:$0xff]
        %v1390 = vld [vmem:[%s1037 + $0x11] sm:$0xff]
        %v1391 = vld [vmem:[%s1037 + $0x21] sm:$0xff]
        %v1392 = vld [vmem:[%s1037 + $0x31] sm:$0xff]
        %v1393 = vld [vmem:[%s1037 + $0x41] sm:$0xff]
        %v1394 = vld [vmem:[%s1037 + $0x51] sm:$0xff]
        %v1395 = vld [vmem:[%s1037 + $0x61] sm:$0xff]
        %v1396 = vld [vmem:[%s1037 + $0x71] sm:$0xff]
        %s1397 = scalar_lea.vmem %s3, 256
        %v1398 = vld [vmem:[%s1397] sm:$0xff]
        %v1399 = vld [vmem:[%s1397 + $0x8] sm:$0xff]
        %v1400 = vld [vmem:[%s1397 + $0x10] sm:$0xff]
        %v1401 = vld [vmem:[%s1397 + $0x18] sm:$0xff]
        %v1402 = vld [vmem:[%s1397 + $0x20] sm:$0xff]
        %v1403 = vld [vmem:[%s1397 + $0x28] sm:$0xff]
        %v1404 = vld [vmem:[%s1397 + $0x30] sm:$0xff]
        %v1405 = vld [vmem:[%s1397 + $0x38] sm:$0xff]
        %v1407 = vsel %vm761, %v1389, 0
        %v1410 = vsel %vm761, %v1390, 0
        %v1413 = vsel %vm761, %v1391, 0
        %v1416 = vsel %vm761, %v1392, 0
        %v1419 = vsel %vm761, %v1393, 0
        %v1422 = vsel %vm761, %v1394, 0
        %v1425 = vsel %vm761, %v1395, 0
        %v1428 = vsel %vm761, %v1396, 0
        %1430 = vmatpush.msra.mxu0 0.0
        %1431 = vmatpush.msra.mxu0 0.0
        %1432 = vmatpush.msra.mxu0 0.0
        %1433 = vmatpush.msra.mxu0 0.0
        %1434 = vmatpush.msra.mxu0 0.0
        %1435 = vmatpush.msra.mxu0 0.0
        %1436 = vmatpush.msra.mxu0 0.0
        %1437 = vmatpush.msra.mxu0 0.0
        %1438 = vmatpush.msra.mxu0 %v1405
        %1439 = vmatpush.msra.mxu0 %v1404
        %1440 = vmatpush.msra.mxu0 %v1403
        %1441 = vmatpush.msra.mxu0 %v1402
        %1442 = vmatpush.msra.mxu0 %v1401
        %1443 = vmatpush.msra.mxu0 %v1400
        %1444 = vmatpush.msra.mxu0 %v1399
        %1445 = vmatpush.msra.mxu0 %v1398
        %1446 = vmatmul.f32.gmra.mxu0 %v1407
        %v1447 = vpop.f32.mrf.mxu0
        %v1448 = vadd.f32 0.0, %v1447
        %1449 = vmatmul.f32.gmra.mxu0 %v1410
        %v1450 = vpop.f32.mrf.mxu0
        %v1451 = vadd.f32 0.0, %v1450
        %1452 = vmatmul.f32.gmra.mxu0 %v1413
        %v1453 = vpop.f32.mrf.mxu0
        %v1454 = vadd.f32 0.0, %v1453
        %1455 = vmatmul.f32.gmra.mxu0 %v1416
        %v1456 = vpop.f32.mrf.mxu0
        %v1457 = vadd.f32 0.0, %v1456
        %1458 = vmatmul.f32.gmra.mxu0 %v1419
        %v1459 = vpop.f32.mrf.mxu0
        %v1460 = vadd.f32 0.0, %v1459
        %1461 = vmatmul.f32.gmra.mxu0 %v1422
        %v1462 = vpop.f32.mrf.mxu0
        %v1463 = vadd.f32 0.0, %v1462
        %1464 = vmatmul.f32.gmra.mxu0 %v1425
        %v1465 = vpop.f32.mrf.mxu0
        %v1466 = vadd.f32 0.0, %v1465
        %1467 = vmatmul.f32.gmra.mxu0 %v1428
        %v1468 = vpop.f32.mrf.mxu0
        %v1469 = vadd.f32 0.0, %v1468
        %1470 = vdwg.mxu0
        %v1471 = vadd.f32 %v1381, %v1448
        %v1472 = vadd.f32 %v1382, %v1451
        %v1473 = vadd.f32 %v1383, %v1454
        %v1474 = vadd.f32 %v1384, %v1457
        %v1475 = vadd.f32 %v1385, %v1460
        %v1476 = vadd.f32 %v1386, %v1463
        %v1477 = vadd.f32 %v1387, %v1466
        %v1478 = vadd.f32 %v1388, %v1469
        %v1479 = vld [vmem:[%s1037 + $0x2] sm:$0xff]
        %v1480 = vld [vmem:[%s1037 + $0x12] sm:$0xff]
        %v1481 = vld [vmem:[%s1037 + $0x22] sm:$0xff]
        %v1482 = vld [vmem:[%s1037 + $0x32] sm:$0xff]
        %v1483 = vld [vmem:[%s1037 + $0x42] sm:$0xff]
        %v1484 = vld [vmem:[%s1037 + $0x52] sm:$0xff]
        %v1485 = vld [vmem:[%s1037 + $0x62] sm:$0xff]
        %v1486 = vld [vmem:[%s1037 + $0x72] sm:$0xff]
        %s1487 = scalar_lea.vmem %s3, 320
        %v1488 = vld [vmem:[%s1487] sm:$0xff]
        %v1489 = vld [vmem:[%s1487 + $0x8] sm:$0xff]
        %v1490 = vld [vmem:[%s1487 + $0x10] sm:$0xff]
        %v1491 = vld [vmem:[%s1487 + $0x18] sm:$0xff]
        %v1492 = vld [vmem:[%s1487 + $0x20] sm:$0xff]
        %v1493 = vld [vmem:[%s1487 + $0x28] sm:$0xff]
        %v1494 = vld [vmem:[%s1487 + $0x30] sm:$0xff]
        %v1495 = vld [vmem:[%s1487 + $0x38] sm:$0xff]
        %v1497 = vsel %vm761, %v1479, 0
        %v1500 = vsel %vm761, %v1480, 0
        %v1503 = vsel %vm761, %v1481, 0
        %v1506 = vsel %vm761, %v1482, 0
        %v1509 = vsel %vm761, %v1483, 0
        %v1512 = vsel %vm761, %v1484, 0
        %v1515 = vsel %vm761, %v1485, 0
        %v1518 = vsel %vm761, %v1486, 0
        %1520 = vmatpush.msra.mxu0 0.0
        %1521 = vmatpush.msra.mxu0 0.0
        %1522 = vmatpush.msra.mxu0 0.0
        %1523 = vmatpush.msra.mxu0 0.0
        %1524 = vmatpush.msra.mxu0 0.0
        %1525 = vmatpush.msra.mxu0 0.0
        %1526 = vmatpush.msra.mxu0 0.0
        %1527 = vmatpush.msra.mxu0 0.0
        %1528 = vmatpush.msra.mxu0 %v1495
        %1529 = vmatpush.msra.mxu0 %v1494
        %1530 = vmatpush.msra.mxu0 %v1493
        %1531 = vmatpush.msra.mxu0 %v1492
        %1532 = vmatpush.msra.mxu0 %v1491
        %1533 = vmatpush.msra.mxu0 %v1490
        %1534 = vmatpush.msra.mxu0 %v1489
        %1535 = vmatpush.msra.mxu0 %v1488
        %1536 = vmatmul.f32.gmra.mxu0 %v1497
        %v1537 = vpop.f32.mrf.mxu0
        %v1538 = vadd.f32 0.0, %v1537
        %1539 = vmatmul.f32.gmra.mxu0 %v1500
        %v1540 = vpop.f32.mrf.mxu0
        %v1541 = vadd.f32 0.0, %v1540
        %1542 = vmatmul.f32.gmra.mxu0 %v1503
        %v1543 = vpop.f32.mrf.mxu0
        %v1544 = vadd.f32 0.0, %v1543
        %1545 = vmatmul.f32.gmra.mxu0 %v1506
        %v1546 = vpop.f32.mrf.mxu0
        %v1547 = vadd.f32 0.0, %v1546
        %1548 = vmatmul.f32.gmra.mxu0 %v1509
        %v1549 = vpop.f32.mrf.mxu0
        %v1550 = vadd.f32 0.0, %v1549
        %1551 = vmatmul.f32.gmra.mxu0 %v1512
        %v1552 = vpop.f32.mrf.mxu0
        %v1553 = vadd.f32 0.0, %v1552
        %1554 = vmatmul.f32.gmra.mxu0 %v1515
        %v1555 = vpop.f32.mrf.mxu0
        %v1556 = vadd.f32 0.0, %v1555
        %1557 = vmatmul.f32.gmra.mxu0 %v1518
        %v1558 = vpop.f32.mrf.mxu0
        %v1559 = vadd.f32 0.0, %v1558
        %1560 = vdwg.mxu0
        %v1561 = vadd.f32 %v1471, %v1538
        %v1562 = vadd.f32 %v1472, %v1541
        %v1563 = vadd.f32 %v1473, %v1544
        %v1564 = vadd.f32 %v1474, %v1547
        %v1565 = vadd.f32 %v1475, %v1550
        %v1566 = vadd.f32 %v1476, %v1553
        %v1567 = vadd.f32 %v1477, %v1556
        %v1568 = vadd.f32 %v1478, %v1559
        %s1569 = scalar_lea.vmem [#allocation3], 32
        %v1570 = vld [vmem:[%s1569] sm:$0xff]
        %v1571 = vld [vmem:[%s1569 + $0x10] sm:$0xff]
        %v1572 = vld [vmem:[%s1569 + $0x20] sm:$0xff]
        %v1573 = vld [vmem:[%s1569 + $0x30] sm:$0xff]
        %v1574 = vld [vmem:[%s1569 + $0x40] sm:$0xff]
        %v1575 = vld [vmem:[%s1569 + $0x50] sm:$0xff]
        %v1576 = vld [vmem:[%s1569 + $0x60] sm:$0xff]
        %v1577 = vld [vmem:[%s1569 + $0x70] sm:$0xff]
        %s1578 = scalar_lea.vmem %s3, 384
        %v1579 = vld [vmem:[%s1578] sm:$0xff]
        %v1580 = vld [vmem:[%s1578 + $0x8] sm:$0xff]
        %v1581 = vld [vmem:[%s1578 + $0x10] sm:$0xff]
        %v1582 = vld [vmem:[%s1578 + $0x18] sm:$0xff]
        %v1583 = vld [vmem:[%s1578 + $0x20] sm:$0xff]
        %v1584 = vld [vmem:[%s1578 + $0x28] sm:$0xff]
        %v1585 = vld [vmem:[%s1578 + $0x30] sm:$0xff]
        %v1586 = vld [vmem:[%s1578 + $0x38] sm:$0xff]
        %v1588 = vsel %vm761, %v1570, 0
        %v1591 = vsel %vm761, %v1571, 0
        %v1594 = vsel %vm761, %v1572, 0
        %v1597 = vsel %vm761, %v1573, 0
        %v1600 = vsel %vm761, %v1574, 0
        %v1603 = vsel %vm761, %v1575, 0
        %v1606 = vsel %vm761, %v1576, 0
        %v1609 = vsel %vm761, %v1577, 0
        %1611 = vmatpush.msra.mxu0 0.0
        %1612 = vmatpush.msra.mxu0 0.0
        %1613 = vmatpush.msra.mxu0 0.0
        %1614 = vmatpush.msra.mxu0 0.0
        %1615 = vmatpush.msra.mxu0 0.0
        %1616 = vmatpush.msra.mxu0 0.0
        %1617 = vmatpush.msra.mxu0 0.0
        %1618 = vmatpush.msra.mxu0 0.0
        %1619 = vmatpush.msra.mxu0 %v1586
        %1620 = vmatpush.msra.mxu0 %v1585
        %1621 = vmatpush.msra.mxu0 %v1584
        %1622 = vmatpush.msra.mxu0 %v1583
        %1623 = vmatpush.msra.mxu0 %v1582
        %1624 = vmatpush.msra.mxu0 %v1581
        %1625 = vmatpush.msra.mxu0 %v1580
        %1626 = vmatpush.msra.mxu0 %v1579
        %1627 = vmatmul.f32.gmra.mxu0 %v1588
        %v1628 = vpop.f32.mrf.mxu0
        %v1629 = vadd.f32 0.0, %v1628
        %1630 = vmatmul.f32.gmra.mxu0 %v1591
        %v1631 = vpop.f32.mrf.mxu0
        %v1632 = vadd.f32 0.0, %v1631
        %1633 = vmatmul.f32.gmra.mxu0 %v1594
        %v1634 = vpop.f32.mrf.mxu0
        %v1635 = vadd.f32 0.0, %v1634
        %1636 = vmatmul.f32.gmra.mxu0 %v1597
        %v1637 = vpop.f32.mrf.mxu0
        %v1638 = vadd.f32 0.0, %v1637
        %1639 = vmatmul.f32.gmra.mxu0 %v1600
        %v1640 = vpop.f32.mrf.mxu0
        %v1641 = vadd.f32 0.0, %v1640
        %1642 = vmatmul.f32.gmra.mxu0 %v1603
        %v1643 = vpop.f32.mrf.mxu0
        %v1644 = vadd.f32 0.0, %v1643
        %1645 = vmatmul.f32.gmra.mxu0 %v1606
        %v1646 = vpop.f32.mrf.mxu0
        %v1647 = vadd.f32 0.0, %v1646
        %1648 = vmatmul.f32.gmra.mxu0 %v1609
        %v1649 = vpop.f32.mrf.mxu0
        %v1650 = vadd.f32 0.0, %v1649
        %1651 = vdwg.mxu0
        %v1652 = vadd.f32 %v1561, %v1629
        %v1653 = vadd.f32 %v1562, %v1632
        %v1654 = vadd.f32 %v1563, %v1635
        %v1655 = vadd.f32 %v1564, %v1638
        %v1656 = vadd.f32 %v1565, %v1641
        %v1657 = vadd.f32 %v1566, %v1644
        %v1658 = vadd.f32 %v1567, %v1647
        %v1659 = vadd.f32 %v1568, %v1650
        %v1660 = vld [vmem:[%s1569 + $0x1] sm:$0xff]
        %v1661 = vld [vmem:[%s1569 + $0x11] sm:$0xff]
        %v1662 = vld [vmem:[%s1569 + $0x21] sm:$0xff]
        %v1663 = vld [vmem:[%s1569 + $0x31] sm:$0xff]
        %v1664 = vld [vmem:[%s1569 + $0x41] sm:$0xff]
        %v1665 = vld [vmem:[%s1569 + $0x51] sm:$0xff]
        %v1666 = vld [vmem:[%s1569 + $0x61] sm:$0xff]
        %v1667 = vld [vmem:[%s1569 + $0x71] sm:$0xff]
        %s1668 = scalar_lea.vmem %s3, 448
        %v1669 = vld [vmem:[%s1668] sm:$0xff]
        %v1670 = vld [vmem:[%s1668 + $0x8] sm:$0xff]
        %v1671 = vld [vmem:[%s1668 + $0x10] sm:$0xff]
        %v1672 = vld [vmem:[%s1668 + $0x18] sm:$0xff]
        %v1673 = vld [vmem:[%s1668 + $0x20] sm:$0xff]
        %v1674 = vld [vmem:[%s1668 + $0x28] sm:$0xff]
        %v1675 = vld [vmem:[%s1668 + $0x30] sm:$0xff]
        %v1676 = vld [vmem:[%s1668 + $0x38] sm:$0xff]
        %v1678 = vsel %vm761, %v1660, 0
        %v1681 = vsel %vm761, %v1661, 0
        %v1684 = vsel %vm761, %v1662, 0
        %v1687 = vsel %vm761, %v1663, 0
        %v1690 = vsel %vm761, %v1664, 0
        %v1693 = vsel %vm761, %v1665, 0
        %v1696 = vsel %vm761, %v1666, 0
        %v1699 = vsel %vm761, %v1667, 0
        %1701 = vmatpush.msra.mxu0 0.0
        %1702 = vmatpush.msra.mxu0 0.0
        %1703 = vmatpush.msra.mxu0 0.0
        %1704 = vmatpush.msra.mxu0 0.0
        %1705 = vmatpush.msra.mxu0 0.0
        %1706 = vmatpush.msra.mxu0 0.0
        %1707 = vmatpush.msra.mxu0 0.0
        %1708 = vmatpush.msra.mxu0 0.0
        %1709 = vmatpush.msra.mxu0 %v1676
        %1710 = vmatpush.msra.mxu0 %v1675
        %1711 = vmatpush.msra.mxu0 %v1674
        %1712 = vmatpush.msra.mxu0 %v1673
        %1713 = vmatpush.msra.mxu0 %v1672
        %1714 = vmatpush.msra.mxu0 %v1671
        %1715 = vmatpush.msra.mxu0 %v1670
        %1716 = vmatpush.msra.mxu0 %v1669
        %1717 = vmatmul.f32.gmra.mxu0 %v1678
        %v1718 = vpop.f32.mrf.mxu0
        %v1719 = vadd.f32 0.0, %v1718
        %1720 = vmatmul.f32.gmra.mxu0 %v1681
        %v1721 = vpop.f32.mrf.mxu0
        %v1722 = vadd.f32 0.0, %v1721
        %1723 = vmatmul.f32.gmra.mxu0 %v1684
        %v1724 = vpop.f32.mrf.mxu0
        %v1725 = vadd.f32 0.0, %v1724
        %1726 = vmatmul.f32.gmra.mxu0 %v1687
        %v1727 = vpop.f32.mrf.mxu0
        %v1728 = vadd.f32 0.0, %v1727
        %1729 = vmatmul.f32.gmra.mxu0 %v1690
        %v1730 = vpop.f32.mrf.mxu0
        %v1731 = vadd.f32 0.0, %v1730
        %1732 = vmatmul.f32.gmra.mxu0 %v1693
        %v1733 = vpop.f32.mrf.mxu0
        %v1734 = vadd.f32 0.0, %v1733
        %1735 = vmatmul.f32.gmra.mxu0 %v1696
        %v1736 = vpop.f32.mrf.mxu0
        %v1737 = vadd.f32 0.0, %v1736
        %1738 = vmatmul.f32.gmra.mxu0 %v1699
        %v1739 = vpop.f32.mrf.mxu0
        %v1740 = vadd.f32 0.0, %v1739
        %1741 = vdwg.mxu0
        %v1742 = vadd.f32 %v1652, %v1719
        %v1743 = vadd.f32 %v1653, %v1722
        %v1744 = vadd.f32 %v1654, %v1725
        %v1745 = vadd.f32 %v1655, %v1728
        %v1746 = vadd.f32 %v1656, %v1731
        %v1747 = vadd.f32 %v1657, %v1734
        %v1748 = vadd.f32 %v1658, %v1737
        %v1749 = vadd.f32 %v1659, %v1740
        %v1750 = vld [vmem:[%s1569 + $0x2] sm:$0xff]
        %v1751 = vld [vmem:[%s1569 + $0x12] sm:$0xff]
        %v1752 = vld [vmem:[%s1569 + $0x22] sm:$0xff]
        %v1753 = vld [vmem:[%s1569 + $0x32] sm:$0xff]
        %v1754 = vld [vmem:[%s1569 + $0x42] sm:$0xff]
        %v1755 = vld [vmem:[%s1569 + $0x52] sm:$0xff]
        %v1756 = vld [vmem:[%s1569 + $0x62] sm:$0xff]
        %v1757 = vld [vmem:[%s1569 + $0x72] sm:$0xff]
        %s1758 = scalar_lea.vmem %s3, 512
        %v1759 = vld [vmem:[%s1758] sm:$0xff]
        %v1760 = vld [vmem:[%s1758 + $0x8] sm:$0xff]
        %v1761 = vld [vmem:[%s1758 + $0x10] sm:$0xff]
        %v1762 = vld [vmem:[%s1758 + $0x18] sm:$0xff]
        %v1763 = vld [vmem:[%s1758 + $0x20] sm:$0xff]
        %v1764 = vld [vmem:[%s1758 + $0x28] sm:$0xff]
        %v1765 = vld [vmem:[%s1758 + $0x30] sm:$0xff]
        %v1766 = vld [vmem:[%s1758 + $0x38] sm:$0xff]
        %v1768 = vsel %vm761, %v1750, 0
        %v1771 = vsel %vm761, %v1751, 0
        %v1774 = vsel %vm761, %v1752, 0
        %v1777 = vsel %vm761, %v1753, 0
        %v1780 = vsel %vm761, %v1754, 0
        %v1783 = vsel %vm761, %v1755, 0
        %v1786 = vsel %vm761, %v1756, 0
        %v1789 = vsel %vm761, %v1757, 0
        %1791 = vmatpush.msra.mxu0 0.0
        %1792 = vmatpush.msra.mxu0 0.0
        %1793 = vmatpush.msra.mxu0 0.0
        %1794 = vmatpush.msra.mxu0 0.0
        %1795 = vmatpush.msra.mxu0 0.0
        %1796 = vmatpush.msra.mxu0 0.0
        %1797 = vmatpush.msra.mxu0 0.0
        %1798 = vmatpush.msra.mxu0 0.0
        %1799 = vmatpush.msra.mxu0 %v1766
        %1800 = vmatpush.msra.mxu0 %v1765
        %1801 = vmatpush.msra.mxu0 %v1764
        %1802 = vmatpush.msra.mxu0 %v1763
        %1803 = vmatpush.msra.mxu0 %v1762
        %1804 = vmatpush.msra.mxu0 %v1761
        %1805 = vmatpush.msra.mxu0 %v1760
        %1806 = vmatpush.msra.mxu0 %v1759
        %1807 = vmatmul.f32.gmra.mxu0 %v1768
        %v1808 = vpop.f32.mrf.mxu0
        %v1809 = vadd.f32 0.0, %v1808
        %1810 = vmatmul.f32.gmra.mxu0 %v1771
        %v1811 = vpop.f32.mrf.mxu0
        %v1812 = vadd.f32 0.0, %v1811
        %1813 = vmatmul.f32.gmra.mxu0 %v1774
        %v1814 = vpop.f32.mrf.mxu0
        %v1815 = vadd.f32 0.0, %v1814
        %1816 = vmatmul.f32.gmra.mxu0 %v1777
        %v1817 = vpop.f32.mrf.mxu0
        %v1818 = vadd.f32 0.0, %v1817
        %1819 = vmatmul.f32.gmra.mxu0 %v1780
        %v1820 = vpop.f32.mrf.mxu0
        %v1821 = vadd.f32 0.0, %v1820
        %1822 = vmatmul.f32.gmra.mxu0 %v1783
        %v1823 = vpop.f32.mrf.mxu0
        %v1824 = vadd.f32 0.0, %v1823
        %1825 = vmatmul.f32.gmra.mxu0 %v1786
        %v1826 = vpop.f32.mrf.mxu0
        %v1827 = vadd.f32 0.0, %v1826
        %1828 = vmatmul.f32.gmra.mxu0 %v1789
        %v1829 = vpop.f32.mrf.mxu0
        %v1830 = vadd.f32 0.0, %v1829
        %1831 = vdwg.mxu0
        %v1832 = vadd.f32 %v1742, %v1809
        %v1833 = vadd.f32 %v1743, %v1812
        %v1834 = vadd.f32 %v1744, %v1815
        %v1835 = vadd.f32 %v1745, %v1818
        %v1836 = vadd.f32 %v1746, %v1821
        %v1837 = vadd.f32 %v1747, %v1824
        %v1838 = vadd.f32 %v1748, %v1827
        %v1839 = vadd.f32 %v1749, %v1830
        %v1840 = vld [vmem:[%s4] sm:$0x1]
        %v1842 = vperm.slane %v1840, 0
        %v1844 = vadd.f32 %v1832, %v1842
        %v1845 = vadd.f32 %v1833, %v1842
        %v1846 = vadd.f32 %v1834, %v1842
        %v1847 = vadd.f32 %v1835, %v1842
        %v1848 = vadd.f32 %v1836, %v1842
        %v1849 = vadd.f32 %v1837, %v1842
        %v1850 = vadd.f32 %v1838, %v1842
        %v1851 = vadd.f32 %v1839, %v1842
        %v1852 = vmax.f32 %v1844, 0.0
        %v1853 = vmax.f32 %v1845, 0.0
        %v1854 = vmax.f32 %v1846, 0.0
        %v1855 = vmax.f32 %v1847, 0.0
        %v1856 = vmax.f32 %v1848, 0.0
        %v1857 = vmax.f32 %v1849, 0.0
        %v1858 = vmax.f32 %v1850, 0.0
        %v1859 = vmax.f32 %v1851, 0.0
        %1860 = vst.msk [vmem:[%s1037 + $0x1] sm:$0xff] %vm761, %v1852
        %1861 = vst.msk [vmem:[%s1037 + $0x11] sm:$0xff] %vm761, %v1853
        %1862 = vst.msk [vmem:[%s1037 + $0x21] sm:$0xff] %vm761, %v1854
        %1863 = vst.msk [vmem:[%s1037 + $0x31] sm:$0xff] %vm761, %v1855
        %1864 = vst.msk [vmem:[%s1037 + $0x41] sm:$0xff] %vm761, %v1856
        %1865 = vst.msk [vmem:[%s1037 + $0x51] sm:$0xff] %vm761, %v1857
        %1866 = vst.msk [vmem:[%s1037 + $0x61] sm:$0xff] %vm761, %v1858
        %1867 = vst.msk [vmem:[%s1037 + $0x71] sm:$0xff] %vm761, %v1859
        %v1868 = vld [vmem:[#allocation3] sm:$0xff]
        %v1869 = vld [vmem:[#allocation3 + $0x10] sm:$0xff]
        %v1870 = vld [vmem:[#allocation3 + $0x20] sm:$0xff]
        %v1871 = vld [vmem:[#allocation3 + $0x30] sm:$0xff]
        %v1872 = vld [vmem:[#allocation3 + $0x40] sm:$0xff]
        %v1873 = vld [vmem:[#allocation3 + $0x50] sm:$0xff]
        %v1874 = vld [vmem:[#allocation3 + $0x60] sm:$0xff]
        %v1875 = vld [vmem:[#allocation3 + $0x70] sm:$0xff]
        %v1876 = vld [vmem:[%s5] sm:$0xff]
        %v1877 = vld [vmem:[%s5 + $0x8] sm:$0xff]
        %v1878 = vld [vmem:[%s5 + $0x10] sm:$0xff]
        %v1879 = vld [vmem:[%s5 + $0x18] sm:$0xff]
        %v1880 = vld [vmem:[%s5 + $0x20] sm:$0xff]
        %v1881 = vld [vmem:[%s5 + $0x28] sm:$0xff]
        %v1882 = vld [vmem:[%s5 + $0x30] sm:$0xff]
        %v1883 = vld [vmem:[%s5 + $0x38] sm:$0xff]
        %v1884 = vld [vmem:[#allocation3 + $0x1] sm:$0xff]
        %v1885 = vld [vmem:[#allocation3 + $0x11] sm:$0xff]
        %v1886 = vld [vmem:[#allocation3 + $0x21] sm:$0xff]
        %v1887 = vld [vmem:[#allocation3 + $0x31] sm:$0xff]
        %v1888 = vld [vmem:[#allocation3 + $0x41] sm:$0xff]
        %v1889 = vld [vmem:[#allocation3 + $0x51] sm:$0xff]
        %v1890 = vld [vmem:[#allocation3 + $0x61] sm:$0xff]
        %v1891 = vld [vmem:[#allocation3 + $0x71] sm:$0xff]
        %s1892 = scalar_lea.vmem %s5, 64
        %v1893 = vld [vmem:[%s1892] sm:$0xff]
        %v1894 = vld [vmem:[%s1892 + $0x8] sm:$0xff]
        %v1895 = vld [vmem:[%s1892 + $0x10] sm:$0xff]
        %v1896 = vld [vmem:[%s1892 + $0x18] sm:$0xff]
        %v1897 = vld [vmem:[%s1892 + $0x20] sm:$0xff]
        %v1898 = vld [vmem:[%s1892 + $0x28] sm:$0xff]
        %v1899 = vld [vmem:[%s1892 + $0x30] sm:$0xff]
        %v1900 = vld [vmem:[%s1892 + $0x38] sm:$0xff]
        %v1902 = vsel %vm761, %v1884, 0
        %v1905 = vsel %vm761, %v1885, 0
        %v1908 = vsel %vm761, %v1886, 0
        %v1911 = vsel %vm761, %v1887, 0
        %v1914 = vsel %vm761, %v1888, 0
        %v1917 = vsel %vm761, %v1889, 0
        %v1920 = vsel %vm761, %v1890, 0
        %v1923 = vsel %vm761, %v1891, 0
        %1925 = vmatpush.msra.mxu0 0.0
        %1926 = vmatpush.msra.mxu0 0.0
        %1927 = vmatpush.msra.mxu0 0.0
        %1928 = vmatpush.msra.mxu0 0.0
        %1929 = vmatpush.msra.mxu0 0.0
        %1930 = vmatpush.msra.mxu0 0.0
        %1931 = vmatpush.msra.mxu0 0.0
        %1932 = vmatpush.msra.mxu0 0.0
        %1933 = vmatpush.msra.mxu0 %v1900
        %1934 = vmatpush.msra.mxu0 %v1899
        %1935 = vmatpush.msra.mxu0 %v1898
        %1936 = vmatpush.msra.mxu0 %v1897
        %1937 = vmatpush.msra.mxu0 %v1896
        %1938 = vmatpush.msra.mxu0 %v1895
        %1939 = vmatpush.msra.mxu0 %v1894
        %1940 = vmatpush.msra.mxu0 %v1893
        %1941 = vmatmul.f32.gmra.mxu0 %v1902
        %v1942 = vpop.f32.mrf.mxu0
        %v1943 = vadd.f32 0.0, %v1942
        %1944 = vmatmul.f32.gmra.mxu0 %v1905
        %v1945 = vpop.f32.mrf.mxu0
        %v1946 = vadd.f32 0.0, %v1945
        %1947 = vmatmul.f32.gmra.mxu0 %v1908
        %v1948 = vpop.f32.mrf.mxu0
        %v1949 = vadd.f32 0.0, %v1948
        %1950 = vmatmul.f32.gmra.mxu0 %v1911
        %v1951 = vpop.f32.mrf.mxu0
        %v1952 = vadd.f32 0.0, %v1951
        %1953 = vmatmul.f32.gmra.mxu0 %v1914
        %v1954 = vpop.f32.mrf.mxu0
        %v1955 = vadd.f32 0.0, %v1954
        %1956 = vmatmul.f32.gmra.mxu0 %v1917
        %v1957 = vpop.f32.mrf.mxu0
        %v1958 = vadd.f32 0.0, %v1957
        %1959 = vmatmul.f32.gmra.mxu0 %v1920
        %v1960 = vpop.f32.mrf.mxu0
        %v1961 = vadd.f32 0.0, %v1960
        %1962 = vmatmul.f32.gmra.mxu0 %v1923
        %v1963 = vpop.f32.mrf.mxu0
        %v1964 = vadd.f32 0.0, %v1963
        %1965 = vdwg.mxu0
        %v1967 = vsel %vm761, %v1868, 0
        %v1970 = vsel %vm761, %v1869, 0
        %v1973 = vsel %vm761, %v1870, 0
        %v1976 = vsel %vm761, %v1871, 0
        %v1979 = vsel %vm761, %v1872, 0
        %v1982 = vsel %vm761, %v1873, 0
        %v1985 = vsel %vm761, %v1874, 0
        %v1988 = vsel %vm761, %v1875, 0
        %1990 = vmatpush.msra.mxu0 0.0
        %1991 = vmatpush.msra.mxu0 0.0
        %1992 = vmatpush.msra.mxu0 0.0
        %1993 = vmatpush.msra.mxu0 0.0
        %1994 = vmatpush.msra.mxu0 0.0
        %1995 = vmatpush.msra.mxu0 0.0
        %1996 = vmatpush.msra.mxu0 0.0
        %1997 = vmatpush.msra.mxu0 0.0
        %1998 = vmatpush.msra.mxu0 %v1883
        %1999 = vmatpush.msra.mxu0 %v1882
        %2000 = vmatpush.msra.mxu0 %v1881
        %2001 = vmatpush.msra.mxu0 %v1880
        %2002 = vmatpush.msra.mxu0 %v1879
        %2003 = vmatpush.msra.mxu0 %v1878
        %2004 = vmatpush.msra.mxu0 %v1877
        %2005 = vmatpush.msra.mxu0 %v1876
        %2006 = vmatmul.f32.gmra.mxu0 %v1967
        %v2007 = vpop.f32.mrf.mxu0
        %v2008 = vadd.f32 %v1943, %v2007
        %2009 = vmatmul.f32.gmra.mxu0 %v1970
        %v2010 = vpop.f32.mrf.mxu0
        %v2011 = vadd.f32 %v1946, %v2010
        %2012 = vmatmul.f32.gmra.mxu0 %v1973
        %v2013 = vpop.f32.mrf.mxu0
        %v2014 = vadd.f32 %v1949, %v2013
        %2015 = vmatmul.f32.gmra.mxu0 %v1976
        %v2016 = vpop.f32.mrf.mxu0
        %v2017 = vadd.f32 %v1952, %v2016
        %2018 = vmatmul.f32.gmra.mxu0 %v1979
        %v2019 = vpop.f32.mrf.mxu0
        %v2020 = vadd.f32 %v1955, %v2019
        %2021 = vmatmul.f32.gmra.mxu0 %v1982
        %v2022 = vpop.f32.mrf.mxu0
        %v2023 = vadd.f32 %v1958, %v2022
        %2024 = vmatmul.f32.gmra.mxu0 %v1985
        %v2025 = vpop.f32.mrf.mxu0
        %v2026 = vadd.f32 %v1961, %v2025
        %2027 = vmatmul.f32.gmra.mxu0 %v1988
        %v2028 = vpop.f32.mrf.mxu0
        %v2029 = vadd.f32 %v1964, %v2028
        %2030 = vdwg.mxu0
        %v2031 = vld [vmem:[#allocation3 + $0x2] sm:$0xff]
        %v2032 = vld [vmem:[#allocation3 + $0x12] sm:$0xff]
        %v2033 = vld [vmem:[#allocation3 + $0x22] sm:$0xff]
        %v2034 = vld [vmem:[#allocation3 + $0x32] sm:$0xff]
        %v2035 = vld [vmem:[#allocation3 + $0x42] sm:$0xff]
        %v2036 = vld [vmem:[#allocation3 + $0x52] sm:$0xff]
        %v2037 = vld [vmem:[#allocation3 + $0x62] sm:$0xff]
        %v2038 = vld [vmem:[#allocation3 + $0x72] sm:$0xff]
        %s2039 = scalar_lea.vmem %s5, 128
        %v2040 = vld [vmem:[%s2039] sm:$0xff]
        %v2041 = vld [vmem:[%s2039 + $0x8] sm:$0xff]
        %v2042 = vld [vmem:[%s2039 + $0x10] sm:$0xff]
        %v2043 = vld [vmem:[%s2039 + $0x18] sm:$0xff]
        %v2044 = vld [vmem:[%s2039 + $0x20] sm:$0xff]
        %v2045 = vld [vmem:[%s2039 + $0x28] sm:$0xff]
        %v2046 = vld [vmem:[%s2039 + $0x30] sm:$0xff]
        %v2047 = vld [vmem:[%s2039 + $0x38] sm:$0xff]
        %v2049 = vsel %vm761, %v2031, 0
        %v2052 = vsel %vm761, %v2032, 0
        %v2055 = vsel %vm761, %v2033, 0
        %v2058 = vsel %vm761, %v2034, 0
        %v2061 = vsel %vm761, %v2035, 0
        %v2064 = vsel %vm761, %v2036, 0
        %v2067 = vsel %vm761, %v2037, 0
        %v2070 = vsel %vm761, %v2038, 0
        %2072 = vmatpush.msra.mxu0 0.0
        %2073 = vmatpush.msra.mxu0 0.0
        %2074 = vmatpush.msra.mxu0 0.0
        %2075 = vmatpush.msra.mxu0 0.0
        %2076 = vmatpush.msra.mxu0 0.0
        %2077 = vmatpush.msra.mxu0 0.0
        %2078 = vmatpush.msra.mxu0 0.0
        %2079 = vmatpush.msra.mxu0 0.0
        %2080 = vmatpush.msra.mxu0 %v2047
        %2081 = vmatpush.msra.mxu0 %v2046
        %2082 = vmatpush.msra.mxu0 %v2045
        %2083 = vmatpush.msra.mxu0 %v2044
        %2084 = vmatpush.msra.mxu0 %v2043
        %2085 = vmatpush.msra.mxu0 %v2042
        %2086 = vmatpush.msra.mxu0 %v2041
        %2087 = vmatpush.msra.mxu0 %v2040
        %2088 = vmatmul.f32.gmra.mxu0 %v2049
        %v2089 = vpop.f32.mrf.mxu0
        %v2090 = vadd.f32 0.0, %v2089
        %2091 = vmatmul.f32.gmra.mxu0 %v2052
        %v2092 = vpop.f32.mrf.mxu0
        %v2093 = vadd.f32 0.0, %v2092
        %2094 = vmatmul.f32.gmra.mxu0 %v2055
        %v2095 = vpop.f32.mrf.mxu0
        %v2096 = vadd.f32 0.0, %v2095
        %2097 = vmatmul.f32.gmra.mxu0 %v2058
        %v2098 = vpop.f32.mrf.mxu0
        %v2099 = vadd.f32 0.0, %v2098
        %2100 = vmatmul.f32.gmra.mxu0 %v2061
        %v2101 = vpop.f32.mrf.mxu0
        %v2102 = vadd.f32 0.0, %v2101
        %2103 = vmatmul.f32.gmra.mxu0 %v2064
        %v2104 = vpop.f32.mrf.mxu0
        %v2105 = vadd.f32 0.0, %v2104
        %2106 = vmatmul.f32.gmra.mxu0 %v2067
        %v2107 = vpop.f32.mrf.mxu0
        %v2108 = vadd.f32 0.0, %v2107
        %2109 = vmatmul.f32.gmra.mxu0 %v2070
        %v2110 = vpop.f32.mrf.mxu0
        %v2111 = vadd.f32 0.0, %v2110
        %2112 = vdwg.mxu0
        %v2113 = vadd.f32 %v2008, %v2090
        %v2114 = vadd.f32 %v2011, %v2093
        %v2115 = vadd.f32 %v2014, %v2096
        %v2116 = vadd.f32 %v2017, %v2099
        %v2117 = vadd.f32 %v2020, %v2102
        %v2118 = vadd.f32 %v2023, %v2105
        %v2119 = vadd.f32 %v2026, %v2108
        %v2120 = vadd.f32 %v2029, %v2111
        %v2121 = vld [vmem:[%s1037] sm:$0xff]
        %v2122 = vld [vmem:[%s1037 + $0x10] sm:$0xff]
        %v2123 = vld [vmem:[%s1037 + $0x20] sm:$0xff]
        %v2124 = vld [vmem:[%s1037 + $0x30] sm:$0xff]
        %v2125 = vld [vmem:[%s1037 + $0x40] sm:$0xff]
        %v2126 = vld [vmem:[%s1037 + $0x50] sm:$0xff]
        %v2127 = vld [vmem:[%s1037 + $0x60] sm:$0xff]
        %v2128 = vld [vmem:[%s1037 + $0x70] sm:$0xff]
        %s2129 = scalar_lea.vmem %s5, 192
        %v2130 = vld [vmem:[%s2129] sm:$0xff]
        %v2131 = vld [vmem:[%s2129 + $0x8] sm:$0xff]
        %v2132 = vld [vmem:[%s2129 + $0x10] sm:$0xff]
        %v2133 = vld [vmem:[%s2129 + $0x18] sm:$0xff]
        %v2134 = vld [vmem:[%s2129 + $0x20] sm:$0xff]
        %v2135 = vld [vmem:[%s2129 + $0x28] sm:$0xff]
        %v2136 = vld [vmem:[%s2129 + $0x30] sm:$0xff]
        %v2137 = vld [vmem:[%s2129 + $0x38] sm:$0xff]
        %v2139 = vsel %vm761, %v2121, 0
        %v2142 = vsel %vm761, %v2122, 0
        %v2145 = vsel %vm761, %v2123, 0
        %v2148 = vsel %vm761, %v2124, 0
        %v2151 = vsel %vm761, %v2125, 0
        %v2154 = vsel %vm761, %v2126, 0
        %v2157 = vsel %vm761, %v2127, 0
        %v2160 = vsel %vm761, %v2128, 0
        %2162 = vmatpush.msra.mxu0 0.0
        %2163 = vmatpush.msra.mxu0 0.0
        %2164 = vmatpush.msra.mxu0 0.0
        %2165 = vmatpush.msra.mxu0 0.0
        %2166 = vmatpush.msra.mxu0 0.0
        %2167 = vmatpush.msra.mxu0 0.0
        %2168 = vmatpush.msra.mxu0 0.0
        %2169 = vmatpush.msra.mxu0 0.0
        %2170 = vmatpush.msra.mxu0 %v2137
        %2171 = vmatpush.msra.mxu0 %v2136
        %2172 = vmatpush.msra.mxu0 %v2135
        %2173 = vmatpush.msra.mxu0 %v2134
        %2174 = vmatpush.msra.mxu0 %v2133
        %2175 = vmatpush.msra.mxu0 %v2132
        %2176 = vmatpush.msra.mxu0 %v2131
        %2177 = vmatpush.msra.mxu0 %v2130
        %2178 = vmatmul.f32.gmra.mxu0 %v2139
        %v2179 = vpop.f32.mrf.mxu0
        %v2180 = vadd.f32 0.0, %v2179
        %2181 = vmatmul.f32.gmra.mxu0 %v2142
        %v2182 = vpop.f32.mrf.mxu0
        %v2183 = vadd.f32 0.0, %v2182
        %2184 = vmatmul.f32.gmra.mxu0 %v2145
        %v2185 = vpop.f32.mrf.mxu0
        %v2186 = vadd.f32 0.0, %v2185
        %2187 = vmatmul.f32.gmra.mxu0 %v2148
        %v2188 = vpop.f32.mrf.mxu0
        %v2189 = vadd.f32 0.0, %v2188
        %2190 = vmatmul.f32.gmra.mxu0 %v2151
        %v2191 = vpop.f32.mrf.mxu0
        %v2192 = vadd.f32 0.0, %v2191
        %2193 = vmatmul.f32.gmra.mxu0 %v2154
        %v2194 = vpop.f32.mrf.mxu0
        %v2195 = vadd.f32 0.0, %v2194
        %2196 = vmatmul.f32.gmra.mxu0 %v2157
        %v2197 = vpop.f32.mrf.mxu0
        %v2198 = vadd.f32 0.0, %v2197
        %2199 = vmatmul.f32.gmra.mxu0 %v2160
        %v2200 = vpop.f32.mrf.mxu0
        %v2201 = vadd.f32 0.0, %v2200
        %2202 = vdwg.mxu0
        %v2203 = vadd.f32 %v2113, %v2180
        %v2204 = vadd.f32 %v2114, %v2183
        %v2205 = vadd.f32 %v2115, %v2186
        %v2206 = vadd.f32 %v2116, %v2189
        %v2207 = vadd.f32 %v2117, %v2192
        %v2208 = vadd.f32 %v2118, %v2195
        %v2209 = vadd.f32 %v2119, %v2198
        %v2210 = vadd.f32 %v2120, %v2201
        %v2211 = vld [vmem:[%s1037 + $0x1] sm:$0xff]
        %v2212 = vld [vmem:[%s1037 + $0x11] sm:$0xff]
        %v2213 = vld [vmem:[%s1037 + $0x21] sm:$0xff]
        %v2214 = vld [vmem:[%s1037 + $0x31] sm:$0xff]
        %v2215 = vld [vmem:[%s1037 + $0x41] sm:$0xff]
        %v2216 = vld [vmem:[%s1037 + $0x51] sm:$0xff]
        %v2217 = vld [vmem:[%s1037 + $0x61] sm:$0xff]
        %v2218 = vld [vmem:[%s1037 + $0x71] sm:$0xff]
        %s2219 = scalar_lea.vmem %s5, 256
        %v2220 = vld [vmem:[%s2219] sm:$0xff]
        %v2221 = vld [vmem:[%s2219 + $0x8] sm:$0xff]
        %v2222 = vld [vmem:[%s2219 + $0x10] sm:$0xff]
        %v2223 = vld [vmem:[%s2219 + $0x18] sm:$0xff]
        %v2224 = vld [vmem:[%s2219 + $0x20] sm:$0xff]
        %v2225 = vld [vmem:[%s2219 + $0x28] sm:$0xff]
        %v2226 = vld [vmem:[%s2219 + $0x30] sm:$0xff]
        %v2227 = vld [vmem:[%s2219 + $0x38] sm:$0xff]
        %v2229 = vsel %vm761, %v2211, 0
        %v2232 = vsel %vm761, %v2212, 0
        %v2235 = vsel %vm761, %v2213, 0
        %v2238 = vsel %vm761, %v2214, 0
        %v2241 = vsel %vm761, %v2215, 0
        %v2244 = vsel %vm761, %v2216, 0
        %v2247 = vsel %vm761, %v2217, 0
        %v2250 = vsel %vm761, %v2218, 0
        %2252 = vmatpush.msra.mxu0 0.0
        %2253 = vmatpush.msra.mxu0 0.0
        %2254 = vmatpush.msra.mxu0 0.0
        %2255 = vmatpush.msra.mxu0 0.0
        %2256 = vmatpush.msra.mxu0 0.0
        %2257 = vmatpush.msra.mxu0 0.0
        %2258 = vmatpush.msra.mxu0 0.0
        %2259 = vmatpush.msra.mxu0 0.0
        %2260 = vmatpush.msra.mxu0 %v2227
        %2261 = vmatpush.msra.mxu0 %v2226
        %2262 = vmatpush.msra.mxu0 %v2225
        %2263 = vmatpush.msra.mxu0 %v2224
        %2264 = vmatpush.msra.mxu0 %v2223
        %2265 = vmatpush.msra.mxu0 %v2222
        %2266 = vmatpush.msra.mxu0 %v2221
        %2267 = vmatpush.msra.mxu0 %v2220
        %2268 = vmatmul.f32.gmra.mxu0 %v2229
        %v2269 = vpop.f32.mrf.mxu0
        %v2270 = vadd.f32 0.0, %v2269
        %2271 = vmatmul.f32.gmra.mxu0 %v2232
        %v2272 = vpop.f32.mrf.mxu0
        %v2273 = vadd.f32 0.0, %v2272
        %2274 = vmatmul.f32.gmra.mxu0 %v2235
        %v2275 = vpop.f32.mrf.mxu0
        %v2276 = vadd.f32 0.0, %v2275
        %2277 = vmatmul.f32.gmra.mxu0 %v2238
        %v2278 = vpop.f32.mrf.mxu0
        %v2279 = vadd.f32 0.0, %v2278
        %2280 = vmatmul.f32.gmra.mxu0 %v2241
        %v2281 = vpop.f32.mrf.mxu0
        %v2282 = vadd.f32 0.0, %v2281
        %2283 = vmatmul.f32.gmra.mxu0 %v2244
        %v2284 = vpop.f32.mrf.mxu0
        %v2285 = vadd.f32 0.0, %v2284
        %2286 = vmatmul.f32.gmra.mxu0 %v2247
        %v2287 = vpop.f32.mrf.mxu0
        %v2288 = vadd.f32 0.0, %v2287
        %2289 = vmatmul.f32.gmra.mxu0 %v2250
        %v2290 = vpop.f32.mrf.mxu0
        %v2291 = vadd.f32 0.0, %v2290
        %2292 = vdwg.mxu0
        %v2293 = vadd.f32 %v2203, %v2270
        %v2294 = vadd.f32 %v2204, %v2273
        %v2295 = vadd.f32 %v2205, %v2276
        %v2296 = vadd.f32 %v2206, %v2279
        %v2297 = vadd.f32 %v2207, %v2282
        %v2298 = vadd.f32 %v2208, %v2285
        %v2299 = vadd.f32 %v2209, %v2288
        %v2300 = vadd.f32 %v2210, %v2291
        %v2301 = vld [vmem:[%s1037 + $0x2] sm:$0xff]
        %v2302 = vld [vmem:[%s1037 + $0x12] sm:$0xff]
        %v2303 = vld [vmem:[%s1037 + $0x22] sm:$0xff]
        %v2304 = vld [vmem:[%s1037 + $0x32] sm:$0xff]
        %v2305 = vld [vmem:[%s1037 + $0x42] sm:$0xff]
        %v2306 = vld [vmem:[%s1037 + $0x52] sm:$0xff]
        %v2307 = vld [vmem:[%s1037 + $0x62] sm:$0xff]
        %v2308 = vld [vmem:[%s1037 + $0x72] sm:$0xff]
        %s2309 = scalar_lea.vmem %s5, 320
        %v2310 = vld [vmem:[%s2309] sm:$0xff]
        %v2311 = vld [vmem:[%s2309 + $0x8] sm:$0xff]
        %v2312 = vld [vmem:[%s2309 + $0x10] sm:$0xff]
        %v2313 = vld [vmem:[%s2309 + $0x18] sm:$0xff]
        %v2314 = vld [vmem:[%s2309 + $0x20] sm:$0xff]
        %v2315 = vld [vmem:[%s2309 + $0x28] sm:$0xff]
        %v2316 = vld [vmem:[%s2309 + $0x30] sm:$0xff]
        %v2317 = vld [vmem:[%s2309 + $0x38] sm:$0xff]
        %v2319 = vsel %vm761, %v2301, 0
        %v2322 = vsel %vm761, %v2302, 0
        %v2325 = vsel %vm761, %v2303, 0
        %v2328 = vsel %vm761, %v2304, 0
        %v2331 = vsel %vm761, %v2305, 0
        %v2334 = vsel %vm761, %v2306, 0
        %v2337 = vsel %vm761, %v2307, 0
        %v2340 = vsel %vm761, %v2308, 0
        %2342 = vmatpush.msra.mxu0 0.0
        %2343 = vmatpush.msra.mxu0 0.0
        %2344 = vmatpush.msra.mxu0 0.0
        %2345 = vmatpush.msra.mxu0 0.0
        %2346 = vmatpush.msra.mxu0 0.0
        %2347 = vmatpush.msra.mxu0 0.0
        %2348 = vmatpush.msra.mxu0 0.0
        %2349 = vmatpush.msra.mxu0 0.0
        %2350 = vmatpush.msra.mxu0 %v2317
        %2351 = vmatpush.msra.mxu0 %v2316
        %2352 = vmatpush.msra.mxu0 %v2315
        %2353 = vmatpush.msra.mxu0 %v2314
        %2354 = vmatpush.msra.mxu0 %v2313
        %2355 = vmatpush.msra.mxu0 %v2312
        %2356 = vmatpush.msra.mxu0 %v2311
        %2357 = vmatpush.msra.mxu0 %v2310
        %2358 = vmatmul.f32.gmra.mxu0 %v2319
        %v2359 = vpop.f32.mrf.mxu0
        %v2360 = vadd.f32 0.0, %v2359
        %2361 = vmatmul.f32.gmra.mxu0 %v2322
        %v2362 = vpop.f32.mrf.mxu0
        %v2363 = vadd.f32 0.0, %v2362
        %2364 = vmatmul.f32.gmra.mxu0 %v2325
        %v2365 = vpop.f32.mrf.mxu0
        %v2366 = vadd.f32 0.0, %v2365
        %2367 = vmatmul.f32.gmra.mxu0 %v2328
        %v2368 = vpop.f32.mrf.mxu0
        %v2369 = vadd.f32 0.0, %v2368
        %2370 = vmatmul.f32.gmra.mxu0 %v2331
        %v2371 = vpop.f32.mrf.mxu0
        %v2372 = vadd.f32 0.0, %v2371
        %2373 = vmatmul.f32.gmra.mxu0 %v2334
        %v2374 = vpop.f32.mrf.mxu0
        %v2375 = vadd.f32 0.0, %v2374
        %2376 = vmatmul.f32.gmra.mxu0 %v2337
        %v2377 = vpop.f32.mrf.mxu0
        %v2378 = vadd.f32 0.0, %v2377
        %2379 = vmatmul.f32.gmra.mxu0 %v2340
        %v2380 = vpop.f32.mrf.mxu0
        %v2381 = vadd.f32 0.0, %v2380
        %2382 = vdwg.mxu0
        %v2383 = vadd.f32 %v2293, %v2360
        %v2384 = vadd.f32 %v2294, %v2363
        %v2385 = vadd.f32 %v2295, %v2366
        %v2386 = vadd.f32 %v2296, %v2369
        %v2387 = vadd.f32 %v2297, %v2372
        %v2388 = vadd.f32 %v2298, %v2375
        %v2389 = vadd.f32 %v2299, %v2378
        %v2390 = vadd.f32 %v2300, %v2381
        %v2391 = vld [vmem:[%s1569] sm:$0xff]
        %v2392 = vld [vmem:[%s1569 + $0x10] sm:$0xff]
        %v2393 = vld [vmem:[%s1569 + $0x20] sm:$0xff]
        %v2394 = vld [vmem:[%s1569 + $0x30] sm:$0xff]
        %v2395 = vld [vmem:[%s1569 + $0x40] sm:$0xff]
        %v2396 = vld [vmem:[%s1569 + $0x50] sm:$0xff]
        %v2397 = vld [vmem:[%s1569 + $0x60] sm:$0xff]
        %v2398 = vld [vmem:[%s1569 + $0x70] sm:$0xff]
        %s2399 = scalar_lea.vmem %s5, 384
        %v2400 = vld [vmem:[%s2399] sm:$0xff]
        %v2401 = vld [vmem:[%s2399 + $0x8] sm:$0xff]
        %v2402 = vld [vmem:[%s2399 + $0x10] sm:$0xff]
        %v2403 = vld [vmem:[%s2399 + $0x18] sm:$0xff]
        %v2404 = vld [vmem:[%s2399 + $0x20] sm:$0xff]
        %v2405 = vld [vmem:[%s2399 + $0x28] sm:$0xff]
        %v2406 = vld [vmem:[%s2399 + $0x30] sm:$0xff]
        %v2407 = vld [vmem:[%s2399 + $0x38] sm:$0xff]
        %v2409 = vsel %vm761, %v2391, 0
        %v2412 = vsel %vm761, %v2392, 0
        %v2415 = vsel %vm761, %v2393, 0
        %v2418 = vsel %vm761, %v2394, 0
        %v2421 = vsel %vm761, %v2395, 0
        %v2424 = vsel %vm761, %v2396, 0
        %v2427 = vsel %vm761, %v2397, 0
        %v2430 = vsel %vm761, %v2398, 0
        %2432 = vmatpush.msra.mxu0 0.0
        %2433 = vmatpush.msra.mxu0 0.0
        %2434 = vmatpush.msra.mxu0 0.0
        %2435 = vmatpush.msra.mxu0 0.0
        %2436 = vmatpush.msra.mxu0 0.0
        %2437 = vmatpush.msra.mxu0 0.0
        %2438 = vmatpush.msra.mxu0 0.0
        %2439 = vmatpush.msra.mxu0 0.0
        %2440 = vmatpush.msra.mxu0 %v2407
        %2441 = vmatpush.msra.mxu0 %v2406
        %2442 = vmatpush.msra.mxu0 %v2405
        %2443 = vmatpush.msra.mxu0 %v2404
        %2444 = vmatpush.msra.mxu0 %v2403
        %2445 = vmatpush.msra.mxu0 %v2402
        %2446 = vmatpush.msra.mxu0 %v2401
        %2447 = vmatpush.msra.mxu0 %v2400
        %2448 = vmatmul.f32.gmra.mxu0 %v2409
        %v2449 = vpop.f32.mrf.mxu0
        %v2450 = vadd.f32 0.0, %v2449
        %2451 = vmatmul.f32.gmra.mxu0 %v2412
        %v2452 = vpop.f32.mrf.mxu0
        %v2453 = vadd.f32 0.0, %v2452
        %2454 = vmatmul.f32.gmra.mxu0 %v2415
        %v2455 = vpop.f32.mrf.mxu0
        %v2456 = vadd.f32 0.0, %v2455
        %2457 = vmatmul.f32.gmra.mxu0 %v2418
        %v2458 = vpop.f32.mrf.mxu0
        %v2459 = vadd.f32 0.0, %v2458
        %2460 = vmatmul.f32.gmra.mxu0 %v2421
        %v2461 = vpop.f32.mrf.mxu0
        %v2462 = vadd.f32 0.0, %v2461
        %2463 = vmatmul.f32.gmra.mxu0 %v2424
        %v2464 = vpop.f32.mrf.mxu0
        %v2465 = vadd.f32 0.0, %v2464
        %2466 = vmatmul.f32.gmra.mxu0 %v2427
        %v2467 = vpop.f32.mrf.mxu0
        %v2468 = vadd.f32 0.0, %v2467
        %2469 = vmatmul.f32.gmra.mxu0 %v2430
        %v2470 = vpop.f32.mrf.mxu0
        %v2471 = vadd.f32 0.0, %v2470
        %2472 = vdwg.mxu0
        %v2473 = vadd.f32 %v2383, %v2450
        %v2474 = vadd.f32 %v2384, %v2453
        %v2475 = vadd.f32 %v2385, %v2456
        %v2476 = vadd.f32 %v2386, %v2459
        %v2477 = vadd.f32 %v2387, %v2462
        %v2478 = vadd.f32 %v2388, %v2465
        %v2479 = vadd.f32 %v2389, %v2468
        %v2480 = vadd.f32 %v2390, %v2471
        %v2481 = vld [vmem:[%s1569 + $0x1] sm:$0xff]
        %v2482 = vld [vmem:[%s1569 + $0x11] sm:$0xff]
        %v2483 = vld [vmem:[%s1569 + $0x21] sm:$0xff]
        %v2484 = vld [vmem:[%s1569 + $0x31] sm:$0xff]
        %v2485 = vld [vmem:[%s1569 + $0x41] sm:$0xff]
        %v2486 = vld [vmem:[%s1569 + $0x51] sm:$0xff]
        %v2487 = vld [vmem:[%s1569 + $0x61] sm:$0xff]
        %v2488 = vld [vmem:[%s1569 + $0x71] sm:$0xff]
        %s2489 = scalar_lea.vmem %s5, 448
        %v2490 = vld [vmem:[%s2489] sm:$0xff]
        %v2491 = vld [vmem:[%s2489 + $0x8] sm:$0xff]
        %v2492 = vld [vmem:[%s2489 + $0x10] sm:$0xff]
        %v2493 = vld [vmem:[%s2489 + $0x18] sm:$0xff]
        %v2494 = vld [vmem:[%s2489 + $0x20] sm:$0xff]
        %v2495 = vld [vmem:[%s2489 + $0x28] sm:$0xff]
        %v2496 = vld [vmem:[%s2489 + $0x30] sm:$0xff]
        %v2497 = vld [vmem:[%s2489 + $0x38] sm:$0xff]
        %v2499 = vsel %vm761, %v2481, 0
        %v2502 = vsel %vm761, %v2482, 0
        %v2505 = vsel %vm761, %v2483, 0
        %v2508 = vsel %vm761, %v2484, 0
        %v2511 = vsel %vm761, %v2485, 0
        %v2514 = vsel %vm761, %v2486, 0
        %v2517 = vsel %vm761, %v2487, 0
        %v2520 = vsel %vm761, %v2488, 0
        %2522 = vmatpush.msra.mxu0 0.0
        %2523 = vmatpush.msra.mxu0 0.0
        %2524 = vmatpush.msra.mxu0 0.0
        %2525 = vmatpush.msra.mxu0 0.0
        %2526 = vmatpush.msra.mxu0 0.0
        %2527 = vmatpush.msra.mxu0 0.0
        %2528 = vmatpush.msra.mxu0 0.0
        %2529 = vmatpush.msra.mxu0 0.0
        %2530 = vmatpush.msra.mxu0 %v2497
        %2531 = vmatpush.msra.mxu0 %v2496
        %2532 = vmatpush.msra.mxu0 %v2495
        %2533 = vmatpush.msra.mxu0 %v2494
        %2534 = vmatpush.msra.mxu0 %v2493
        %2535 = vmatpush.msra.mxu0 %v2492
        %2536 = vmatpush.msra.mxu0 %v2491
        %2537 = vmatpush.msra.mxu0 %v2490
        %2538 = vmatmul.f32.gmra.mxu0 %v2499
        %v2539 = vpop.f32.mrf.mxu0
        %v2540 = vadd.f32 0.0, %v2539
        %2541 = vmatmul.f32.gmra.mxu0 %v2502
        %v2542 = vpop.f32.mrf.mxu0
        %v2543 = vadd.f32 0.0, %v2542
        %2544 = vmatmul.f32.gmra.mxu0 %v2505
        %v2545 = vpop.f32.mrf.mxu0
        %v2546 = vadd.f32 0.0, %v2545
        %2547 = vmatmul.f32.gmra.mxu0 %v2508
        %v2548 = vpop.f32.mrf.mxu0
        %v2549 = vadd.f32 0.0, %v2548
        %2550 = vmatmul.f32.gmra.mxu0 %v2511
        %v2551 = vpop.f32.mrf.mxu0
        %v2552 = vadd.f32 0.0, %v2551
        %2553 = vmatmul.f32.gmra.mxu0 %v2514
        %v2554 = vpop.f32.mrf.mxu0
        %v2555 = vadd.f32 0.0, %v2554
        %2556 = vmatmul.f32.gmra.mxu0 %v2517
        %v2557 = vpop.f32.mrf.mxu0
        %v2558 = vadd.f32 0.0, %v2557
        %2559 = vmatmul.f32.gmra.mxu0 %v2520
        %v2560 = vpop.f32.mrf.mxu0
        %v2561 = vadd.f32 0.0, %v2560
        %2562 = vdwg.mxu0
        %v2563 = vadd.f32 %v2473, %v2540
        %v2564 = vadd.f32 %v2474, %v2543
        %v2565 = vadd.f32 %v2475, %v2546
        %v2566 = vadd.f32 %v2476, %v2549
        %v2567 = vadd.f32 %v2477, %v2552
        %v2568 = vadd.f32 %v2478, %v2555
        %v2569 = vadd.f32 %v2479, %v2558
        %v2570 = vadd.f32 %v2480, %v2561
        %v2571 = vld [vmem:[%s1569 + $0x2] sm:$0xff]
        %v2572 = vld [vmem:[%s1569 + $0x12] sm:$0xff]
        %v2573 = vld [vmem:[%s1569 + $0x22] sm:$0xff]
        %v2574 = vld [vmem:[%s1569 + $0x32] sm:$0xff]
        %v2575 = vld [vmem:[%s1569 + $0x42] sm:$0xff]
        %v2576 = vld [vmem:[%s1569 + $0x52] sm:$0xff]
        %v2577 = vld [vmem:[%s1569 + $0x62] sm:$0xff]
        %v2578 = vld [vmem:[%s1569 + $0x72] sm:$0xff]
        %s2579 = scalar_lea.vmem %s5, 512
        %v2580 = vld [vmem:[%s2579] sm:$0xff]
        %v2581 = vld [vmem:[%s2579 + $0x8] sm:$0xff]
        %v2582 = vld [vmem:[%s2579 + $0x10] sm:$0xff]
        %v2583 = vld [vmem:[%s2579 + $0x18] sm:$0xff]
        %v2584 = vld [vmem:[%s2579 + $0x20] sm:$0xff]
        %v2585 = vld [vmem:[%s2579 + $0x28] sm:$0xff]
        %v2586 = vld [vmem:[%s2579 + $0x30] sm:$0xff]
        %v2587 = vld [vmem:[%s2579 + $0x38] sm:$0xff]
        %v2589 = vsel %vm761, %v2571, 0
        %v2592 = vsel %vm761, %v2572, 0
        %v2595 = vsel %vm761, %v2573, 0
        %v2598 = vsel %vm761, %v2574, 0
        %v2601 = vsel %vm761, %v2575, 0
        %v2604 = vsel %vm761, %v2576, 0
        %v2607 = vsel %vm761, %v2577, 0
        %v2610 = vsel %vm761, %v2578, 0
        %2612 = vmatpush.msra.mxu0 0.0
        %2613 = vmatpush.msra.mxu0 0.0
        %2614 = vmatpush.msra.mxu0 0.0
        %2615 = vmatpush.msra.mxu0 0.0
        %2616 = vmatpush.msra.mxu0 0.0
        %2617 = vmatpush.msra.mxu0 0.0
        %2618 = vmatpush.msra.mxu0 0.0
        %2619 = vmatpush.msra.mxu0 0.0
        %2620 = vmatpush.msra.mxu0 %v2587
        %2621 = vmatpush.msra.mxu0 %v2586
        %2622 = vmatpush.msra.mxu0 %v2585
        %2623 = vmatpush.msra.mxu0 %v2584
        %2624 = vmatpush.msra.mxu0 %v2583
        %2625 = vmatpush.msra.mxu0 %v2582
        %2626 = vmatpush.msra.mxu0 %v2581
        %2627 = vmatpush.msra.mxu0 %v2580
        %2628 = vmatmul.f32.gmra.mxu0 %v2589
        %v2629 = vpop.f32.mrf.mxu0
        %v2630 = vadd.f32 0.0, %v2629
        %2631 = vmatmul.f32.gmra.mxu0 %v2592
        %v2632 = vpop.f32.mrf.mxu0
        %v2633 = vadd.f32 0.0, %v2632
        %2634 = vmatmul.f32.gmra.mxu0 %v2595
        %v2635 = vpop.f32.mrf.mxu0
        %v2636 = vadd.f32 0.0, %v2635
        %2637 = vmatmul.f32.gmra.mxu0 %v2598
        %v2638 = vpop.f32.mrf.mxu0
        %v2639 = vadd.f32 0.0, %v2638
        %2640 = vmatmul.f32.gmra.mxu0 %v2601
        %v2641 = vpop.f32.mrf.mxu0
        %v2642 = vadd.f32 0.0, %v2641
        %2643 = vmatmul.f32.gmra.mxu0 %v2604
        %v2644 = vpop.f32.mrf.mxu0
        %v2645 = vadd.f32 0.0, %v2644
        %2646 = vmatmul.f32.gmra.mxu0 %v2607
        %v2647 = vpop.f32.mrf.mxu0
        %v2648 = vadd.f32 0.0, %v2647
        %2649 = vmatmul.f32.gmra.mxu0 %v2610
        %v2650 = vpop.f32.mrf.mxu0
        %v2651 = vadd.f32 0.0, %v2650
        %2652 = vdwg.mxu0
        %v2653 = vadd.f32 %v2563, %v2630
        %v2654 = vadd.f32 %v2564, %v2633
        %v2655 = vadd.f32 %v2565, %v2636
        %v2656 = vadd.f32 %v2566, %v2639
        %v2657 = vadd.f32 %v2567, %v2642
        %v2658 = vadd.f32 %v2568, %v2645
        %v2659 = vadd.f32 %v2569, %v2648
        %v2660 = vadd.f32 %v2570, %v2651
        %v2661 = vld [vmem:[%s6] sm:$0x1]
        %v2663 = vperm.slane %v2661, 0
        %v2665 = vadd.f32 %v2653, %v2663
        %v2666 = vadd.f32 %v2654, %v2663
        %v2667 = vadd.f32 %v2655, %v2663
        %v2668 = vadd.f32 %v2656, %v2663
        %v2669 = vadd.f32 %v2657, %v2663
        %v2670 = vadd.f32 %v2658, %v2663
        %v2671 = vadd.f32 %v2659, %v2663
        %v2672 = vadd.f32 %v2660, %v2663
        %2673 = vst.msk [vmem:[%s302] sm:$0xff] %vm761, %v2665
        %2674 = vst.msk [vmem:[%s302 + $0x8] sm:$0xff] %vm761, %v2666
        %2675 = vst.msk [vmem:[%s302 + $0x10] sm:$0xff] %vm761, %v2667
        %2676 = vst.msk [vmem:[%s302 + $0x18] sm:$0xff] %vm761, %v2668
        %2677 = vst.msk [vmem:[%s302 + $0x20] sm:$0xff] %vm761, %v2669
        %2678 = vst.msk [vmem:[%s302 + $0x28] sm:$0xff] %vm761, %v2670
        %2679 = vst.msk [vmem:[%s302 + $0x30] sm:$0xff] %vm761, %v2671
        %2680 = vst.msk [vmem:[%s302 + $0x38] sm:$0xff] %vm761, %v2672
        %s2681 = sand.u32 %s186, 1
        %s2682 = scalar_lea.sflag [#allocation5], %s2681
        %s2683 = sand.u32 %s186, 1
        %s2684 = smul.addr %s2683, 64
        %s2685 = scalar_lea.vmem [#allocation4], %s2684
        %s2686 = sand.u32 %s212, 1
        %s2687 = scalar_lea.sflag [#allocation7], %s2686
        %s2688 = sand.u32 %s212, 1
        %s2689 = smul.addr %s2688, 64
        %s2690 = scalar_lea.vmem [#allocation6], %s2689
        // Predicated region
        $region49: #{stage0_forward.1} parent=47 // pred_check
          %p2691 = pneg %p196
        $region50: #{stage0_forward.1} parent=47 // pred_check_branch
          %2693 = sbr.rel (%p2691) target = $region52
        $region51: #{stage0_forward.1} parent=47 // pred_region
          %2695 = vsyncadd %s2682, 0
          %s2696 = smul.addr %s26, 8
          %s2697 = smul.addr %s2696, 8
          %s2698 = scalar_lea.hbm %s7, %s2697
          %s2699 = sshll.u32 %s2685, 4
          %s2700 = int_to_ptr.vmem [resolvable:$true] %s2699
          %s2701 = sshll.u32 %s2698, 4
          %s2702 = int_to_ptr.hbm [resolvable:$true] %s2701
          %2707 = dma.vmem_to_hbm [thread:$0]  %s2700, 1024, %s2702, %s2682, 128, 128, 8
        $region52: #{stage0_forward.1} parent=47 // pred_fallthru
          _
        // Predicated region
        $region53: #{stage0_forward.1} parent=47 // pred_check
          %p2708 = pneg %p222
        $region54: #{stage0_forward.1} parent=47 // pred_check_branch
          %2710 = sbr.rel (%p2708) target = $region56
        $region55: #{stage0_forward.1} parent=47 // pred_region
          %2712 = vsyncadd %s2687, 0
          %s2713 = smul.addr %s26, 8
          %s2714 = smul.addr %s2713, 8
          %s2715 = scalar_lea.hbm %s8, %s2714
          %s2716 = sshll.u32 %s2690, 4
          %s2717 = int_to_ptr.vmem [resolvable:$true] %s2716
          %s2718 = sshll.u32 %s2715, 4
          %s2719 = int_to_ptr.hbm [resolvable:$true] %s2718
          %2724 = dma.vmem_to_hbm [thread:$0]  %s2717, 1024, %s2719, %s2687, 128, 128, 8
        $region56: #{stage0_forward.1} parent=47 // pred_fallthru
          _
      $region48: #{stage0_forward.1} parent=5 // pred_fallthru
        _
      %p2725 = scmp.le.s32.totalorder 2, %s21
      // Predicated region
      $region57: #{stage0_forward.1} parent=5 // pred_check
        %p2726 = pneg %p2725
      $region58: #{stage0_forward.1} parent=5 // pred_check_branch
        %2728 = sbr.rel (%p2726) target = $region60
      $region59: #{stage0_forward.1} parent=5 // pred_region
        %s2729 = ssub.s32 %s21, 2
        // Predicated region
        $region61: #{stage0_forward.1} parent=59 // pred_check
          %p2730 = pneg %p202
        $region62: #{stage0_forward.1} parent=59 // pred_check_branch
          %2732 = sbr.rel (%p2730) target = $region64
        $region63: #{stage0_forward.1} parent=59 // pred_region
          %s2733 = sand.u32 %s187, 1
          %s2734 = scalar_lea.sflag [#allocation5], %s2733
          %s2735 = sand.u32 %s187, 1
          %s2736 = smul.addr %s2735, 64
          %s2737 = scalar_lea.vmem [#allocation4], %s2736
          %2739 = dma.done %s2734, 1024
        $region64: #{stage0_forward.1} parent=59 // pred_fallthru
          _
        // Predicated region
        $region65: #{stage0_forward.1} parent=59 // pred_check
          %p2740 = pneg %p228
        $region66: #{stage0_forward.1} parent=59 // pred_check_branch
          %2742 = sbr.rel (%p2740) target = $region68
        $region67: #{stage0_forward.1} parent=59 // pred_region
          %s2743 = sand.u32 %s213, 1
          %s2744 = scalar_lea.sflag [#allocation7], %s2743
          %s2745 = sand.u32 %s213, 1
          %s2746 = smul.addr %s2745, 64
          %s2747 = scalar_lea.vmem [#allocation6], %s2746
          %2749 = dma.done %s2744, 1024
        $region68: #{stage0_forward.1} parent=59 // pred_fallthru
          _
      $region60: #{stage0_forward.1} parent=5 // pred_fallthru
        _
    $region6: #{stage0_forward.1} parent=1 // loop_footer
      %s25 = sadd.s32 1, %s21
    $region7: #{stage0_forward.1} parent=1 // loop_footer_branch
      %20 = sbr.rel target = $region3
    $region8: #{stage0_forward.1} parent=1 // loop_exit
      _
    %2750 = vsyncpa [#allocation5], 1
    %s2751 = scalar_lea.sflag [#allocation5], 1
    %2752 = vsyncpa %s2751, 1
    %2753 = vsyncpa [#allocation7], 1
    %s2754 = scalar_lea.sflag [#allocation7], 1
    %2755 = vsyncpa %s2754, 1

</llo_original>
